<compile_context>
chip_gen: v7x
topology: tpu7x:2x2x1
jax: 0.10.0
libtpu: 0.0.40
codegen_flags: <defaults>
</compile_context>

<pallas_src>
import jax
import jax.numpy as jnp
from jax import lax
from jax.experimental import pallas as pl
from jax.experimental.pallas import tpu as pltpu

# MXU operand dtype. Set to jnp.bfloat16 on v6e/v7x for ~2x MXU throughput and
# half the weight DMA (loosen the parity tolerance below if you do). Kept f32
# here for tight parity with the f32 reference.
_MXU_DTYPE = jnp.float32


# ---------------------------------------------------------------------------
# Fused kernel: lower bi-LSTM + attn pool -> upper bi-LSTM + attn pool -> fc
# ---------------------------------------------------------------------------
def _hier_kernel(x_ref, wih_lo_ref, whh_lo_ref, b_lo_ref, aw_lo_ref,
                 wih_up_ref, whh_up_ref, b_up_ref, aw_up_ref,
                 fcw_ref, fcb_ref, out_ref,
                 gx_lo, hseq_lo, gx_up, hseq_up):
    # x_ref    : [W, nw, bt, D]   time-major windows for this batch tile
    # wih_*    : [Din, 8H]        columns = [fwd i,f,g,o | bwd i,f,g,o]
    # whh_*    : [H, 8H]          columns = [fwd 4H | bwd 4H] (per-direction)
    # b_*      : [1, 8H]          fused b_ih + b_hh, both directions
    # aw_*     : [1, 2H]          attention scoring weight (row vector)
    # fcw_ref  : [1, 2H]          final projection weight (row vector)
    # fcb_ref  : [1, 1]           fc bias + learned out_bias, folded
    # out_ref  : [bt, 1]
    # gx_*     : [T, N, 8H]       hoisted input projection (+bias) scratch
    # hseq_*   : [T, N, 2H]       hidden sequence scratch
    W, nw, bt, D = x_ref.shape
    H8 = wih_lo_ref.shape[1]
    H4 = H8 // 2
    H = H4 // 4
    H2 = 2 * H
    mx = _MXU_DTYPE

    def run_level(x_flat, T, N, wih_ref, whh_ref, b_ref, aw_ref, gx, hseq):
        # (1) Hoist the time-invariant input projection AND the fused bias out
        #     of the recurrence: one [T*N, Din] x [Din, 8H] MXU matmul + one
        #     vectorized add, instead of T small matmuls / T broadcast adds.
        gx[...] = (jnp.dot(x_flat.astype(mx), wih_ref[...].astype(mx),
                           preferred_element_type=jnp.float32)
                   + b_ref[...]).reshape(T, N, H8)

        # Per-direction recurrent weights: static lane slices, hoisted.
        whh_f = whh_ref[:, :H4].astype(mx)
        whh_b = whh_ref[:, H4:].astype(mx)

        def cell(gates, c_prev):
            i = jax.nn.sigmoid(gates[:, 0 * H:1 * H])
            f = jax.nn.sigmoid(gates[:, 1 * H:2 * H])
            g = jnp.tanh(gates[:, 2 * H:3 * H])
            o = jax.nn.sigmoid(gates[:, 3 * H:4 * H])
            c = f * c_prev + i * g
            return o * jnp.tanh(c), c

        # (2) Serial recurrence, both directions fused in one time loop
        #     (backward direction indexes time as T-1-t: no reversed copies).
        #     h/c are four separate vreg-resident carries; only the two truly
        #     recurrent [N,H]x[H,4H] matmuls stay inside the loop.
        def step(t, carry):
            h_f, c_f, h_b, c_b = carry
            gh_f = jnp.dot(h_f.astype(mx), whh_f,
                           preferred_element_type=jnp.float32)
            gh_b = jnp.dot(h_b.astype(mx), whh_b,
                           preferred_element_type=jnp.float32)
            h_f, c_f = cell(gx[t, :, :H4] + gh_f, c_f)
            h_b, c_b = cell(gx[T - 1 - t, :, H4:] + gh_b, c_b)
            hseq[t, :, :H] = h_f
            hseq[T - 1 - t, :, H:] = h_b
            return (h_f, c_f, h_b, c_b)

        z = jnp.zeros((N, H), jnp.float32)
        lax.fori_loop(0, T, step, (z, z, z, z),
                      unroll=True if T <= 8 else 4)

        # (3) Attention pooling over time. Scores via VPU multiply + lane
        #     reduction (no 1-column MXU pass); hidden sequence stays resident
        #     in VMEM. The scalar attention bias cancels inside the softmax.
        h_all = hseq[...]                                          # [T, N, 2H]
        aw = aw_ref[...].reshape(1, 1, H2)
        scores = jnp.sum(h_all * aw, axis=-1, keepdims=True)       # [T, N, 1]
        m = jnp.max(scores, axis=0, keepdims=True)
        e = jnp.exp(scores - m)
        wts = e / jnp.sum(e, axis=0, keepdims=True)                # softmax over T
        return jnp.sum(wts * h_all, axis=0)                        # [N, 2H]

    # Lower level: rows are (window, batch) pairs with n = win*bt + b, so the
    # pooled output is already the upper level's time-major input.
    n_lo = nw * bt
    pooled_lo = run_level(x_ref[...].reshape(W * n_lo, D), W, n_lo,
                          wih_lo_ref, whh_lo_ref, b_lo_ref, aw_lo_ref,
                          gx_lo, hseq_lo)

    # Upper level over windows; pooled_lo [nw*bt, 2H] is consumed in place.
    pooled_up = run_level(pooled_lo, nw, bt,
                          wih_up_ref, whh_up_ref, b_up_ref, aw_up_ref,
                          gx_up, hseq_up)

    # Final Linear(2H, 1) + out_bias, fused in-kernel as a VPU reduce.
    out_ref[...] = (jnp.sum(pooled_up * fcw_ref[...], axis=-1, keepdims=True)
                    + fcb_ref[...])


# ---------------------------------------------------------------------------
# Tiling / VMEM budgeting
# ---------------------------------------------------------------------------
def _vmem_bytes(bt, W, nw, D, H):
    f = 4
    H2, H8 = 2 * H, 8 * H
    n_lo = nw * bt
    scratch = (W * n_lo * (H8 + H2) + nw * bt * (H8 + H2)) * f
    x_io = 2 * W * nw * bt * D * f            # double-buffered input tile
    out_io = 2 * bt * f
    weights = 2 * f * (D * H8 + H * H8 + H8 + H2          # lower level
                       + H2 * H8 + H * H8 + H8 + H2       # upper level
                       + H2 + 1)                          # fc
    return scratch + x_io + out_io + weights


def _choose_batch_tile(B, W, nw, D, H):
    # Largest sublane-aligned (multiple of 8) batch tile that (a) keeps all
    # scratch + double-buffered I/O under ~28 MiB (headroom on v7x's 64 MiB
    # VMEM) and (b) leaves >= 2 grid steps whenever the batch allows it, so
    # dimension_semantics=("parallel",) can split across v7x's two TensorCores
    # (megacore on v5e/v6e).
    bt = 128
    while bt > 8 and _vmem_bytes(bt, W, nw, D, H) > 28 * 1024 * 1024:
        bt //= 2
    while bt > 8 and B <= bt:
        bt //= 2
    return bt


def _pack_lstm(p):
    wih = jnp.concatenate([p["w_ih_f"], p["w_ih_b"]], axis=1)     # [Din, 8H]
    whh = jnp.concatenate([p["w_hh_f"], p["w_hh_b"]], axis=1)     # [H, 8H]
    b = jnp.concatenate([p["b_f"], p["b_b"]], axis=1)             # [1, 8H]
    return wih, whh, b


# ---------------------------------------------------------------------------
# Forward pass: one fused pallas_call
# ---------------------------------------------------------------------------
def hier_attn_lstm_forward(x, params, window_size):
    B, S, D = x.shape
    W = window_size
    nw = S // W
    x = x[:, :nw * W, :]

    H = params["lower"]["w_hh_f"].shape[0]
    # Lane-dense gate slices / per-direction stores require H % 128 == 0
    # (module default hidden_dim=128).
    assert H % 128 == 0, "hidden_dim must be a multiple of 128"
    H2, H8 = 2 * H, 8 * H

    bt = _choose_batch_tile(B, W, nw, D, H)
    Bp = ((B + bt - 1) // bt) * bt

    # Windowed, time-major, window-major layout [W, nw, Bp, D]. Kept host-side
    # (single cheap relayout) so every in-kernel reshape is a layout-preserving
    # leading-dim collapse (bt is a multiple of 8). Padded rows are
    # independent and sliced off below.
    xw = jnp.transpose(x.reshape(B, nw, W, D), (2, 1, 0, 3))
    if Bp != B:
        xw = jnp.pad(xw, ((0, 0), (0, 0), (0, Bp - B), (0, 0)))

    wih_lo, whh_lo, b_lo = _pack_lstm(params["lower"])
    wih_up, whh_up, b_up = _pack_lstm(params["upper"])
    aw_lo = params["lower_attn_w"].reshape(1, H2)   # attn bias cancels in softmax
    aw_up = params["upper_attn_w"].reshape(1, H2)
    fcw = params["fc_w"].reshape(1, H2)
    fcb = (params["fc_b"] + params["out_bias"]).reshape(1, 1)

    grid = (Bp // bt,)
    full = lambda i: (0, 0)

    out = pl.pallas_call(
        _hier_kernel,
        out_shape=jax.ShapeDtypeStruct((Bp, 1), jnp.float32),
        grid_spec=pltpu.PrefetchScalarGridSpec(
            num_scalar_prefetch=0,
            grid=grid,
            in_specs=[
                pl.BlockSpec((W, nw, bt, D), lambda i: (0, 0, i, 0)),  # x tile
                pl.BlockSpec((D, H8), full),     # lower W_ih (both dirs)
                pl.BlockSpec((H, H8), full),     # lower W_hh (fwd | bwd cols)
                pl.BlockSpec((1, H8), full),     # lower fused bias
                pl.BlockSpec((1, H2), full),     # lower attn weight (row)
                pl.BlockSpec((H2, H8), full),    # upper W_ih
                pl.BlockSpec((H, H8), full),     # upper W_hh
                pl.BlockSpec((1, H8), full),     # upper fused bias
                pl.BlockSpec((1, H2), full),     # upper attn weight (row)
                pl.BlockSpec((1, H2), full),     # fc weight (row)
                pl.BlockSpec((1, 1), full),      # fc bias + out_bias
            ],
            out_specs=pl.BlockSpec((bt, 1), lambda i: (i, 0)),
            scratch_shapes=[
                pltpu.VMEM((W, nw * bt, H8), jnp.float32),   # lower gates_x
                pltpu.VMEM((W, nw * bt, H2), jnp.float32),   # lower hidden seq
                pltpu.VMEM((nw, bt, H8), jnp.float32),       # upper gates_x
                pltpu.VMEM((nw, bt, H2), jnp.float32),       # upper hidden seq
            ],
        ),
        compiler_params=pltpu.CompilerParams(
            dimension_semantics=("parallel",),   # batch tiles are independent
            vmem_limit_bytes=int(min(max(_vmem_bytes(bt, W, nw, D, H) + (8 << 20),
                                         16 << 20), 48 << 20)),
        ),
    )(xw, wih_lo, whh_lo, b_lo, aw_lo, wih_up, whh_up, b_up, aw_up, fcw, fcb)

    return out[:B]


# ---------------------------------------------------------------------------
# Pure-JAX reference (independent data path: PyTorch-style batch-major windows)
# ---------------------------------------------------------------------------
def _ref_lstm_dir(x_tm, w_ih, w_hh, bias):
    H = w_hh.shape[0]
    Bn = x_tm.shape[1]

    def step(carry, x_t):
        h, c = carry
        gates = x_t @ w_ih + h @ w_hh + bias
        i = jax.nn.sigmoid(gates[:, :H])
        f = jax.nn.sigmoid(gates[:, H:2 * H])
        g = jnp.tanh(gates[:, 2 * H:3 * H])
        o = jax.nn.sigmoid(gates[:, 3 * H:])
        c = f * c + i * g
        h = o * jnp.tanh(c)
        return (h, c), h

    init = (jnp.zeros((Bn, H), jnp.float32), jnp.zeros((Bn, H), jnp.float32))
    _, hs = lax.scan(step, init, x_tm)
    return hs


def _ref_level(x_tm, lstm_p, attn_w, attn_b):
    fwd = _ref_lstm_dir(x_tm, lstm_p["w_ih_f"], lstm_p["w_hh_f"], lstm_p["b_f"])
    bwd = _ref_lstm_dir(x_tm[::-1], lstm_p["w_ih_b"], lstm_p["w_hh_b"],
                        lstm_p["b_b"])[::-1]
    h = jnp.concatenate([fwd, bwd], axis=-1)                      # [T, N, 2H]
    scores = jnp.einsum("tnf,fo->tno", h, attn_w) + attn_b[0, 0]
    wts = jax.nn.softmax(scores, axis=0)
    return jnp.sum(wts * h, axis=0)                               # [N, 2H]


def ref_forward(x, params, window_size):
    B, S, D = x.shape
    W = window_size
    nw = S // W
    x = x[:, :nw * W, :]
    xw_tm = jnp.transpose(x.reshape(B * nw, W, D), (1, 0, 2))
    win = _ref_level(xw_tm, params["lower"],
                     params["lower_attn_w"], params["lower_attn_b"])
    up_in = jnp.transpose(win.reshape(B, nw, -1), (1, 0, 2))
    seq = _ref_level(up_in, params["upper"],
                     params["upper_attn_w"], params["upper_attn_b"])
    return seq @ params["fc_w"] + params["fc_b"] + params["out_bias"]


# ---------------------------------------------------------------------------
# Deterministic parameter init (shapes follow the PyTorch module's __init__)
# ---------------------------------------------------------------------------
def init_params(key, input_dim, hidden_dim):
    H = hidden_dim
    k_lstm = 1.0 / jnp.sqrt(H)
    k_attn = 1.0 / jnp.sqrt(2 * H)

    def u(k, shape, scale):
        return jax.random.uniform(k, shape, jnp.float32, -scale, scale)

    keys = iter(jax.random.split(key, 32))

    def lstm_params(in_dim):
        p = {}
        for d in ("f", "b"):
            p[f"w_ih_{d}"] = u(next(keys), (in_dim, 4 * H), k_lstm)   # W_ih^T
            p[f"w_hh_{d}"] = u(next(keys), (H, 4 * H), k_lstm)        # W_hh^T
            b_ih = u(next(keys), (4 * H,), k_lstm)
            b_hh = u(next(keys), (4 * H,), k_lstm)
            p[f"b_{d}"] = (b_ih + b_hh).reshape(1, 4 * H)
        return p

    return {
        "lower": lstm_params(input_dim),
        "upper": lstm_params(2 * H),
        "lower_attn_w": u(next(keys), (2 * H, 1), k_attn),
        "lower_attn_b": u(next(keys), (1, 1), k_attn),
        "upper_attn_w": u(next(keys), (2 * H, 1), k_attn),
        "upper_attn_b": u(next(keys), (1, 1), k_attn),
        "fc_w": u(next(keys), (2 * H, 1), k_attn),
        "fc_b": u(next(keys), (1,), k_attn),
        "out_bias": jnp.array([-80.0], dtype=jnp.float32),
    }


# ---------------------------------------------------------------------------
if __name__ == "__main__":
    batch, seq_len, input_dim = 2, 8, 16
    hidden_dim, window_size = 128, 4   # module default hidden_dim=128 keeps
                                       # all gate slices / stores lane-dense

    key = jax.random.PRNGKey(0)
    k_x, k_p = jax.random.split(key)
    x = jax.random.normal(k_x, (batch, seq_len, input_dim), jnp.float32)
    params = init_params(k_p, input_dim, hidden_dim)

    out = hier_attn_lstm_forward(x, params, window_size)
    out = jax.block_until_ready(out)

    ref = ref_forward(x, params, window_size)
    ref = jax.block_until_ready(ref)

    assert out.shape == (batch, 1)
    assert jnp.allclose(out, ref, rtol=1e-3, atol=1e-3), (out, ref)
    print("KERNEL_OK")
</pallas_src>

<mosaic_0001>
module attributes {stable_mosaic.version = 11 : i64} {
  func.func @_hier_kernel(%arg0: i32, %arg1: memref<4x2x8x16xf32, #tpu.memory_space<vmem>>, %arg2: memref<16x1024xf32, #tpu.memory_space<vmem>>, %arg3: memref<128x1024xf32, #tpu.memory_space<vmem>>, %arg4: memref<1x1024xf32, #tpu.memory_space<vmem>>, %arg5: memref<1x256xf32, #tpu.memory_space<vmem>>, %arg6: memref<256x1024xf32, #tpu.memory_space<vmem>>, %arg7: memref<128x1024xf32, #tpu.memory_space<vmem>>, %arg8: memref<1x1024xf32, #tpu.memory_space<vmem>>, %arg9: memref<1x256xf32, #tpu.memory_space<vmem>>, %arg10: memref<1x256xf32, #tpu.memory_space<vmem>>, %arg11: memref<1x1xf32, #tpu.memory_space<vmem>>, %arg12: memref<8x1xf32, #tpu.memory_space<vmem>>, %arg13: memref<4x16x1024xf32, #tpu.memory_space<vmem>>, %arg14: memref<4x16x256xf32, #tpu.memory_space<vmem>>, %arg15: memref<2x8x1024xf32, #tpu.memory_space<vmem>>, %arg16: memref<2x8x256xf32, #tpu.memory_space<vmem>>) attributes {dimension_semantics = [#tpu.dimension_semantics<parallel>], iteration_bounds = array<i64: 1>, scalar_prefetch = 0 : i64, scratch_operands = 4 : i64, tpu.core_type = #tpu.core_type<tc>, window_params = [{transform_indices = @transform_0, window_bounds = array<i64: 4, 2, 8, 16>}, {pipeline_mode = #tpu.pipeline_mode<synchronous>, transform_indices = @transform_1, window_bounds = array<i64: 16, 1024>}, {pipeline_mode = #tpu.pipeline_mode<synchronous>, transform_indices = @transform_2, window_bounds = array<i64: 128, 1024>}, {pipeline_mode = #tpu.pipeline_mode<synchronous>, transform_indices = @transform_3, window_bounds = array<i64: 1, 1024>}, {pipeline_mode = #tpu.pipeline_mode<synchronous>, transform_indices = @transform_4, window_bounds = array<i64: 1, 256>}, {pipeline_mode = #tpu.pipeline_mode<synchronous>, transform_indices = @transform_5, window_bounds = array<i64: 256, 1024>}, {pipeline_mode = #tpu.pipeline_mode<synchronous>, transform_indices = @transform_6, window_bounds = array<i64: 128, 1024>}, {pipeline_mode = #tpu.pipeline_mode<synchronous>, transform_indices = @transform_7, window_bounds = array<i64: 1, 1024>}, {pipeline_mode = #tpu.pipeline_mode<synchronous>, transform_indices = @transform_8, window_bounds = array<i64: 1, 256>}, {pipeline_mode = #tpu.pipeline_mode<synchronous>, transform_indices = @transform_9, window_bounds = array<i64: 1, 256>}, {pipeline_mode = #tpu.pipeline_mode<synchronous>, transform_indices = @transform_10, window_bounds = array<i64: 1, 1>}, {transform_indices = @transform_11, window_bounds = array<i64: 8, 1>}]} {
    %c0 = arith.constant 0 : index
    %c0_0 = arith.constant 0 : index
    %c0_1 = arith.constant 0 : index
    %c0_2 = arith.constant 0 : index
    %0 = vector.load %arg1[%c0, %c0_0, %c0_1, %c0_2] : memref<4x2x8x16xf32, #tpu.memory_space<vmem>>, vector<4x2x8x16xf32>
    %1 = vector.shape_cast %0 : vector<4x2x8x16xf32> to vector<64x16xf32>
    %c0_3 = arith.constant 0 : index
    %c0_4 = arith.constant 0 : index
    %2 = vector.load %arg2[%c0_3, %c0_4] : memref<16x1024xf32, #tpu.memory_space<vmem>>, vector<16x1024xf32>
    %cst = arith.constant dense<0.000000e+00> : vector<64x1024xf32>
    %3 = tpu.matmul %1, %2, %cst {dimension_numbers = #tpu.dot_dimension_numbers<[1], [0], [0], [1], [0, 0, 1, 1], [], []>} : vector<64x16xf32>, vector<16x1024xf32>, vector<64x1024xf32> -> vector<64x1024xf32>
    %c0_5 = arith.constant 0 : index
    %c0_6 = arith.constant 0 : index
    %4 = vector.load %arg4[%c0_5, %c0_6] : memref<1x1024xf32, #tpu.memory_space<vmem>>, vector<1x1024xf32>
    %5 = vector.broadcast %4 : vector<1x1024xf32> to vector<64x1024xf32>
    %6 = arith.addf %3, %5 : vector<64x1024xf32>
    %7 = vector.shape_cast %6 : vector<64x1024xf32> to vector<4x16x1024xf32>
    %c0_7 = arith.constant 0 : index
    %c0_8 = arith.constant 0 : index
    %c0_9 = arith.constant 0 : index
    %8 = vector.load %arg13[%c0_7, %c0_8, %c0_9] : memref<4x16x1024xf32, #tpu.memory_space<vmem>>, vector<4x16x1024xf32>
    tpu.vector_store %arg13[%c0_7, %c0_8, %c0_9], %7 {strides = array<i32>} : memref<4x16x1024xf32, #tpu.memory_space<vmem>>, vector<4x16x1024xf32>,
    %c0_10 = arith.constant 0 : index
    %c0_11 = arith.constant 0 : index
    %9 = vector.load %arg3[%c0_10, %c0_11] : memref<128x1024xf32, #tpu.memory_space<vmem>>, vector<128x512xf32>
    %c0_12 = arith.constant 0 : index
    %c512 = arith.constant 512 : index
    %10 = vector.load %arg3[%c0_12, %c512] : memref<128x1024xf32, #tpu.memory_space<vmem>>, vector<128x512xf32>
    %cst_13 = arith.constant 0.000000e+00 : f32
    %11 = vector.broadcast %cst_13 : f32 to vector<16x128xf32>
    %c0_i32 = arith.constant 0 : i32
    %cst_14 = arith.constant dense<0.000000e+00> : vector<16x512xf32>
    %12 = tpu.matmul %11, %9, %cst_14 {dimension_numbers = #tpu.dot_dimension_numbers<[1], [0], [0], [1], [0, 0, 1, 1], [], []>} : vector<16x128xf32>, vector<128x512xf32>, vector<16x512xf32> -> vector<16x512xf32>
    %cst_15 = arith.constant dense<0.000000e+00> : vector<16x512xf32>
    %13 = tpu.matmul %11, %10, %cst_15 {dimension_numbers = #tpu.dot_dimension_numbers<[1], [0], [0], [1], [0, 0, 1, 1], [], []>} : vector<16x128xf32>, vector<128x512xf32>, vector<16x512xf32> -> vector<16x512xf32>
    %14 = arith.index_cast %c0_i32 : i32 to index
    %c0_16 = arith.constant 0 : index
    %c0_17 = arith.constant 0 : index
    %15 = vector.load %arg13[%14, %c0_16, %c0_17] : memref<4x16x1024xf32, #tpu.memory_space<vmem>>, vector<1x16x512xf32>
    %16 = vector.shape_cast %15 : vector<1x16x512xf32> to vector<16x512xf32>
    %17 = arith.addf %16, %12 : vector<16x512xf32>
    %18 = vector.extract_strided_slice %17 {offsets = [0, 0], sizes = [16, 128], strides = [1, 1]} : vector<16x512xf32> to vector<16x128xf32>
    %19 = arith.negf %18 : vector<16x128xf32>
    %20 = math.exp %19 : vector<16x128xf32>
    %cst_18 = arith.constant 1.000000e+00 : f32
    %21 = vector.broadcast %cst_18 : f32 to vector<16x128xf32>
    %22 = arith.addf %21, %20 : vector<16x128xf32>
    %23 = arith.divf %21, %22 : vector<16x128xf32>
    %24 = vector.extract_strided_slice %17 {offsets = [0, 128], sizes = [16, 128], strides = [1, 1]} : vector<16x512xf32> to vector<16x128xf32>
    %25 = arith.negf %24 : vector<16x128xf32>
    %26 = math.exp %25 : vector<16x128xf32>
    %cst_19 = arith.constant 1.000000e+00 : f32
    %27 = vector.broadcast %cst_19 : f32 to vector<16x128xf32>
    %28 = arith.addf %27, %26 : vector<16x128xf32>
    %29 = arith.divf %27, %28 : vector<16x128xf32>
    %30 = vector.extract_strided_slice %17 {offsets = [0, 256], sizes = [16, 128], strides = [1, 1]} : vector<16x512xf32> to vector<16x128xf32>
    %31 = math.tanh %30 : vector<16x128xf32>
    %32 = vector.extract_strided_slice %17 {offsets = [0, 384], sizes = [16, 128], strides = [1, 1]} : vector<16x512xf32> to vector<16x128xf32>
    %33 = arith.negf %32 : vector<16x128xf32>
    %34 = math.exp %33 : vector<16x128xf32>
    %cst_20 = arith.constant 1.000000e+00 : f32
    %35 = vector.broadcast %cst_20 : f32 to vector<16x128xf32>
    %36 = arith.addf %35, %34 : vector<16x128xf32>
    %37 = arith.divf %35, %36 : vector<16x128xf32>
    %38 = arith.mulf %29, %11 : vector<16x128xf32>
    %39 = arith.mulf %23, %31 : vector<16x128xf32>
    %40 = arith.addf %38, %39 : vector<16x128xf32>
    %41 = math.tanh %40 : vector<16x128xf32>
    %42 = arith.mulf %37, %41 : vector<16x128xf32>
    %c3_i32 = arith.constant 3 : i32
    %43 = arith.subi %c3_i32, %c0_i32 : i32
    %44 = arith.index_cast %43 : i32 to index
    %c0_21 = arith.constant 0 : index
    %c512_22 = arith.constant 512 : index
    %45 = vector.load %arg13[%44, %c0_21, %c512_22] : memref<4x16x1024xf32, #tpu.memory_space<vmem>>, vector<1x16x512xf32>
    %46 = vector.shape_cast %45 : vector<1x16x512xf32> to vector<16x512xf32>
    %47 = arith.addf %46, %13 : vector<16x512xf32>
    %48 = vector.extract_strided_slice %47 {offsets = [0, 0], sizes = [16, 128], strides = [1, 1]} : vector<16x512xf32> to vector<16x128xf32>
    %49 = arith.negf %48 : vector<16x128xf32>
    %50 = math.exp %49 : vector<16x128xf32>
    %cst_23 = arith.constant 1.000000e+00 : f32
    %51 = vector.broadcast %cst_23 : f32 to vector<16x128xf32>
    %52 = arith.addf %51, %50 : vector<16x128xf32>
    %53 = arith.divf %51, %52 : vector<16x128xf32>
    %54 = vector.extract_strided_slice %47 {offsets = [0, 128], sizes = [16, 128], strides = [1, 1]} : vector<16x512xf32> to vector<16x128xf32>
    %55 = arith.negf %54 : vector<16x128xf32>
    %56 = math.exp %55 : vector<16x128xf32>
    %cst_24 = arith.constant 1.000000e+00 : f32
    %57 = vector.broadcast %cst_24 : f32 to vector<16x128xf32>
    %58 = arith.addf %57, %56 : vector<16x128xf32>
    %59 = arith.divf %57, %58 : vector<16x128xf32>
    %60 = vector.extract_strided_slice %47 {offsets = [0, 256], sizes = [16, 128], strides = [1, 1]} : vector<16x512xf32> to vector<16x128xf32>
    %61 = math.tanh %60 : vector<16x128xf32>
    %62 = vector.extract_strided_slice %47 {offsets = [0, 384], sizes = [16, 128], strides = [1, 1]} : vector<16x512xf32> to vector<16x128xf32>
    %63 = arith.negf %62 : vector<16x128xf32>
    %64 = math.exp %63 : vector<16x128xf32>
    %cst_25 = arith.constant 1.000000e+00 : f32
    %65 = vector.broadcast %cst_25 : f32 to vector<16x128xf32>
    %66 = arith.addf %65, %64 : vector<16x128xf32>
    %67 = arith.divf %65, %66 : vector<16x128xf32>
    %68 = arith.mulf %59, %11 : vector<16x128xf32>
    %69 = arith.mulf %53, %61 : vector<16x128xf32>
    %70 = arith.addf %68, %69 : vector<16x128xf32>
    %71 = math.tanh %70 : vector<16x128xf32>
    %72 = arith.mulf %67, %71 : vector<16x128xf32>
    %73 = arith.index_cast %c0_i32 : i32 to index
    %c0_26 = arith.constant 0 : index
    %c0_27 = arith.constant 0 : index
    %74 = vector.load %arg14[%73, %c0_26, %c0_27] : memref<4x16x256xf32, #tpu.memory_space<vmem>>, vector<1x16x128xf32>
    %75 = vector.shape_cast %74 : vector<1x16x128xf32> to vector<16x128xf32>
    %76 = vector.shape_cast %42 : vector<16x128xf32> to vector<1x16x128xf32>
    tpu.vector_store %arg14[%73, %c0_26, %c0_27], %76 {strides = array<i32>} : memref<4x16x256xf32, #tpu.memory_space<vmem>>, vector<1x16x128xf32>,
    %c3_i32_28 = arith.constant 3 : i32
    %77 = arith.subi %c3_i32_28, %c0_i32 : i32
    %78 = arith.index_cast %77 : i32 to index
    %c0_29 = arith.constant 0 : index
    %c128 = arith.constant 128 : index
    %79 = vector.load %arg14[%78, %c0_29, %c128] : memref<4x16x256xf32, #tpu.memory_space<vmem>>, vector<1x16x128xf32>
    %80 = vector.shape_cast %79 : vector<1x16x128xf32> to vector<16x128xf32>
    %81 = vector.shape_cast %72 : vector<16x128xf32> to vector<1x16x128xf32>
    tpu.vector_store %arg14[%78, %c0_29, %c128], %81 {strides = array<i32>} : memref<4x16x256xf32, #tpu.memory_space<vmem>>, vector<1x16x128xf32>,
    %c1_i32 = arith.constant 1 : i32
    %cst_30 = arith.constant dense<0.000000e+00> : vector<16x512xf32>
    %82 = tpu.matmul %42, %9, %cst_30 {dimension_numbers = #tpu.dot_dimension_numbers<[1], [0], [0], [1], [0, 0, 1, 1], [], []>} : vector<16x128xf32>, vector<128x512xf32>, vector<16x512xf32> -> vector<16x512xf32>
    %cst_31 = arith.constant dense<0.000000e+00> : vector<16x512xf32>
    %83 = tpu.matmul %72, %10, %cst_31 {dimension_numbers = #tpu.dot_dimension_numbers<[1], [0], [0], [1], [0, 0, 1, 1], [], []>} : vector<16x128xf32>, vector<128x512xf32>, vector<16x512xf32> -> vector<16x512xf32>
    %84 = arith.index_cast %c1_i32 : i32 to index
    %c0_32 = arith.constant 0 : index
    %c0_33 = arith.constant 0 : index
    %85 = vector.load %arg13[%84, %c0_32, %c0_33] : memref<4x16x1024xf32, #tpu.memory_space<vmem>>, vector<1x16x512xf32>
    %86 = vector.shape_cast %85 : vector<1x16x512xf32> to vector<16x512xf32>
    %87 = arith.addf %86, %82 : vector<16x512xf32>
    %88 = vector.extract_strided_slice %87 {offsets = [0, 0], sizes = [16, 128], strides = [1, 1]} : vector<16x512xf32> to vector<16x128xf32>
    %89 = arith.negf %88 : vector<16x128xf32>
    %90 = math.exp %89 : vector<16x128xf32>
    %cst_34 = arith.constant 1.000000e+00 : f32
    %91 = vector.broadcast %cst_34 : f32 to vector<16x128xf32>
    %92 = arith.addf %91, %90 : vector<16x128xf32>
    %93 = arith.divf %91, %92 : vector<16x128xf32>
    %94 = vector.extract_strided_slice %87 {offsets = [0, 128], sizes = [16, 128], strides = [1, 1]} : vector<16x512xf32> to vector<16x128xf32>
    %95 = arith.negf %94 : vector<16x128xf32>
    %96 = math.exp %95 : vector<16x128xf32>
    %cst_35 = arith.constant 1.000000e+00 : f32
    %97 = vector.broadcast %cst_35 : f32 to vector<16x128xf32>
    %98 = arith.addf %97, %96 : vector<16x128xf32>
    %99 = arith.divf %97, %98 : vector<16x128xf32>
    %100 = vector.extract_strided_slice %87 {offsets = [0, 256], sizes = [16, 128], strides = [1, 1]} : vector<16x512xf32> to vector<16x128xf32>
    %101 = math.tanh %100 : vector<16x128xf32>
    %102 = vector.extract_strided_slice %87 {offsets = [0, 384], sizes = [16, 128], strides = [1, 1]} : vector<16x512xf32> to vector<16x128xf32>
    %103 = arith.negf %102 : vector<16x128xf32>
    %104 = math.exp %103 : vector<16x128xf32>
    %cst_36 = arith.constant 1.000000e+00 : f32
    %105 = vector.broadcast %cst_36 : f32 to vector<16x128xf32>
    %106 = arith.addf %105, %104 : vector<16x128xf32>
    %107 = arith.divf %105, %106 : vector<16x128xf32>
    %108 = arith.mulf %99, %40 : vector<16x128xf32>
    %109 = arith.mulf %93, %101 : vector<16x128xf32>
    %110 = arith.addf %108, %109 : vector<16x128xf32>
    %111 = math.tanh %110 : vector<16x128xf32>
    %112 = arith.mulf %107, %111 : vector<16x128xf32>
    %c3_i32_37 = arith.constant 3 : i32
    %113 = arith.subi %c3_i32_37, %c1_i32 : i32
    %114 = arith.index_cast %113 : i32 to index
    %c0_38 = arith.constant 0 : index
    %c512_39 = arith.constant 512 : index
    %115 = vector.load %arg13[%114, %c0_38, %c512_39] : memref<4x16x1024xf32, #tpu.memory_space<vmem>>, vector<1x16x512xf32>
    %116 = vector.shape_cast %115 : vector<1x16x512xf32> to vector<16x512xf32>
    %117 = arith.addf %116, %83 : vector<16x512xf32>
    %118 = vector.extract_strided_slice %117 {offsets = [0, 0], sizes = [16, 128], strides = [1, 1]} : vector<16x512xf32> to vector<16x128xf32>
    %119 = arith.negf %118 : vector<16x128xf32>
    %120 = math.exp %119 : vector<16x128xf32>
    %cst_40 = arith.constant 1.000000e+00 : f32
    %121 = vector.broadcast %cst_40 : f32 to vector<16x128xf32>
    %122 = arith.addf %121, %120 : vector<16x128xf32>
    %123 = arith.divf %121, %122 : vector<16x128xf32>
    %124 = vector.extract_strided_slice %117 {offsets = [0, 128], sizes = [16, 128], strides = [1, 1]} : vector<16x512xf32> to vector<16x128xf32>
    %125 = arith.negf %124 : vector<16x128xf32>
    %126 = math.exp %125 : vector<16x128xf32>
    %cst_41 = arith.constant 1.000000e+00 : f32
    %127 = vector.broadcast %cst_41 : f32 to vector<16x128xf32>
    %128 = arith.addf %127, %126 : vector<16x128xf32>
    %129 = arith.divf %127, %128 : vector<16x128xf32>
    %130 = vector.extract_strided_slice %117 {offsets = [0, 256], sizes = [16, 128], strides = [1, 1]} : vector<16x512xf32> to vector<16x128xf32>
    %131 = math.tanh %130 : vector<16x128xf32>
    %132 = vector.extract_strided_slice %117 {offsets = [0, 384], sizes = [16, 128], strides = [1, 1]} : vector<16x512xf32> to vector<16x128xf32>
    %133 = arith.negf %132 : vector<16x128xf32>
    %134 = math.exp %133 : vector<16x128xf32>
    %cst_42 = arith.constant 1.000000e+00 : f32
    %135 = vector.broadcast %cst_42 : f32 to vector<16x128xf32>
    %136 = arith.addf %135, %134 : vector<16x128xf32>
    %137 = arith.divf %135, %136 : vector<16x128xf32>
    %138 = arith.mulf %129, %70 : vector<16x128xf32>
    %139 = arith.mulf %123, %131 : vector<16x128xf32>
    %140 = arith.addf %138, %139 : vector<16x128xf32>
    %141 = math.tanh %140 : vector<16x128xf32>
    %142 = arith.mulf %137, %141 : vector<16x128xf32>
    %143 = arith.index_cast %c1_i32 : i32 to index
    %c0_43 = arith.constant 0 : index
    %c0_44 = arith.constant 0 : index
    %144 = vector.load %arg14[%143, %c0_43, %c0_44] : memref<4x16x256xf32, #tpu.memory_space<vmem>>, vector<1x16x128xf32>
    %145 = vector.shape_cast %144 : vector<1x16x128xf32> to vector<16x128xf32>
    %146 = vector.shape_cast %112 : vector<16x128xf32> to vector<1x16x128xf32>
    tpu.vector_store %arg14[%143, %c0_43, %c0_44], %146 {strides = array<i32>} : memref<4x16x256xf32, #tpu.memory_space<vmem>>, vector<1x16x128xf32>,
    %c3_i32_45 = arith.constant 3 : i32
    %147 = arith.subi %c3_i32_45, %c1_i32 : i32
    %148 = arith.index_cast %147 : i32 to index
    %c0_46 = arith.constant 0 : index
    %c128_47 = arith.constant 128 : index
    %149 = vector.load %arg14[%148, %c0_46, %c128_47] : memref<4x16x256xf32, #tpu.memory_space<vmem>>, vector<1x16x128xf32>
    %150 = vector.shape_cast %149 : vector<1x16x128xf32> to vector<16x128xf32>
    %151 = vector.shape_cast %142 : vector<16x128xf32> to vector<1x16x128xf32>
    tpu.vector_store %arg14[%148, %c0_46, %c128_47], %151 {strides = array<i32>} : memref<4x16x256xf32, #tpu.memory_space<vmem>>, vector<1x16x128xf32>,
    %c2_i32 = arith.constant 2 : i32
    %cst_48 = arith.constant dense<0.000000e+00> : vector<16x512xf32>
    %152 = tpu.matmul %112, %9, %cst_48 {dimension_numbers = #tpu.dot_dimension_numbers<[1], [0], [0], [1], [0, 0, 1, 1], [], []>} : vector<16x128xf32>, vector<128x512xf32>, vector<16x512xf32> -> vector<16x512xf32>
    %cst_49 = arith.constant dense<0.000000e+00> : vector<16x512xf32>
    %153 = tpu.matmul %142, %10, %cst_49 {dimension_numbers = #tpu.dot_dimension_numbers<[1], [0], [0], [1], [0, 0, 1, 1], [], []>} : vector<16x128xf32>, vector<128x512xf32>, vector<16x512xf32> -> vector<16x512xf32>
    %154 = arith.index_cast %c2_i32 : i32 to index
    %c0_50 = arith.constant 0 : index
    %c0_51 = arith.constant 0 : index
    %155 = vector.load %arg13[%154, %c0_50, %c0_51] : memref<4x16x1024xf32, #tpu.memory_space<vmem>>, vector<1x16x512xf32>
    %156 = vector.shape_cast %155 : vector<1x16x512xf32> to vector<16x512xf32>
    %157 = arith.addf %156, %152 : vector<16x512xf32>
    %158 = vector.extract_strided_slice %157 {offsets = [0, 0], sizes = [16, 128], strides = [1, 1]} : vector<16x512xf32> to vector<16x128xf32>
    %159 = arith.negf %158 : vector<16x128xf32>
    %160 = math.exp %159 : vector<16x128xf32>
    %cst_52 = arith.constant 1.000000e+00 : f32
    %161 = vector.broadcast %cst_52 : f32 to vector<16x128xf32>
    %162 = arith.addf %161, %160 : vector<16x128xf32>
    %163 = arith.divf %161, %162 : vector<16x128xf32>
    %164 = vector.extract_strided_slice %157 {offsets = [0, 128], sizes = [16, 128], strides = [1, 1]} : vector<16x512xf32> to vector<16x128xf32>
    %165 = arith.negf %164 : vector<16x128xf32>
    %166 = math.exp %165 : vector<16x128xf32>
    %cst_53 = arith.constant 1.000000e+00 : f32
    %167 = vector.broadcast %cst_53 : f32 to vector<16x128xf32>
    %168 = arith.addf %167, %166 : vector<16x128xf32>
    %169 = arith.divf %167, %168 : vector<16x128xf32>
    %170 = vector.extract_strided_slice %157 {offsets = [0, 256], sizes = [16, 128], strides = [1, 1]} : vector<16x512xf32> to vector<16x128xf32>
    %171 = math.tanh %170 : vector<16x128xf32>
    %172 = vector.extract_strided_slice %157 {offsets = [0, 384], sizes = [16, 128], strides = [1, 1]} : vector<16x512xf32> to vector<16x128xf32>
    %173 = arith.negf %172 : vector<16x128xf32>
    %174 = math.exp %173 : vector<16x128xf32>
    %cst_54 = arith.constant 1.000000e+00 : f32
    %175 = vector.broadcast %cst_54 : f32 to vector<16x128xf32>
    %176 = arith.addf %175, %174 : vector<16x128xf32>
    %177 = arith.divf %175, %176 : vector<16x128xf32>
    %178 = arith.mulf %169, %110 : vector<16x128xf32>
    %179 = arith.mulf %163, %171 : vector<16x128xf32>
    %180 = arith.addf %178, %179 : vector<16x128xf32>
    %181 = math.tanh %180 : vector<16x128xf32>
    %182 = arith.mulf %177, %181 : vector<16x128xf32>
    %c3_i32_55 = arith.constant 3 : i32
    %183 = arith.subi %c3_i32_55, %c2_i32 : i32
    %184 = arith.index_cast %183 : i32 to index
    %c0_56 = arith.constant 0 : index
    %c512_57 = arith.constant 512 : index
    %185 = vector.load %arg13[%184, %c0_56, %c512_57] : memref<4x16x1024xf32, #tpu.memory_space<vmem>>, vector<1x16x512xf32>
    %186 = vector.shape_cast %185 : vector<1x16x512xf32> to vector<16x512xf32>
    %187 = arith.addf %186, %153 : vector<16x512xf32>
    %188 = vector.extract_strided_slice %187 {offsets = [0, 0], sizes = [16, 128], strides = [1, 1]} : vector<16x512xf32> to vector<16x128xf32>
    %189 = arith.negf %188 : vector<16x128xf32>
    %190 = math.exp %189 : vector<16x128xf32>
    %cst_58 = arith.constant 1.000000e+00 : f32
    %191 = vector.broadcast %cst_58 : f32 to vector<16x128xf32>
    %192 = arith.addf %191, %190 : vector<16x128xf32>
    %193 = arith.divf %191, %192 : vector<16x128xf32>
    %194 = vector.extract_strided_slice %187 {offsets = [0, 128], sizes = [16, 128], strides = [1, 1]} : vector<16x512xf32> to vector<16x128xf32>
    %195 = arith.negf %194 : vector<16x128xf32>
    %196 = math.exp %195 : vector<16x128xf32>
    %cst_59 = arith.constant 1.000000e+00 : f32
    %197 = vector.broadcast %cst_59 : f32 to vector<16x128xf32>
    %198 = arith.addf %197, %196 : vector<16x128xf32>
    %199 = arith.divf %197, %198 : vector<16x128xf32>
    %200 = vector.extract_strided_slice %187 {offsets = [0, 256], sizes = [16, 128], strides = [1, 1]} : vector<16x512xf32> to vector<16x128xf32>
    %201 = math.tanh %200 : vector<16x128xf32>
    %202 = vector.extract_strided_slice %187 {offsets = [0, 384], sizes = [16, 128], strides = [1, 1]} : vector<16x512xf32> to vector<16x128xf32>
    %203 = arith.negf %202 : vector<16x128xf32>
    %204 = math.exp %203 : vector<16x128xf32>
    %cst_60 = arith.constant 1.000000e+00 : f32
    %205 = vector.broadcast %cst_60 : f32 to vector<16x128xf32>
    %206 = arith.addf %205, %204 : vector<16x128xf32>
    %207 = arith.divf %205, %206 : vector<16x128xf32>
    %208 = arith.mulf %199, %140 : vector<16x128xf32>
    %209 = arith.mulf %193, %201 : vector<16x128xf32>
    %210 = arith.addf %208, %209 : vector<16x128xf32>
    %211 = math.tanh %210 : vector<16x128xf32>
    %212 = arith.mulf %207, %211 : vector<16x128xf32>
    %213 = arith.index_cast %c2_i32 : i32 to index
    %c0_61 = arith.constant 0 : index
    %c0_62 = arith.constant 0 : index
    %214 = vector.load %arg14[%213, %c0_61, %c0_62] : memref<4x16x256xf32, #tpu.memory_space<vmem>>, vector<1x16x128xf32>
    %215 = vector.shape_cast %214 : vector<1x16x128xf32> to vector<16x128xf32>
    %216 = vector.shape_cast %182 : vector<16x128xf32> to vector<1x16x128xf32>
    tpu.vector_store %arg14[%213, %c0_61, %c0_62], %216 {strides = array<i32>} : memref<4x16x256xf32, #tpu.memory_space<vmem>>, vector<1x16x128xf32>,
    %c3_i32_63 = arith.constant 3 : i32
    %217 = arith.subi %c3_i32_63, %c2_i32 : i32
    %218 = arith.index_cast %217 : i32 to index
    %c0_64 = arith.constant 0 : index
    %c128_65 = arith.constant 128 : index
    %219 = vector.load %arg14[%218, %c0_64, %c128_65] : memref<4x16x256xf32, #tpu.memory_space<vmem>>, vector<1x16x128xf32>
    %220 = vector.shape_cast %219 : vector<1x16x128xf32> to vector<16x128xf32>
    %221 = vector.shape_cast %212 : vector<16x128xf32> to vector<1x16x128xf32>
    tpu.vector_store %arg14[%218, %c0_64, %c128_65], %221 {strides = array<i32>} : memref<4x16x256xf32, #tpu.memory_space<vmem>>, vector<1x16x128xf32>,
    %c3_i32_66 = arith.constant 3 : i32
    %cst_67 = arith.constant dense<0.000000e+00> : vector<16x512xf32>
    %222 = tpu.matmul %182, %9, %cst_67 {dimension_numbers = #tpu.dot_dimension_numbers<[1], [0], [0], [1], [0, 0, 1, 1], [], []>} : vector<16x128xf32>, vector<128x512xf32>, vector<16x512xf32> -> vector<16x512xf32>
    %cst_68 = arith.constant dense<0.000000e+00> : vector<16x512xf32>
    %223 = tpu.matmul %212, %10, %cst_68 {dimension_numbers = #tpu.dot_dimension_numbers<[1], [0], [0], [1], [0, 0, 1, 1], [], []>} : vector<16x128xf32>, vector<128x512xf32>, vector<16x512xf32> -> vector<16x512xf32>
    %224 = arith.index_cast %c3_i32_66 : i32 to index
    %c0_69 = arith.constant 0 : index
    %c0_70 = arith.constant 0 : index
    %225 = vector.load %arg13[%224, %c0_69, %c0_70] : memref<4x16x1024xf32, #tpu.memory_space<vmem>>, vector<1x16x512xf32>
    %226 = vector.shape_cast %225 : vector<1x16x512xf32> to vector<16x512xf32>
    %227 = arith.addf %226, %222 : vector<16x512xf32>
    %228 = vector.extract_strided_slice %227 {offsets = [0, 0], sizes = [16, 128], strides = [1, 1]} : vector<16x512xf32> to vector<16x128xf32>
    %229 = arith.negf %228 : vector<16x128xf32>
    %230 = math.exp %229 : vector<16x128xf32>
    %cst_71 = arith.constant 1.000000e+00 : f32
    %231 = vector.broadcast %cst_71 : f32 to vector<16x128xf32>
    %232 = arith.addf %231, %230 : vector<16x128xf32>
    %233 = arith.divf %231, %232 : vector<16x128xf32>
    %234 = vector.extract_strided_slice %227 {offsets = [0, 128], sizes = [16, 128], strides = [1, 1]} : vector<16x512xf32> to vector<16x128xf32>
    %235 = arith.negf %234 : vector<16x128xf32>
    %236 = math.exp %235 : vector<16x128xf32>
    %cst_72 = arith.constant 1.000000e+00 : f32
    %237 = vector.broadcast %cst_72 : f32 to vector<16x128xf32>
    %238 = arith.addf %237, %236 : vector<16x128xf32>
    %239 = arith.divf %237, %238 : vector<16x128xf32>
    %240 = vector.extract_strided_slice %227 {offsets = [0, 256], sizes = [16, 128], strides = [1, 1]} : vector<16x512xf32> to vector<16x128xf32>
    %241 = math.tanh %240 : vector<16x128xf32>
    %242 = vector.extract_strided_slice %227 {offsets = [0, 384], sizes = [16, 128], strides = [1, 1]} : vector<16x512xf32> to vector<16x128xf32>
    %243 = arith.negf %242 : vector<16x128xf32>
    %244 = math.exp %243 : vector<16x128xf32>
    %cst_73 = arith.constant 1.000000e+00 : f32
    %245 = vector.broadcast %cst_73 : f32 to vector<16x128xf32>
    %246 = arith.addf %245, %244 : vector<16x128xf32>
    %247 = arith.divf %245, %246 : vector<16x128xf32>
    %248 = arith.mulf %239, %180 : vector<16x128xf32>
    %249 = arith.mulf %233, %241 : vector<16x128xf32>
    %250 = arith.addf %248, %249 : vector<16x128xf32>
    %251 = math.tanh %250 : vector<16x128xf32>
    %252 = arith.mulf %247, %251 : vector<16x128xf32>
    %c3_i32_74 = arith.constant 3 : i32
    %253 = arith.subi %c3_i32_74, %c3_i32_66 : i32
    %254 = arith.index_cast %253 : i32 to index
    %c0_75 = arith.constant 0 : index
    %c512_76 = arith.constant 512 : index
    %255 = vector.load %arg13[%254, %c0_75, %c512_76] : memref<4x16x1024xf32, #tpu.memory_space<vmem>>, vector<1x16x512xf32>
    %256 = vector.shape_cast %255 : vector<1x16x512xf32> to vector<16x512xf32>
    %257 = arith.addf %256, %223 : vector<16x512xf32>
    %258 = vector.extract_strided_slice %257 {offsets = [0, 0], sizes = [16, 128], strides = [1, 1]} : vector<16x512xf32> to vector<16x128xf32>
    %259 = arith.negf %258 : vector<16x128xf32>
    %260 = math.exp %259 : vector<16x128xf32>
    %cst_77 = arith.constant 1.000000e+00 : f32
    %261 = vector.broadcast %cst_77 : f32 to vector<16x128xf32>
    %262 = arith.addf %261, %260 : vector<16x128xf32>
    %263 = arith.divf %261, %262 : vector<16x128xf32>
    %264 = vector.extract_strided_slice %257 {offsets = [0, 128], sizes = [16, 128], strides = [1, 1]} : vector<16x512xf32> to vector<16x128xf32>
    %265 = arith.negf %264 : vector<16x128xf32>
    %266 = math.exp %265 : vector<16x128xf32>
    %cst_78 = arith.constant 1.000000e+00 : f32
    %267 = vector.broadcast %cst_78 : f32 to vector<16x128xf32>
    %268 = arith.addf %267, %266 : vector<16x128xf32>
    %269 = arith.divf %267, %268 : vector<16x128xf32>
    %270 = vector.extract_strided_slice %257 {offsets = [0, 256], sizes = [16, 128], strides = [1, 1]} : vector<16x512xf32> to vector<16x128xf32>
    %271 = math.tanh %270 : vector<16x128xf32>
    %272 = vector.extract_strided_slice %257 {offsets = [0, 384], sizes = [16, 128], strides = [1, 1]} : vector<16x512xf32> to vector<16x128xf32>
    %273 = arith.negf %272 : vector<16x128xf32>
    %274 = math.exp %273 : vector<16x128xf32>
    %cst_79 = arith.constant 1.000000e+00 : f32
    %275 = vector.broadcast %cst_79 : f32 to vector<16x128xf32>
    %276 = arith.addf %275, %274 : vector<16x128xf32>
    %277 = arith.divf %275, %276 : vector<16x128xf32>
    %278 = arith.mulf %269, %210 : vector<16x128xf32>
    %279 = arith.mulf %263, %271 : vector<16x128xf32>
    %280 = arith.addf %278, %279 : vector<16x128xf32>
    %281 = math.tanh %280 : vector<16x128xf32>
    %282 = arith.mulf %277, %281 : vector<16x128xf32>
    %283 = arith.index_cast %c3_i32_66 : i32 to index
    %c0_80 = arith.constant 0 : index
    %c0_81 = arith.constant 0 : index
    %284 = vector.load %arg14[%283, %c0_80, %c0_81] : memref<4x16x256xf32, #tpu.memory_space<vmem>>, vector<1x16x128xf32>
    %285 = vector.shape_cast %284 : vector<1x16x128xf32> to vector<16x128xf32>
    %286 = vector.shape_cast %252 : vector<16x128xf32> to vector<1x16x128xf32>
    tpu.vector_store %arg14[%283, %c0_80, %c0_81], %286 {strides = array<i32>} : memref<4x16x256xf32, #tpu.memory_space<vmem>>, vector<1x16x128xf32>,
    %c3_i32_82 = arith.constant 3 : i32
    %287 = arith.subi %c3_i32_82, %c3_i32_66 : i32
    %288 = arith.index_cast %287 : i32 to index
    %c0_83 = arith.constant 0 : index
    %c128_84 = arith.constant 128 : index
    %289 = vector.load %arg14[%288, %c0_83, %c128_84] : memref<4x16x256xf32, #tpu.memory_space<vmem>>, vector<1x16x128xf32>
    %290 = vector.shape_cast %289 : vector<1x16x128xf32> to vector<16x128xf32>
    %291 = vector.shape_cast %282 : vector<16x128xf32> to vector<1x16x128xf32>
    tpu.vector_store %arg14[%288, %c0_83, %c128_84], %291 {strides = array<i32>} : memref<4x16x256xf32, #tpu.memory_space<vmem>>, vector<1x16x128xf32>,
    %c4_i32 = arith.constant 4 : i32
    %c0_85 = arith.constant 0 : index
    %c0_86 = arith.constant 0 : index
    %c0_87 = arith.constant 0 : index
    %292 = vector.load %arg14[%c0_85, %c0_86, %c0_87] : memref<4x16x256xf32, #tpu.memory_space<vmem>>, vector<4x16x256xf32>
    %c0_88 = arith.constant 0 : index
    %c0_89 = arith.constant 0 : index
    %293 = vector.load %arg5[%c0_88, %c0_89] : memref<1x256xf32, #tpu.memory_space<vmem>>, vector<1x256xf32>
    %294 = vector.shape_cast %293 : vector<1x256xf32> to vector<1x1x256xf32>
    %295 = vector.broadcast %294 : vector<1x1x256xf32> to vector<4x16x256xf32>
    %296 = arith.mulf %292, %295 : vector<4x16x256xf32>
    %cst_90 = arith.constant dense<0.000000e+00> : vector<4x16xf32>
    %297 = vector.multi_reduction <add>, %296, %cst_90 [2] : vector<4x16x256xf32> to vector<4x16xf32>
    %298 = vector.shape_cast %297 : vector<4x16xf32> to vector<4x16x1xf32>
    %cst_91 = arith.constant dense<0xFF800000> : vector<16x1xf32>
    %299 = vector.multi_reduction <maximumf>, %298, %cst_91 [0] : vector<4x16x1xf32> to vector<16x1xf32>
    %300 = vector.shape_cast %299 : vector<16x1xf32> to vector<1x16x1xf32>
    %301 = vector.broadcast %300 : vector<1x16x1xf32> to vector<4x16x1xf32>
    %302 = arith.subf %298, %301 : vector<4x16x1xf32>
    %303 = math.exp %302 : vector<4x16x1xf32>
    %cst_92 = arith.constant dense<0.000000e+00> : vector<16x1xf32>
    %304 = vector.multi_reduction <add>, %303, %cst_92 [0] : vector<4x16x1xf32> to vector<16x1xf32>
    %305 = vector.shape_cast %304 : vector<16x1xf32> to vector<1x16x1xf32>
    %306 = vector.broadcast %305 : vector<1x16x1xf32> to vector<4x16x1xf32>
    %307 = arith.divf %303, %306 : vector<4x16x1xf32>
    %308 = vector.broadcast %307 : vector<4x16x1xf32> to vector<4x16x256xf32>
    %309 = arith.mulf %308, %292 : vector<4x16x256xf32>
    %cst_93 = arith.constant dense<0.000000e+00> : vector<16x256xf32>
    %310 = vector.multi_reduction <add>, %309, %cst_93 [0] : vector<4x16x256xf32> to vector<16x256xf32>
    %c0_94 = arith.constant 0 : index
    %c0_95 = arith.constant 0 : index
    %311 = vector.load %arg6[%c0_94, %c0_95] : memref<256x1024xf32, #tpu.memory_space<vmem>>, vector<256x1024xf32>
    %cst_96 = arith.constant dense<0.000000e+00> : vector<16x1024xf32>
    %312 = tpu.matmul %310, %311, %cst_96 {dimension_numbers = #tpu.dot_dimension_numbers<[1], [0], [0], [1], [0, 0, 1, 1], [], []>} : vector<16x256xf32>, vector<256x1024xf32>, vector<16x1024xf32> -> vector<16x1024xf32>
    %c0_97 = arith.constant 0 : index
    %c0_98 = arith.constant 0 : index
    %313 = vector.load %arg8[%c0_97, %c0_98] : memref<1x1024xf32, #tpu.memory_space<vmem>>, vector<1x1024xf32>
    %314 = vector.broadcast %313 : vector<1x1024xf32> to vector<16x1024xf32>
    %315 = arith.addf %312, %314 : vector<16x1024xf32>
    %316 = vector.shape_cast %315 : vector<16x1024xf32> to vector<2x8x1024xf32>
    %c0_99 = arith.constant 0 : index
    %c0_100 = arith.constant 0 : index
    %c0_101 = arith.constant 0 : index
    %317 = vector.load %arg15[%c0_99, %c0_100, %c0_101] : memref<2x8x1024xf32, #tpu.memory_space<vmem>>, vector<2x8x1024xf32>
    tpu.vector_store %arg15[%c0_99, %c0_100, %c0_101], %316 {strides = array<i32>} : memref<2x8x1024xf32, #tpu.memory_space<vmem>>, vector<2x8x1024xf32>,
    %c0_102 = arith.constant 0 : index
    %c0_103 = arith.constant 0 : index
    %318 = vector.load %arg7[%c0_102, %c0_103] : memref<128x1024xf32, #tpu.memory_space<vmem>>, vector<128x512xf32>
    %c0_104 = arith.constant 0 : index
    %c512_105 = arith.constant 512 : index
    %319 = vector.load %arg7[%c0_104, %c512_105] : memref<128x1024xf32, #tpu.memory_space<vmem>>, vector<128x512xf32>
    %cst_106 = arith.constant 0.000000e+00 : f32
    %320 = vector.broadcast %cst_106 : f32 to vector<8x128xf32>
    %c0_i32_107 = arith.constant 0 : i32
    %cst_108 = arith.constant dense<0.000000e+00> : vector<8x512xf32>
    %321 = tpu.matmul %320, %318, %cst_108 {dimension_numbers = #tpu.dot_dimension_numbers<[1], [0], [0], [1], [0, 0, 1, 1], [], []>} : vector<8x128xf32>, vector<128x512xf32>, vector<8x512xf32> -> vector<8x512xf32>
    %cst_109 = arith.constant dense<0.000000e+00> : vector<8x512xf32>
    %322 = tpu.matmul %320, %319, %cst_109 {dimension_numbers = #tpu.dot_dimension_numbers<[1], [0], [0], [1], [0, 0, 1, 1], [], []>} : vector<8x128xf32>, vector<128x512xf32>, vector<8x512xf32> -> vector<8x512xf32>
    %323 = arith.index_cast %c0_i32_107 : i32 to index
    %c0_110 = arith.constant 0 : index
    %c0_111 = arith.constant 0 : index
    %324 = vector.load %arg15[%323, %c0_110, %c0_111] : memref<2x8x1024xf32, #tpu.memory_space<vmem>>, vector<1x8x512xf32>
    %325 = vector.shape_cast %324 : vector<1x8x512xf32> to vector<8x512xf32>
    %326 = arith.addf %325, %321 : vector<8x512xf32>
    %327 = vector.extract_strided_slice %326 {offsets = [0, 0], sizes = [8, 128], strides = [1, 1]} : vector<8x512xf32> to vector<8x128xf32>
    %328 = arith.negf %327 : vector<8x128xf32>
    %329 = math.exp %328 : vector<8x128xf32>
    %cst_112 = arith.constant 1.000000e+00 : f32
    %330 = vector.broadcast %cst_112 : f32 to vector<8x128xf32>
    %331 = arith.addf %330, %329 : vector<8x128xf32>
    %332 = arith.divf %330, %331 : vector<8x128xf32>
    %333 = vector.extract_strided_slice %326 {offsets = [0, 128], sizes = [8, 128], strides = [1, 1]} : vector<8x512xf32> to vector<8x128xf32>
    %334 = arith.negf %333 : vector<8x128xf32>
    %335 = math.exp %334 : vector<8x128xf32>
    %cst_113 = arith.constant 1.000000e+00 : f32
    %336 = vector.broadcast %cst_113 : f32 to vector<8x128xf32>
    %337 = arith.addf %336, %335 : vector<8x128xf32>
    %338 = arith.divf %336, %337 : vector<8x128xf32>
    %339 = vector.extract_strided_slice %326 {offsets = [0, 256], sizes = [8, 128], strides = [1, 1]} : vector<8x512xf32> to vector<8x128xf32>
    %340 = math.tanh %339 : vector<8x128xf32>
    %341 = vector.extract_strided_slice %326 {offsets = [0, 384], sizes = [8, 128], strides = [1, 1]} : vector<8x512xf32> to vector<8x128xf32>
    %342 = arith.negf %341 : vector<8x128xf32>
    %343 = math.exp %342 : vector<8x128xf32>
    %cst_114 = arith.constant 1.000000e+00 : f32
    %344 = vector.broadcast %cst_114 : f32 to vector<8x128xf32>
    %345 = arith.addf %344, %343 : vector<8x128xf32>
    %346 = arith.divf %344, %345 : vector<8x128xf32>
    %347 = arith.mulf %338, %320 : vector<8x128xf32>
    %348 = arith.mulf %332, %340 : vector<8x128xf32>
    %349 = arith.addf %347, %348 : vector<8x128xf32>
    %350 = math.tanh %349 : vector<8x128xf32>
    %351 = arith.mulf %346, %350 : vector<8x128xf32>
    %c1_i32_115 = arith.constant 1 : i32
    %352 = arith.subi %c1_i32_115, %c0_i32_107 : i32
    %353 = arith.index_cast %352 : i32 to index
    %c0_116 = arith.constant 0 : index
    %c512_117 = arith.constant 512 : index
    %354 = vector.load %arg15[%353, %c0_116, %c512_117] : memref<2x8x1024xf32, #tpu.memory_space<vmem>>, vector<1x8x512xf32>
    %355 = vector.shape_cast %354 : vector<1x8x512xf32> to vector<8x512xf32>
    %356 = arith.addf %355, %322 : vector<8x512xf32>
    %357 = vector.extract_strided_slice %356 {offsets = [0, 0], sizes = [8, 128], strides = [1, 1]} : vector<8x512xf32> to vector<8x128xf32>
    %358 = arith.negf %357 : vector<8x128xf32>
    %359 = math.exp %358 : vector<8x128xf32>
    %cst_118 = arith.constant 1.000000e+00 : f32
    %360 = vector.broadcast %cst_118 : f32 to vector<8x128xf32>
    %361 = arith.addf %360, %359 : vector<8x128xf32>
    %362 = arith.divf %360, %361 : vector<8x128xf32>
    %363 = vector.extract_strided_slice %356 {offsets = [0, 128], sizes = [8, 128], strides = [1, 1]} : vector<8x512xf32> to vector<8x128xf32>
    %364 = arith.negf %363 : vector<8x128xf32>
    %365 = math.exp %364 : vector<8x128xf32>
    %cst_119 = arith.constant 1.000000e+00 : f32
    %366 = vector.broadcast %cst_119 : f32 to vector<8x128xf32>
    %367 = arith.addf %366, %365 : vector<8x128xf32>
    %368 = arith.divf %366, %367 : vector<8x128xf32>
    %369 = vector.extract_strided_slice %356 {offsets = [0, 256], sizes = [8, 128], strides = [1, 1]} : vector<8x512xf32> to vector<8x128xf32>
    %370 = math.tanh %369 : vector<8x128xf32>
    %371 = vector.extract_strided_slice %356 {offsets = [0, 384], sizes = [8, 128], strides = [1, 1]} : vector<8x512xf32> to vector<8x128xf32>
    %372 = arith.negf %371 : vector<8x128xf32>
    %373 = math.exp %372 : vector<8x128xf32>
    %cst_120 = arith.constant 1.000000e+00 : f32
    %374 = vector.broadcast %cst_120 : f32 to vector<8x128xf32>
    %375 = arith.addf %374, %373 : vector<8x128xf32>
    %376 = arith.divf %374, %375 : vector<8x128xf32>
    %377 = arith.mulf %368, %320 : vector<8x128xf32>
    %378 = arith.mulf %362, %370 : vector<8x128xf32>
    %379 = arith.addf %377, %378 : vector<8x128xf32>
    %380 = math.tanh %379 : vector<8x128xf32>
    %381 = arith.mulf %376, %380 : vector<8x128xf32>
    %382 = arith.index_cast %c0_i32_107 : i32 to index
    %c0_121 = arith.constant 0 : index
    %c0_122 = arith.constant 0 : index
    %383 = vector.load %arg16[%382, %c0_121, %c0_122] : memref<2x8x256xf32, #tpu.memory_space<vmem>>, vector<1x8x128xf32>
    %384 = vector.shape_cast %383 : vector<1x8x128xf32> to vector<8x128xf32>
    %385 = vector.shape_cast %351 : vector<8x128xf32> to vector<1x8x128xf32>
    tpu.vector_store %arg16[%382, %c0_121, %c0_122], %385 {strides = array<i32>} : memref<2x8x256xf32, #tpu.memory_space<vmem>>, vector<1x8x128xf32>,
    %c1_i32_123 = arith.constant 1 : i32
    %386 = arith.subi %c1_i32_123, %c0_i32_107 : i32
    %387 = arith.index_cast %386 : i32 to index
    %c0_124 = arith.constant 0 : index
    %c128_125 = arith.constant 128 : index
    %388 = vector.load %arg16[%387, %c0_124, %c128_125] : memref<2x8x256xf32, #tpu.memory_space<vmem>>, vector<1x8x128xf32>
    %389 = vector.shape_cast %388 : vector<1x8x128xf32> to vector<8x128xf32>
    %390 = vector.shape_cast %381 : vector<8x128xf32> to vector<1x8x128xf32>
    tpu.vector_store %arg16[%387, %c0_124, %c128_125], %390 {strides = array<i32>} : memref<2x8x256xf32, #tpu.memory_space<vmem>>, vector<1x8x128xf32>,
    %c1_i32_126 = arith.constant 1 : i32
    %cst_127 = arith.constant dense<0.000000e+00> : vector<8x512xf32>
    %391 = tpu.matmul %351, %318, %cst_127 {dimension_numbers = #tpu.dot_dimension_numbers<[1], [0], [0], [1], [0, 0, 1, 1], [], []>} : vector<8x128xf32>, vector<128x512xf32>, vector<8x512xf32> -> vector<8x512xf32>
    %cst_128 = arith.constant dense<0.000000e+00> : vector<8x512xf32>
    %392 = tpu.matmul %381, %319, %cst_128 {dimension_numbers = #tpu.dot_dimension_numbers<[1], [0], [0], [1], [0, 0, 1, 1], [], []>} : vector<8x128xf32>, vector<128x512xf32>, vector<8x512xf32> -> vector<8x512xf32>
    %393 = arith.index_cast %c1_i32_126 : i32 to index
    %c0_129 = arith.constant 0 : index
    %c0_130 = arith.constant 0 : index
    %394 = vector.load %arg15[%393, %c0_129, %c0_130] : memref<2x8x1024xf32, #tpu.memory_space<vmem>>, vector<1x8x512xf32>
    %395 = vector.shape_cast %394 : vector<1x8x512xf32> to vector<8x512xf32>
    %396 = arith.addf %395, %391 : vector<8x512xf32>
    %397 = vector.extract_strided_slice %396 {offsets = [0, 0], sizes = [8, 128], strides = [1, 1]} : vector<8x512xf32> to vector<8x128xf32>
    %398 = arith.negf %397 : vector<8x128xf32>
    %399 = math.exp %398 : vector<8x128xf32>
    %cst_131 = arith.constant 1.000000e+00 : f32
    %400 = vector.broadcast %cst_131 : f32 to vector<8x128xf32>
    %401 = arith.addf %400, %399 : vector<8x128xf32>
    %402 = arith.divf %400, %401 : vector<8x128xf32>
    %403 = vector.extract_strided_slice %396 {offsets = [0, 128], sizes = [8, 128], strides = [1, 1]} : vector<8x512xf32> to vector<8x128xf32>
    %404 = arith.negf %403 : vector<8x128xf32>
    %405 = math.exp %404 : vector<8x128xf32>
    %cst_132 = arith.constant 1.000000e+00 : f32
    %406 = vector.broadcast %cst_132 : f32 to vector<8x128xf32>
    %407 = arith.addf %406, %405 : vector<8x128xf32>
    %408 = arith.divf %406, %407 : vector<8x128xf32>
    %409 = vector.extract_strided_slice %396 {offsets = [0, 256], sizes = [8, 128], strides = [1, 1]} : vector<8x512xf32> to vector<8x128xf32>
    %410 = math.tanh %409 : vector<8x128xf32>
    %411 = vector.extract_strided_slice %396 {offsets = [0, 384], sizes = [8, 128], strides = [1, 1]} : vector<8x512xf32> to vector<8x128xf32>
    %412 = arith.negf %411 : vector<8x128xf32>
    %413 = math.exp %412 : vector<8x128xf32>
    %cst_133 = arith.constant 1.000000e+00 : f32
    %414 = vector.broadcast %cst_133 : f32 to vector<8x128xf32>
    %415 = arith.addf %414, %413 : vector<8x128xf32>
    %416 = arith.divf %414, %415 : vector<8x128xf32>
    %417 = arith.mulf %408, %349 : vector<8x128xf32>
    %418 = arith.mulf %402, %410 : vector<8x128xf32>
    %419 = arith.addf %417, %418 : vector<8x128xf32>
    %420 = math.tanh %419 : vector<8x128xf32>
    %421 = arith.mulf %416, %420 : vector<8x128xf32>
    %c1_i32_134 = arith.constant 1 : i32
    %422 = arith.subi %c1_i32_134, %c1_i32_126 : i32
    %423 = arith.index_cast %422 : i32 to index
    %c0_135 = arith.constant 0 : index
    %c512_136 = arith.constant 512 : index
    %424 = vector.load %arg15[%423, %c0_135, %c512_136] : memref<2x8x1024xf32, #tpu.memory_space<vmem>>, vector<1x8x512xf32>
    %425 = vector.shape_cast %424 : vector<1x8x512xf32> to vector<8x512xf32>
    %426 = arith.addf %425, %392 : vector<8x512xf32>
    %427 = vector.extract_strided_slice %426 {offsets = [0, 0], sizes = [8, 128], strides = [1, 1]} : vector<8x512xf32> to vector<8x128xf32>
    %428 = arith.negf %427 : vector<8x128xf32>
    %429 = math.exp %428 : vector<8x128xf32>
    %cst_137 = arith.constant 1.000000e+00 : f32
    %430 = vector.broadcast %cst_137 : f32 to vector<8x128xf32>
    %431 = arith.addf %430, %429 : vector<8x128xf32>
    %432 = arith.divf %430, %431 : vector<8x128xf32>
    %433 = vector.extract_strided_slice %426 {offsets = [0, 128], sizes = [8, 128], strides = [1, 1]} : vector<8x512xf32> to vector<8x128xf32>
    %434 = arith.negf %433 : vector<8x128xf32>
    %435 = math.exp %434 : vector<8x128xf32>
    %cst_138 = arith.constant 1.000000e+00 : f32
    %436 = vector.broadcast %cst_138 : f32 to vector<8x128xf32>
    %437 = arith.addf %436, %435 : vector<8x128xf32>
    %438 = arith.divf %436, %437 : vector<8x128xf32>
    %439 = vector.extract_strided_slice %426 {offsets = [0, 256], sizes = [8, 128], strides = [1, 1]} : vector<8x512xf32> to vector<8x128xf32>
    %440 = math.tanh %439 : vector<8x128xf32>
    %441 = vector.extract_strided_slice %426 {offsets = [0, 384], sizes = [8, 128], strides = [1, 1]} : vector<8x512xf32> to vector<8x128xf32>
    %442 = arith.negf %441 : vector<8x128xf32>
    %443 = math.exp %442 : vector<8x128xf32>
    %cst_139 = arith.constant 1.000000e+00 : f32
    %444 = vector.broadcast %cst_139 : f32 to vector<8x128xf32>
    %445 = arith.addf %444, %443 : vector<8x128xf32>
    %446 = arith.divf %444, %445 : vector<8x128xf32>
    %447 = arith.mulf %438, %379 : vector<8x128xf32>
    %448 = arith.mulf %432, %440 : vector<8x128xf32>
    %449 = arith.addf %447, %448 : vector<8x128xf32>
    %450 = math.tanh %449 : vector<8x128xf32>
    %451 = arith.mulf %446, %450 : vector<8x128xf32>
    %452 = arith.index_cast %c1_i32_126 : i32 to index
    %c0_140 = arith.constant 0 : index
    %c0_141 = arith.constant 0 : index
    %453 = vector.load %arg16[%452, %c0_140, %c0_141] : memref<2x8x256xf32, #tpu.memory_space<vmem>>, vector<1x8x128xf32>
    %454 = vector.shape_cast %453 : vector<1x8x128xf32> to vector<8x128xf32>
    %455 = vector.shape_cast %421 : vector<8x128xf32> to vector<1x8x128xf32>
    tpu.vector_store %arg16[%452, %c0_140, %c0_141], %455 {strides = array<i32>} : memref<2x8x256xf32, #tpu.memory_space<vmem>>, vector<1x8x128xf32>,
    %c1_i32_142 = arith.constant 1 : i32
    %456 = arith.subi %c1_i32_142, %c1_i32_126 : i32
    %457 = arith.index_cast %456 : i32 to index
    %c0_143 = arith.constant 0 : index
    %c128_144 = arith.constant 128 : index
    %458 = vector.load %arg16[%457, %c0_143, %c128_144] : memref<2x8x256xf32, #tpu.memory_space<vmem>>, vector<1x8x128xf32>
    %459 = vector.shape_cast %458 : vector<1x8x128xf32> to vector<8x128xf32>
    %460 = vector.shape_cast %451 : vector<8x128xf32> to vector<1x8x128xf32>
    tpu.vector_store %arg16[%457, %c0_143, %c128_144], %460 {strides = array<i32>} : memref<2x8x256xf32, #tpu.memory_space<vmem>>, vector<1x8x128xf32>,
    %c2_i32_145 = arith.constant 2 : i32
    %c0_146 = arith.constant 0 : index
    %c0_147 = arith.constant 0 : index
    %c0_148 = arith.constant 0 : index
    %461 = vector.load %arg16[%c0_146, %c0_147, %c0_148] : memref<2x8x256xf32, #tpu.memory_space<vmem>>, vector<2x8x256xf32>
    %c0_149 = arith.constant 0 : index
    %c0_150 = arith.constant 0 : index
    %462 = vector.load %arg9[%c0_149, %c0_150] : memref<1x256xf32, #tpu.memory_space<vmem>>, vector<1x256xf32>
    %463 = vector.shape_cast %462 : vector<1x256xf32> to vector<1x1x256xf32>
    %464 = vector.broadcast %463 : vector<1x1x256xf32> to vector<2x8x256xf32>
    %465 = arith.mulf %461, %464 : vector<2x8x256xf32>
    %cst_151 = arith.constant dense<0.000000e+00> : vector<2x8xf32>
    %466 = vector.multi_reduction <add>, %465, %cst_151 [2] : vector<2x8x256xf32> to vector<2x8xf32>
    %467 = vector.shape_cast %466 : vector<2x8xf32> to vector<2x8x1xf32>
    %cst_152 = arith.constant dense<0xFF800000> : vector<8x1xf32>
    %468 = vector.multi_reduction <maximumf>, %467, %cst_152 [0] : vector<2x8x1xf32> to vector<8x1xf32>
    %469 = vector.shape_cast %468 : vector<8x1xf32> to vector<1x8x1xf32>
    %470 = vector.broadcast %469 : vector<1x8x1xf32> to vector<2x8x1xf32>
    %471 = arith.subf %467, %470 : vector<2x8x1xf32>
    %472 = math.exp %471 : vector<2x8x1xf32>
    %cst_153 = arith.constant dense<0.000000e+00> : vector<8x1xf32>
    %473 = vector.multi_reduction <add>, %472, %cst_153 [0] : vector<2x8x1xf32> to vector<8x1xf32>
    %474 = vector.shape_cast %473 : vector<8x1xf32> to vector<1x8x1xf32>
    %475 = vector.broadcast %474 : vector<1x8x1xf32> to vector<2x8x1xf32>
    %476 = arith.divf %472, %475 : vector<2x8x1xf32>
    %477 = vector.broadcast %476 : vector<2x8x1xf32> to vector<2x8x256xf32>
    %478 = arith.mulf %477, %461 : vector<2x8x256xf32>
    %cst_154 = arith.constant dense<0.000000e+00> : vector<8x256xf32>
    %479 = vector.multi_reduction <add>, %478, %cst_154 [0] : vector<2x8x256xf32> to vector<8x256xf32>
    %c0_155 = arith.constant 0 : index
    %c0_156 = arith.constant 0 : index
    %480 = vector.load %arg10[%c0_155, %c0_156] : memref<1x256xf32, #tpu.memory_space<vmem>>, vector<1x256xf32>
    %481 = vector.broadcast %480 : vector<1x256xf32> to vector<8x256xf32>
    %482 = arith.mulf %479, %481 : vector<8x256xf32>
    %cst_157 = arith.constant dense<0.000000e+00> : vector<8xf32>
    %483 = vector.multi_reduction <add>, %482, %cst_157 [1] : vector<8x256xf32> to vector<8xf32>
    %484 = vector.shape_cast %483 : vector<8xf32> to vector<8x1xf32>
    %c0_158 = arith.constant 0 : index
    %c0_159 = arith.constant 0 : index
    %485 = vector.load %arg11[%c0_158, %c0_159] : memref<1x1xf32, #tpu.memory_space<vmem>>, vector<1x1xf32>
    %486 = vector.broadcast %485 : vector<1x1xf32> to vector<8x1xf32>
    %487 = arith.addf %484, %486 : vector<8x1xf32>
    %c0_160 = arith.constant 0 : index
    %c0_161 = arith.constant 0 : index
    %488 = vector.load %arg12[%c0_160, %c0_161] : memref<8x1xf32, #tpu.memory_space<vmem>>, vector<8x1xf32>
    tpu.vector_store %arg12[%c0_160, %c0_161], %487 {strides = array<i32>} : memref<8x1xf32, #tpu.memory_space<vmem>>, vector<8x1xf32>,
    return
  }
  func.func @transform_0(%arg0: i32) -> (i32, i32, i32, i32) {
    %c0_i32 = arith.constant 0 : i32
    %c0_i32_0 = arith.constant 0 : i32
    %c0_i32_1 = arith.constant 0 : i32
    %c0_i32_2 = arith.constant 0 : i32
    return %c0_i32, %c0_i32_0, %arg0, %c0_i32_1 : i32, i32, i32, i32
  }
  func.func @transform_1(%arg0: i32) -> (i32, i32) {
    %c0_i32 = arith.constant 0 : i32
    %c0_i32_0 = arith.constant 0 : i32
    %c0_i32_1 = arith.constant 0 : i32
    return %c0_i32, %c0_i32_0 : i32, i32
  }
  func.func @transform_2(%arg0: i32) -> (i32, i32) {
    %c0_i32 = arith.constant 0 : i32
    %c0_i32_0 = arith.constant 0 : i32
    %c0_i32_1 = arith.constant 0 : i32
    return %c0_i32, %c0_i32_0 : i32, i32
  }
  func.func @transform_3(%arg0: i32) -> (i32, i32) {
    %c0_i32 = arith.constant 0 : i32
    %c0_i32_0 = arith.constant 0 : i32
    %c0_i32_1 = arith.constant 0 : i32
    return %c0_i32, %c0_i32_0 : i32, i32
  }
  func.func @transform_4(%arg0: i32) -> (i32, i32) {
    %c0_i32 = arith.constant 0 : i32
    %c0_i32_0 = arith.constant 0 : i32
    %c0_i32_1 = arith.constant 0 : i32
    return %c0_i32, %c0_i32_0 : i32, i32
  }
  func.func @transform_5(%arg0: i32) -> (i32, i32) {
    %c0_i32 = arith.constant 0 : i32
    %c0_i32_0 = arith.constant 0 : i32
    %c0_i32_1 = arith.constant 0 : i32
    return %c0_i32, %c0_i32_0 : i32, i32
  }
  func.func @transform_6(%arg0: i32) -> (i32, i32) {
    %c0_i32 = arith.constant 0 : i32
    %c0_i32_0 = arith.constant 0 : i32
    %c0_i32_1 = arith.constant 0 : i32
    return %c0_i32, %c0_i32_0 : i32, i32
  }
  func.func @transform_7(%arg0: i32) -> (i32, i32) {
    %c0_i32 = arith.constant 0 : i32
    %c0_i32_0 = arith.constant 0 : i32
    %c0_i32_1 = arith.constant 0 : i32
    return %c0_i32, %c0_i32_0 : i32, i32
  }
  func.func @transform_8(%arg0: i32) -> (i32, i32) {
    %c0_i32 = arith.constant 0 : i32
    %c0_i32_0 = arith.constant 0 : i32
    %c0_i32_1 = arith.constant 0 : i32
    return %c0_i32, %c0_i32_0 : i32, i32
  }
  func.func @transform_9(%arg0: i32) -> (i32, i32) {
    %c0_i32 = arith.constant 0 : i32
    %c0_i32_0 = arith.constant 0 : i32
    %c0_i32_1 = arith.constant 0 : i32
    return %c0_i32, %c0_i32_0 : i32, i32
  }
  func.func @transform_10(%arg0: i32) -> (i32, i32) {
    %c0_i32 = arith.constant 0 : i32
    %c0_i32_0 = arith.constant 0 : i32
    %c0_i32_1 = arith.constant 0 : i32
    return %c0_i32, %c0_i32_0 : i32, i32
  }
  func.func @transform_11(%arg0: i32) -> (i32, i32) {
    %c0_i32 = arith.constant 0 : i32
    %c0_i32_0 = arith.constant 0 : i32
    return %arg0, %c0_i32 : i32, i32
  }
}

</mosaic_0001>

<llo_original>
// kernel: tpu_custom_call.1
$region0: #{tpu_custom_call.1}
  #allocation0 [shape = 'u32[]', space=smem, size = 0x4, offset = 0x4, fixed_abs, tag = 'smem constant byte address 0x4 - core index']
  #allocation1 [shape = 'u32[144,128]{1,0:T(1,128)}', space=vmem, size = 0x12000, scoped, tag = 'internal scratch']
  #allocation2 [shape = 'f32[4,16,1024]{2,1,0:T(8,128)}', space=vmem, size = 0x40000, scoped, tag = 'scratch operand']
  #allocation3 [shape = 'f32[4,16,256]{2,1,0:T(8,128)}', space=vmem, size = 0x10000, scoped, tag = 'scratch operand']
  #allocation4 [shape = 'f32[2,8,1024]{2,1,0:T(8,128)}', space=vmem, size = 0x10000, scoped, tag = 'scratch operand']
  #allocation5 [shape = 'f32[2,8,256]{2,1,0:T(8,128)}', space=vmem, size = 0x4000, scoped, tag = 'scratch operand']
  #allocation6 [shape = 'f32[1,1]{1,0:T(1,128)S(1)}', space=vmem, size = 0x200, scoped, tag = 'scoped memory for tpu_custom_call.1']
  %s0 = inlined_call_operand.hbm [shape: f32[4,2,8,16], index: 0, kind: input, shape index: {}]
  %s1 = inlined_call_operand.hbm [shape: f32[16,1024], index: 1, kind: input, shape index: {}]
  %s2 = inlined_call_operand.hbm [shape: f32[128,1024], index: 2, kind: input, shape index: {}]
  %s3 = inlined_call_operand.vmem [shape: f32[1,1024], index: 3, kind: input, shape index: {}]
  %s4 = inlined_call_operand.vmem [shape: f32[1,256], index: 4, kind: input, shape index: {}]
  %s5 = inlined_call_operand.hbm [shape: f32[256,1024], index: 5, kind: input, shape index: {}]
  %s6 = inlined_call_operand.hbm [shape: f32[128,1024], index: 6, kind: input, shape index: {}]
  %s7 = inlined_call_operand.vmem [shape: f32[1,1024], index: 7, kind: input, shape index: {}]
  %s8 = inlined_call_operand.vmem [shape: f32[1,256], index: 8, kind: input, shape index: {}]
  %s9 = inlined_call_operand.vmem [shape: f32[1,256], index: 9, kind: input, shape index: {}]
  %s10 = inlined_call_operand.<no memory space> [shape: f32[1,1], index: 10, kind: input, shape index: {}]
  %s11 = inlined_call_operand.vmem [shape: f32[8,1], index: 11, kind: output, shape index: {}]
  %s12 = sld [smem:[#allocation0]]
  $region74: #{tpu_custom_call.1} parent=0
    _
  %s14 = ssub.s32 1, %s12
  %s15 = scalar_select 0, %s14, %s12
  %v16 = vstv %s10
  %17 = vst [vmem:[#allocation6] sm:$0x1] %v16
  $region1: #{tpu_custom_call.1} parent=0
    #allocation7 [shape = 'u8[32768]{0}', space=vmem, size = 0x8000, scoped, tag = 'input window, operand 0, single buffered']
    #allocation8 [shape = 's32[1]{0}', space=sflag, size = 0x4, scoped, tag = 'scoped memory for tpu_custom_call.1']
    #allocation9 [shape = 'u8[65536]{0}', space=vmem, size = 0x10000, scoped, tag = 'input window, operand 1, single buffered']
    #allocation10 [shape = 's32[1]{0}', space=sflag, size = 0x4, scoped, tag = 'scoped memory for tpu_custom_call.1']
    #allocation11 [shape = 'u8[524288]{0}', space=vmem, size = 0x80000, scoped, tag = 'input window, operand 2, single buffered']
    #allocation12 [shape = 'u8[1048576]{0}', space=vmem, size = 0x100000, scoped, tag = 'input window, operand 5, single buffered']
    #allocation13 [shape = 's32[1]{0}', space=sflag, size = 0x4, scoped, tag = 'scoped memory for tpu_custom_call.1']
    #allocation14 [shape = 'u8[524288]{0}', space=vmem, size = 0x80000, scoped, tag = 'input window, operand 6, single buffered']
    %18 = vsyncpa [#allocation8], 0
    %19 = vsyncpa [#allocation10], 0
    %20 = vsyncpa [#allocation13], 0
    // Predicated region
    $region2: #{tpu_custom_call.1} parent=1 // pred_check
      _
    $region3: #{tpu_custom_call.1} parent=1 // pred_check_branch
      %22 = sbr.rel (0) target = $region5
    $region4: #{tpu_custom_call.1} parent=1 // pred_region
      %s24 = ssub.s32 1024, 1024
      %25 = vsyncadd [#allocation8], %s24
      %s26 = sshll.u32 [#allocation7], 4
      %s27 = int_to_ptr.vmem [resolvable:$true] %s26
      %32 = dma.hbm_to_vmem [thread:$0]  %s0, 1024, %s27, [#allocation8], 128, 128, 8
    $region5: #{tpu_custom_call.1} parent=1 // pred_fallthru
      _
    // Predicated region
    $region6: #{tpu_custom_call.1} parent=1 // pred_check
      _
    $region7: #{tpu_custom_call.1} parent=1 // pred_check_branch
      %34 = sbr.rel (0) target = $region9
    $region8: #{tpu_custom_call.1} parent=1 // pred_region
      %s36 = ssub.s32 2048, 2048
      %37 = vsyncadd [#allocation10], %s36
      %s38 = sshll.u32 [#allocation9], 4
      %s39 = int_to_ptr.vmem [resolvable:$true] %s38
      %44 = dma.hbm_to_vmem [thread:$0]  %s1, 2048, %s39, [#allocation10], 1024, 1024, 64
    $region9: #{tpu_custom_call.1} parent=1 // pred_fallthru
      _
    // Predicated region
    $region10: #{tpu_custom_call.1} parent=1 // pred_check
      _
    $region11: #{tpu_custom_call.1} parent=1 // pred_check_branch
      %46 = sbr.rel (0) target = $region13
    $region12: #{tpu_custom_call.1} parent=1 // pred_region
      %s48 = ssub.s32 16384, 16384
      %49 = vsyncadd [#allocation10], %s48
      %s50 = sshll.u32 [#allocation11], 4
      %s51 = int_to_ptr.vmem [resolvable:$true] %s50
      %56 = dma.hbm_to_vmem [thread:$0]  %s2, 16384, %s51, [#allocation10], 1024, 1024, 64
    $region13: #{tpu_custom_call.1} parent=1 // pred_fallthru
      _
    // Predicated region
    $region14: #{tpu_custom_call.1} parent=1 // pred_check
      _
    $region15: #{tpu_custom_call.1} parent=1 // pred_check_branch
      %58 = sbr.rel (0) target = $region17
    $region16: #{tpu_custom_call.1} parent=1 // pred_region
      _
    $region17: #{tpu_custom_call.1} parent=1 // pred_fallthru
      _
    // Predicated region
    $region18: #{tpu_custom_call.1} parent=1 // pred_check
      _
    $region19: #{tpu_custom_call.1} parent=1 // pred_check_branch
      %60 = sbr.rel (0) target = $region21
    $region20: #{tpu_custom_call.1} parent=1 // pred_region
      _
    $region21: #{tpu_custom_call.1} parent=1 // pred_fallthru
      _
    // Predicated region
    $region22: #{tpu_custom_call.1} parent=1 // pred_check
      _
    $region23: #{tpu_custom_call.1} parent=1 // pred_check_branch
      %62 = sbr.rel (0) target = $region25
    $region24: #{tpu_custom_call.1} parent=1 // pred_region
      %s64 = ssub.s32 32768, 32768
      %65 = vsyncadd [#allocation13], %s64
      %s66 = sshll.u32 [#allocation12], 4
      %s67 = int_to_ptr.vmem [resolvable:$true] %s66
      %72 = dma.hbm_to_vmem [thread:$0]  %s5, 32768, %s67, [#allocation13], 1024, 1024, 64
    $region25: #{tpu_custom_call.1} parent=1 // pred_fallthru
      _
    // Predicated region
    $region26: #{tpu_custom_call.1} parent=1 // pred_check
      _
    $region27: #{tpu_custom_call.1} parent=1 // pred_check_branch
      %74 = sbr.rel (0) target = $region29
    $region28: #{tpu_custom_call.1} parent=1 // pred_region
      %s76 = ssub.s32 16384, 16384
      %77 = vsyncadd [#allocation13], %s76
      %s78 = sshll.u32 [#allocation14], 4
      %s79 = int_to_ptr.vmem [resolvable:$true] %s78
      %84 = dma.hbm_to_vmem [thread:$0]  %s6, 16384, %s79, [#allocation13], 1024, 1024, 64
    $region29: #{tpu_custom_call.1} parent=1 // pred_fallthru
      _
    // Predicated region
    $region30: #{tpu_custom_call.1} parent=1 // pred_check
      _
    $region31: #{tpu_custom_call.1} parent=1 // pred_check_branch
      %86 = sbr.rel (0) target = $region33
    $region32: #{tpu_custom_call.1} parent=1 // pred_region
      _
    $region33: #{tpu_custom_call.1} parent=1 // pred_fallthru
      _
    // Predicated region
    $region34: #{tpu_custom_call.1} parent=1 // pred_check
      _
    $region35: #{tpu_custom_call.1} parent=1 // pred_check_branch
      %88 = sbr.rel (0) target = $region37
    $region36: #{tpu_custom_call.1} parent=1 // pred_region
      _
    $region37: #{tpu_custom_call.1} parent=1 // pred_fallthru
      _
    // Predicated region
    $region38: #{tpu_custom_call.1} parent=1 // pred_check
      _
    $region39: #{tpu_custom_call.1} parent=1 // pred_check_branch
      %90 = sbr.rel (0) target = $region41
    $region40: #{tpu_custom_call.1} parent=1 // pred_region
      _
    $region41: #{tpu_custom_call.1} parent=1 // pred_fallthru
      _
    // Predicated region
    $region42: #{tpu_custom_call.1} parent=1 // pred_check
      _
    $region43: #{tpu_custom_call.1} parent=1 // pred_check_branch
      %92 = sbr.rel (0) target = $region45
    $region44: #{tpu_custom_call.1} parent=1 // pred_region
      _
    $region45: #{tpu_custom_call.1} parent=1 // pred_fallthru
      _
    // Predicated region
    $region46: #{tpu_custom_call.1} parent=1 // pred_check
      _
    $region47: #{tpu_custom_call.1} parent=1 // pred_check_branch
      %94 = sbr.rel (0) target = $region49
    $region48: #{tpu_custom_call.1} parent=1 // pred_region
      %95 = dma.done [#allocation8], 1024
    $region49: #{tpu_custom_call.1} parent=1 // pred_fallthru
      _
    // Predicated region
    $region50: #{tpu_custom_call.1} parent=1 // pred_check
      _
    $region51: #{tpu_custom_call.1} parent=1 // pred_check_branch
      %97 = sbr.rel (0) target = $region53
    $region52: #{tpu_custom_call.1} parent=1 // pred_region
      %98 = dma.done [#allocation10], 2048
    $region53: #{tpu_custom_call.1} parent=1 // pred_fallthru
      _
    // Predicated region
    $region54: #{tpu_custom_call.1} parent=1 // pred_check
      _
    $region55: #{tpu_custom_call.1} parent=1 // pred_check_branch
      %100 = sbr.rel (0) target = $region57
    $region56: #{tpu_custom_call.1} parent=1 // pred_region
      %101 = dma.done [#allocation10], 16384
    $region57: #{tpu_custom_call.1} parent=1 // pred_fallthru
      _
    // Predicated region
    $region58: #{tpu_custom_call.1} parent=1 // pred_check
      _
    $region59: #{tpu_custom_call.1} parent=1 // pred_check_branch
      %103 = sbr.rel (0) target = $region61
    $region60: #{tpu_custom_call.1} parent=1 // pred_region
      %104 = dma.done [#allocation13], 32768
    $region61: #{tpu_custom_call.1} parent=1 // pred_fallthru
      _
    // Predicated region
    $region62: #{tpu_custom_call.1} parent=1 // pred_check
      _
    $region63: #{tpu_custom_call.1} parent=1 // pred_check_branch
      %106 = sbr.rel (0) target = $region65
    $region64: #{tpu_custom_call.1} parent=1 // pred_region
      %107 = dma.done [#allocation13], 16384
    $region65: #{tpu_custom_call.1} parent=1 // pred_fallthru
      _
    %v108 = vld [vmem:[#allocation7] sm:$0xff]
    %v109 = vld [vmem:[#allocation7 + $0x8] sm:$0xff]
    %v110 = vld [vmem:[#allocation7 + $0x10] sm:$0xff]
    %v111 = vld [vmem:[#allocation7 + $0x18] sm:$0xff]
    %v112 = vld [vmem:[#allocation7 + $0x20] sm:$0xff]
    %v113 = vld [vmem:[#allocation7 + $0x28] sm:$0xff]
    %v114 = vld [vmem:[#allocation7 + $0x30] sm:$0xff]
    %v115 = vld [vmem:[#allocation7 + $0x38] sm:$0xff]
    %v116 = vld [vmem:[#allocation9] sm:$0xff]
    %v117 = vld [vmem:[#allocation9 + $0x8] sm:$0xff]
    %v118 = vld [vmem:[#allocation9 + $0x10] sm:$0xff]
    %v119 = vld [vmem:[#allocation9 + $0x18] sm:$0xff]
    %v120 = vld [vmem:[#allocation9 + $0x20] sm:$0xff]
    %v121 = vld [vmem:[#allocation9 + $0x28] sm:$0xff]
    %v122 = vld [vmem:[#allocation9 + $0x30] sm:$0xff]
    %v123 = vld [vmem:[#allocation9 + $0x38] sm:$0xff]
    %v124 = vld [vmem:[#allocation9 + $0x40] sm:$0xff]
    %v125 = vld [vmem:[#allocation9 + $0x48] sm:$0xff]
    %v126 = vld [vmem:[#allocation9 + $0x50] sm:$0xff]
    %v127 = vld [vmem:[#allocation9 + $0x58] sm:$0xff]
    %v128 = vld [vmem:[#allocation9 + $0x60] sm:$0xff]
    %v129 = vld [vmem:[#allocation9 + $0x68] sm:$0xff]
    %v130 = vld [vmem:[#allocation9 + $0x70] sm:$0xff]
    %v131 = vld [vmem:[#allocation9 + $0x78] sm:$0xff]
    %v132 = vld [vmem:[%s3] sm:$0xff]
    %v134 = vlaneseq
    %v135 = vshrl.u32 %v134, 7
    %v136 = vsub.s32 0, %v135
    %v137 = vrot.slane %v132, %v136
    %v138 = vlaneseq
    %v139 = vshrl.u32 %v138, 7
    %v140 = vsub.s32 1, %v139
    %v141 = vrot.slane %v132, %v140
    %v142 = vlaneseq
    %v143 = vshrl.u32 %v142, 7
    %v144 = vsub.s32 2, %v143
    %v145 = vrot.slane %v132, %v144
    %v146 = vlaneseq
    %v147 = vshrl.u32 %v146, 7
    %v148 = vsub.s32 3, %v147
    %v149 = vrot.slane %v132, %v148
    %v150 = vlaneseq
    %v151 = vshrl.u32 %v150, 7
    %v152 = vsub.s32 4, %v151
    %v153 = vrot.slane %v132, %v152
    %v154 = vlaneseq
    %v155 = vshrl.u32 %v154, 7
    %v156 = vsub.s32 5, %v155
    %v157 = vrot.slane %v132, %v156
    %v158 = vlaneseq
    %v159 = vshrl.u32 %v158, 7
    %v160 = vsub.s32 6, %v159
    %v161 = vrot.slane %v132, %v160
    %v162 = vlaneseq
    %v163 = vshrl.u32 %v162, 7
    %v164 = vsub.s32 7, %v163
    %v165 = vrot.slane %v132, %v164
    %vm174 = vcmask 130048
    %v176 = vsel %vm174, %v108, 0
    %v179 = vsel %vm174, %v109, 0
    %v182 = vsel %vm174, %v110, 0
    %v185 = vsel %vm174, %v111, 0
    %v188 = vsel %vm174, %v112, 0
    %v191 = vsel %vm174, %v113, 0
    %v194 = vsel %vm174, %v114, 0
    %v197 = vsel %vm174, %v115, 0
    %199 = vmatprep.subr.mxu0 %v117
    %200 = vmatpush1.msra.mxu0 %v116
    %201 = vmatprep.subr.mxu0 %v125
    %202 = vmatpush1.msra.mxu0 %v124
    %203 = vmatprep.subr.mxu0 0.0
    %204 = vmatpush1.msra.mxu0 0.0
    %205 = vmatprep.subr.mxu0 0.0
    %206 = vmatpush1.msra.mxu0 0.0
    %207 = vmatprep.subr.mxu0 0.0
    %208 = vmatpush1.msra.mxu0 0.0
    %209 = vmatprep.subr.mxu0 0.0
    %210 = vmatpush1.msra.mxu0 0.0
    %211 = vmatprep.subr.mxu0 0.0
    %212 = vmatpush1.msra.mxu0 0.0
    %213 = vmatprep.subr.mxu0 0.0
    %214 = vmatpush1.msra.mxu0 0.0
    %215 = vmatprep.subr.mxu0 0.0
    %216 = vmatpush1.msra.mxu0 0.0
    %217 = vmatprep.subr.mxu0 0.0
    %218 = vmatpush1.msra.mxu0 0.0
    %219 = vmatprep.subr.mxu0 0.0
    %220 = vmatpush1.msra.mxu0 0.0
    %221 = vmatprep.subr.mxu0 0.0
    %222 = vmatpush1.msra.mxu0 0.0
    %223 = vmatprep.subr.mxu0 0.0
    %224 = vmatpush1.msra.mxu0 0.0
    %225 = vmatprep.subr.mxu0 0.0
    %226 = vmatpush1.msra.mxu0 0.0
    %227 = vmatprep.subr.mxu0 0.0
    %228 = vmatpush1.msra.mxu0 0.0
    %229 = vmatprep.subr.mxu0 0.0
    %230 = vmatpush1.msra.mxu0 0.0
    %231 = vmatprep.subr.mxu0 0.0
    %232 = vmatpush1.msra.mxu0 0.0
    %233 = vmatprep.subr.mxu0 0.0
    %234 = vmatpush1.msra.mxu0 0.0
    %235 = vmatprep.subr.mxu0 0.0
    %236 = vmatpush1.msra.mxu0 0.0
    %237 = vmatprep.subr.mxu0 0.0
    %238 = vmatpush1.msra.mxu0 0.0
    %239 = vmatprep.subr.mxu0 0.0
    %240 = vmatpush1.msra.mxu0 0.0
    %241 = vmatprep.subr.mxu0 0.0
    %242 = vmatpush1.msra.mxu0 0.0
    %243 = vmatprep.subr.mxu0 0.0
    %244 = vmatpush1.msra.mxu0 0.0
    %245 = vmatprep.subr.mxu0 0.0
    %246 = vmatpush1.msra.mxu0 0.0
    %247 = vmatprep.subr.mxu0 0.0
    %248 = vmatpush1.msra.mxu0 0.0
    %249 = vmatprep.subr.mxu0 0.0
    %250 = vmatpush1.msra.mxu0 0.0
    %251 = vmatprep.subr.mxu0 0.0
    %252 = vmatpush1.msra.mxu0 0.0
    %253 = vmatprep.subr.mxu0 0.0
    %254 = vmatpush1.msra.mxu0 0.0
    %255 = vmatprep.subr.mxu0 0.0
    %256 = vmatpush1.msra.mxu0 0.0
    %257 = vmatprep.subr.mxu0 0.0
    %258 = vmatpush1.msra.mxu0 0.0
    %259 = vmatprep.subr.mxu0 0.0
    %260 = vmatpush1.msra.mxu0 0.0
    %261 = vmatprep.subr.mxu0 0.0
    %262 = vmatpush1.msra.mxu0 0.0
    %263 = vmatprep.mubr.f32.mxu0 0.0
    %264 = vmatmul.mubr.f32.gmra.mrb[0].mxu0 %v176
    %v265 = vpop.f32.mrb[0].mxu0
    %v266 = vadd.f32 %v137, %v265
    %v267 = vpop.f32.mrb[0].mxu0
    %v268 = vadd.f32 %v141, %v267
    %269 = vmatprep.mubr.f32.mxu0 0.0
    %270 = vmatmul.mubr.f32.gmra.mrb[0].mxu0 %v179
    %v271 = vpop.f32.mrb[0].mxu0
    %v272 = vadd.f32 %v137, %v271
    %v273 = vpop.f32.mrb[0].mxu0
    %v274 = vadd.f32 %v141, %v273
    %275 = vmatprep.mubr.f32.mxu0 0.0
    %276 = vmatmul.mubr.f32.gmra.mrb[0].mxu0 %v182
    %v277 = vpop.f32.mrb[0].mxu0
    %v278 = vadd.f32 %v137, %v277
    %v279 = vpop.f32.mrb[0].mxu0
    %v280 = vadd.f32 %v141, %v279
    %281 = vmatprep.mubr.f32.mxu0 0.0
    %282 = vmatmul.mubr.f32.gmra.mrb[0].mxu0 %v185
    %v283 = vpop.f32.mrb[0].mxu0
    %v284 = vadd.f32 %v137, %v283
    %v285 = vpop.f32.mrb[0].mxu0
    %v286 = vadd.f32 %v141, %v285
    %287 = vmatprep.mubr.f32.mxu0 0.0
    %288 = vmatmul.mubr.f32.gmra.mrb[0].mxu0 %v188
    %v289 = vpop.f32.mrb[0].mxu0
    %v290 = vadd.f32 %v137, %v289
    %v291 = vpop.f32.mrb[0].mxu0
    %v292 = vadd.f32 %v141, %v291
    %293 = vmatprep.mubr.f32.mxu0 0.0
    %294 = vmatmul.mubr.f32.gmra.mrb[0].mxu0 %v191
    %v295 = vpop.f32.mrb[0].mxu0
    %v296 = vadd.f32 %v137, %v295
    %v297 = vpop.f32.mrb[0].mxu0
    %v298 = vadd.f32 %v141, %v297
    %299 = vmatprep.mubr.f32.mxu0 0.0
    %300 = vmatmul.mubr.f32.gmra.mrb[0].mxu0 %v194
    %v301 = vpop.f32.mrb[0].mxu0
    %v302 = vadd.f32 %v137, %v301
    %v303 = vpop.f32.mrb[0].mxu0
    %v304 = vadd.f32 %v141, %v303
    %305 = vmatprep.mubr.f32.mxu0 0.0
    %306 = vmatmul.mubr.f32.gmra.mrb[0].mxu0 %v197
    %v307 = vpop.f32.mrb[0].mxu0
    %v308 = vadd.f32 %v137, %v307
    %v309 = vpop.f32.mrb[0].mxu0
    %v310 = vadd.f32 %v141, %v309
    %311 = vdwg.mxu0
    %312 = vmatprep.subr.mxu0 %v119
    %313 = vmatpush1.msra.mxu0 %v118
    %314 = vmatprep.subr.mxu0 %v127
    %315 = vmatpush1.msra.mxu0 %v126
    %316 = vmatprep.subr.mxu0 0.0
    %317 = vmatpush1.msra.mxu0 0.0
    %318 = vmatprep.subr.mxu0 0.0
    %319 = vmatpush1.msra.mxu0 0.0
    %320 = vmatprep.subr.mxu0 0.0
    %321 = vmatpush1.msra.mxu0 0.0
    %322 = vmatprep.subr.mxu0 0.0
    %323 = vmatpush1.msra.mxu0 0.0
    %324 = vmatprep.subr.mxu0 0.0
    %325 = vmatpush1.msra.mxu0 0.0
    %326 = vmatprep.subr.mxu0 0.0
    %327 = vmatpush1.msra.mxu0 0.0
    %328 = vmatprep.subr.mxu0 0.0
    %329 = vmatpush1.msra.mxu0 0.0
    %330 = vmatprep.subr.mxu0 0.0
    %331 = vmatpush1.msra.mxu0 0.0
    %332 = vmatprep.subr.mxu0 0.0
    %333 = vmatpush1.msra.mxu0 0.0
    %334 = vmatprep.subr.mxu0 0.0
    %335 = vmatpush1.msra.mxu0 0.0
    %336 = vmatprep.subr.mxu0 0.0
    %337 = vmatpush1.msra.mxu0 0.0
    %338 = vmatprep.subr.mxu0 0.0
    %339 = vmatpush1.msra.mxu0 0.0
    %340 = vmatprep.subr.mxu0 0.0
    %341 = vmatpush1.msra.mxu0 0.0
    %342 = vmatprep.subr.mxu0 0.0
    %343 = vmatpush1.msra.mxu0 0.0
    %344 = vmatprep.subr.mxu0 0.0
    %345 = vmatpush1.msra.mxu0 0.0
    %346 = vmatprep.subr.mxu0 0.0
    %347 = vmatpush1.msra.mxu0 0.0
    %348 = vmatprep.subr.mxu0 0.0
    %349 = vmatpush1.msra.mxu0 0.0
    %350 = vmatprep.subr.mxu0 0.0
    %351 = vmatpush1.msra.mxu0 0.0
    %352 = vmatprep.subr.mxu0 0.0
    %353 = vmatpush1.msra.mxu0 0.0
    %354 = vmatprep.subr.mxu0 0.0
    %355 = vmatpush1.msra.mxu0 0.0
    %356 = vmatprep.subr.mxu0 0.0
    %357 = vmatpush1.msra.mxu0 0.0
    %358 = vmatprep.subr.mxu0 0.0
    %359 = vmatpush1.msra.mxu0 0.0
    %360 = vmatprep.subr.mxu0 0.0
    %361 = vmatpush1.msra.mxu0 0.0
    %362 = vmatprep.subr.mxu0 0.0
    %363 = vmatpush1.msra.mxu0 0.0
    %364 = vmatprep.subr.mxu0 0.0
    %365 = vmatpush1.msra.mxu0 0.0
    %366 = vmatprep.subr.mxu0 0.0
    %367 = vmatpush1.msra.mxu0 0.0
    %368 = vmatprep.subr.mxu0 0.0
    %369 = vmatpush1.msra.mxu0 0.0
    %370 = vmatprep.subr.mxu0 0.0
    %371 = vmatpush1.msra.mxu0 0.0
    %372 = vmatprep.subr.mxu0 0.0
    %373 = vmatpush1.msra.mxu0 0.0
    %374 = vmatprep.subr.mxu0 0.0
    %375 = vmatpush1.msra.mxu0 0.0
    %376 = vmatprep.mubr.f32.mxu0 0.0
    %377 = vmatmul.mubr.f32.gmra.mrb[0].mxu0 %v176
    %v378 = vpop.f32.mrb[0].mxu0
    %v379 = vadd.f32 %v145, %v378
    %v380 = vpop.f32.mrb[0].mxu0
    %v381 = vadd.f32 %v149, %v380
    %382 = vmatprep.mubr.f32.mxu0 0.0
    %383 = vmatmul.mubr.f32.gmra.mrb[0].mxu0 %v179
    %v384 = vpop.f32.mrb[0].mxu0
    %v385 = vadd.f32 %v145, %v384
    %v386 = vpop.f32.mrb[0].mxu0
    %v387 = vadd.f32 %v149, %v386
    %388 = vmatprep.mubr.f32.mxu0 0.0
    %389 = vmatmul.mubr.f32.gmra.mrb[0].mxu0 %v182
    %v390 = vpop.f32.mrb[0].mxu0
    %v391 = vadd.f32 %v145, %v390
    %v392 = vpop.f32.mrb[0].mxu0
    %v393 = vadd.f32 %v149, %v392
    %394 = vmatprep.mubr.f32.mxu0 0.0
    %395 = vmatmul.mubr.f32.gmra.mrb[0].mxu0 %v185
    %v396 = vpop.f32.mrb[0].mxu0
    %v397 = vadd.f32 %v145, %v396
    %v398 = vpop.f32.mrb[0].mxu0
    %v399 = vadd.f32 %v149, %v398
    %400 = vmatprep.mubr.f32.mxu0 0.0
    %401 = vmatmul.mubr.f32.gmra.mrb[0].mxu0 %v188
    %v402 = vpop.f32.mrb[0].mxu0
    %v403 = vadd.f32 %v145, %v402
    %v404 = vpop.f32.mrb[0].mxu0
    %v405 = vadd.f32 %v149, %v404
    %406 = vmatprep.mubr.f32.mxu0 0.0
    %407 = vmatmul.mubr.f32.gmra.mrb[0].mxu0 %v191
    %v408 = vpop.f32.mrb[0].mxu0
    %v409 = vadd.f32 %v145, %v408
    %v410 = vpop.f32.mrb[0].mxu0
    %v411 = vadd.f32 %v149, %v410
    %412 = vmatprep.mubr.f32.mxu0 0.0
    %413 = vmatmul.mubr.f32.gmra.mrb[0].mxu0 %v194
    %v414 = vpop.f32.mrb[0].mxu0
    %v415 = vadd.f32 %v145, %v414
    %v416 = vpop.f32.mrb[0].mxu0
    %v417 = vadd.f32 %v149, %v416
    %418 = vmatprep.mubr.f32.mxu0 0.0
    %419 = vmatmul.mubr.f32.gmra.mrb[0].mxu0 %v197
    %v420 = vpop.f32.mrb[0].mxu0
    %v421 = vadd.f32 %v145, %v420
    %v422 = vpop.f32.mrb[0].mxu0
    %v423 = vadd.f32 %v149, %v422
    %424 = vdwg.mxu0
    %425 = vmatprep.subr.mxu0 %v121
    %426 = vmatpush1.msra.mxu0 %v120
    %427 = vmatprep.subr.mxu0 %v129
    %428 = vmatpush1.msra.mxu0 %v128
    %429 = vmatprep.subr.mxu0 0.0
    %430 = vmatpush1.msra.mxu0 0.0
    %431 = vmatprep.subr.mxu0 0.0
    %432 = vmatpush1.msra.mxu0 0.0
    %433 = vmatprep.subr.mxu0 0.0
    %434 = vmatpush1.msra.mxu0 0.0
    %435 = vmatprep.subr.mxu0 0.0
    %436 = vmatpush1.msra.mxu0 0.0
    %437 = vmatprep.subr.mxu0 0.0
    %438 = vmatpush1.msra.mxu0 0.0
    %439 = vmatprep.subr.mxu0 0.0
    %440 = vmatpush1.msra.mxu0 0.0
    %441 = vmatprep.subr.mxu0 0.0
    %442 = vmatpush1.msra.mxu0 0.0
    %443 = vmatprep.subr.mxu0 0.0
    %444 = vmatpush1.msra.mxu0 0.0
    %445 = vmatprep.subr.mxu0 0.0
    %446 = vmatpush1.msra.mxu0 0.0
    %447 = vmatprep.subr.mxu0 0.0
    %448 = vmatpush1.msra.mxu0 0.0
    %449 = vmatprep.subr.mxu0 0.0
    %450 = vmatpush1.msra.mxu0 0.0
    %451 = vmatprep.subr.mxu0 0.0
    %452 = vmatpush1.msra.mxu0 0.0
    %453 = vmatprep.subr.mxu0 0.0
    %454 = vmatpush1.msra.mxu0 0.0
    %455 = vmatprep.subr.mxu0 0.0
    %456 = vmatpush1.msra.mxu0 0.0
    %457 = vmatprep.subr.mxu0 0.0
    %458 = vmatpush1.msra.mxu0 0.0
    %459 = vmatprep.subr.mxu0 0.0
    %460 = vmatpush1.msra.mxu0 0.0
    %461 = vmatprep.subr.mxu0 0.0
    %462 = vmatpush1.msra.mxu0 0.0
    %463 = vmatprep.subr.mxu0 0.0
    %464 = vmatpush1.msra.mxu0 0.0
    %465 = vmatprep.subr.mxu0 0.0
    %466 = vmatpush1.msra.mxu0 0.0
    %467 = vmatprep.subr.mxu0 0.0
    %468 = vmatpush1.msra.mxu0 0.0
    %469 = vmatprep.subr.mxu0 0.0
    %470 = vmatpush1.msra.mxu0 0.0
    %471 = vmatprep.subr.mxu0 0.0
    %472 = vmatpush1.msra.mxu0 0.0
    %473 = vmatprep.subr.mxu0 0.0
    %474 = vmatpush1.msra.mxu0 0.0
    %475 = vmatprep.subr.mxu0 0.0
    %476 = vmatpush1.msra.mxu0 0.0
    %477 = vmatprep.subr.mxu0 0.0
    %478 = vmatpush1.msra.mxu0 0.0
    %479 = vmatprep.subr.mxu0 0.0
    %480 = vmatpush1.msra.mxu0 0.0
    %481 = vmatprep.subr.mxu0 0.0
    %482 = vmatpush1.msra.mxu0 0.0
    %483 = vmatprep.subr.mxu0 0.0
    %484 = vmatpush1.msra.mxu0 0.0
    %485 = vmatprep.subr.mxu0 0.0
    %486 = vmatpush1.msra.mxu0 0.0
    %487 = vmatprep.subr.mxu0 0.0
    %488 = vmatpush1.msra.mxu0 0.0
    %489 = vmatprep.mubr.f32.mxu0 0.0
    %490 = vmatmul.mubr.f32.gmra.mrb[0].mxu0 %v176
    %v491 = vpop.f32.mrb[0].mxu0
    %v492 = vadd.f32 %v153, %v491
    %v493 = vpop.f32.mrb[0].mxu0
    %v494 = vadd.f32 %v157, %v493
    %495 = vmatprep.mubr.f32.mxu0 0.0
    %496 = vmatmul.mubr.f32.gmra.mrb[0].mxu0 %v179
    %v497 = vpop.f32.mrb[0].mxu0
    %v498 = vadd.f32 %v153, %v497
    %v499 = vpop.f32.mrb[0].mxu0
    %v500 = vadd.f32 %v157, %v499
    %501 = vmatprep.mubr.f32.mxu0 0.0
    %502 = vmatmul.mubr.f32.gmra.mrb[0].mxu0 %v182
    %v503 = vpop.f32.mrb[0].mxu0
    %v504 = vadd.f32 %v153, %v503
    %v505 = vpop.f32.mrb[0].mxu0
    %v506 = vadd.f32 %v157, %v505
    %507 = vmatprep.mubr.f32.mxu0 0.0
    %508 = vmatmul.mubr.f32.gmra.mrb[0].mxu0 %v185
    %v509 = vpop.f32.mrb[0].mxu0
    %v510 = vadd.f32 %v153, %v509
    %v511 = vpop.f32.mrb[0].mxu0
    %v512 = vadd.f32 %v157, %v511
    %513 = vmatprep.mubr.f32.mxu0 0.0
    %514 = vmatmul.mubr.f32.gmra.mrb[0].mxu0 %v188
    %v515 = vpop.f32.mrb[0].mxu0
    %v516 = vadd.f32 %v153, %v515
    %v517 = vpop.f32.mrb[0].mxu0
    %v518 = vadd.f32 %v157, %v517
    %519 = vmatprep.mubr.f32.mxu0 0.0
    %520 = vmatmul.mubr.f32.gmra.mrb[0].mxu0 %v191
    %v521 = vpop.f32.mrb[0].mxu0
    %v522 = vadd.f32 %v153, %v521
    %v523 = vpop.f32.mrb[0].mxu0
    %v524 = vadd.f32 %v157, %v523
    %525 = vmatprep.mubr.f32.mxu0 0.0
    %526 = vmatmul.mubr.f32.gmra.mrb[0].mxu0 %v194
    %v527 = vpop.f32.mrb[0].mxu0
    %v528 = vadd.f32 %v153, %v527
    %v529 = vpop.f32.mrb[0].mxu0
    %v530 = vadd.f32 %v157, %v529
    %531 = vmatprep.mubr.f32.mxu0 0.0
    %532 = vmatmul.mubr.f32.gmra.mrb[0].mxu0 %v197
    %v533 = vpop.f32.mrb[0].mxu0
    %v534 = vadd.f32 %v153, %v533
    %v535 = vpop.f32.mrb[0].mxu0
    %v536 = vadd.f32 %v157, %v535
    %537 = vdwg.mxu0
    %538 = vmatprep.subr.mxu0 %v123
    %539 = vmatpush1.msra.mxu0 %v122
    %540 = vmatprep.subr.mxu0 %v131
    %541 = vmatpush1.msra.mxu0 %v130
    %542 = vmatprep.subr.mxu0 0.0
    %543 = vmatpush1.msra.mxu0 0.0
    %544 = vmatprep.subr.mxu0 0.0
    %545 = vmatpush1.msra.mxu0 0.0
    %546 = vmatprep.subr.mxu0 0.0
    %547 = vmatpush1.msra.mxu0 0.0
    %548 = vmatprep.subr.mxu0 0.0
    %549 = vmatpush1.msra.mxu0 0.0
    %550 = vmatprep.subr.mxu0 0.0
    %551 = vmatpush1.msra.mxu0 0.0
    %552 = vmatprep.subr.mxu0 0.0
    %553 = vmatpush1.msra.mxu0 0.0
    %554 = vmatprep.subr.mxu0 0.0
    %555 = vmatpush1.msra.mxu0 0.0
    %556 = vmatprep.subr.mxu0 0.0
    %557 = vmatpush1.msra.mxu0 0.0
    %558 = vmatprep.subr.mxu0 0.0
    %559 = vmatpush1.msra.mxu0 0.0
    %560 = vmatprep.subr.mxu0 0.0
    %561 = vmatpush1.msra.mxu0 0.0
    %562 = vmatprep.subr.mxu0 0.0
    %563 = vmatpush1.msra.mxu0 0.0
    %564 = vmatprep.subr.mxu0 0.0
    %565 = vmatpush1.msra.mxu0 0.0
    %566 = vmatprep.subr.mxu0 0.0
    %567 = vmatpush1.msra.mxu0 0.0
    %568 = vmatprep.subr.mxu0 0.0
    %569 = vmatpush1.msra.mxu0 0.0
    %570 = vmatprep.subr.mxu0 0.0
    %571 = vmatpush1.msra.mxu0 0.0
    %572 = vmatprep.subr.mxu0 0.0
    %573 = vmatpush1.msra.mxu0 0.0
    %574 = vmatprep.subr.mxu0 0.0
    %575 = vmatpush1.msra.mxu0 0.0
    %576 = vmatprep.subr.mxu0 0.0
    %577 = vmatpush1.msra.mxu0 0.0
    %578 = vmatprep.subr.mxu0 0.0
    %579 = vmatpush1.msra.mxu0 0.0
    %580 = vmatprep.subr.mxu0 0.0
    %581 = vmatpush1.msra.mxu0 0.0
    %582 = vmatprep.subr.mxu0 0.0
    %583 = vmatpush1.msra.mxu0 0.0
    %584 = vmatprep.subr.mxu0 0.0
    %585 = vmatpush1.msra.mxu0 0.0
    %586 = vmatprep.subr.mxu0 0.0
    %587 = vmatpush1.msra.mxu0 0.0
    %588 = vmatprep.subr.mxu0 0.0
    %589 = vmatpush1.msra.mxu0 0.0
    %590 = vmatprep.subr.mxu0 0.0
    %591 = vmatpush1.msra.mxu0 0.0
    %592 = vmatprep.subr.mxu0 0.0
    %593 = vmatpush1.msra.mxu0 0.0
    %594 = vmatprep.subr.mxu0 0.0
    %595 = vmatpush1.msra.mxu0 0.0
    %596 = vmatprep.subr.mxu0 0.0
    %597 = vmatpush1.msra.mxu0 0.0
    %598 = vmatprep.subr.mxu0 0.0
    %599 = vmatpush1.msra.mxu0 0.0
    %600 = vmatprep.subr.mxu0 0.0
    %601 = vmatpush1.msra.mxu0 0.0
    %602 = vmatprep.mubr.f32.mxu0 0.0
    %603 = vmatmul.mubr.f32.gmra.mrb[0].mxu0 %v176
    %v604 = vpop.f32.mrb[0].mxu0
    %v605 = vadd.f32 %v161, %v604
    %v606 = vpop.f32.mrb[0].mxu0
    %v607 = vadd.f32 %v165, %v606
    %608 = vmatprep.mubr.f32.mxu0 0.0
    %609 = vmatmul.mubr.f32.gmra.mrb[0].mxu0 %v179
    %v610 = vpop.f32.mrb[0].mxu0
    %v611 = vadd.f32 %v161, %v610
    %v612 = vpop.f32.mrb[0].mxu0
    %v613 = vadd.f32 %v165, %v612
    %614 = vmatprep.mubr.f32.mxu0 0.0
    %615 = vmatmul.mubr.f32.gmra.mrb[0].mxu0 %v182
    %v616 = vpop.f32.mrb[0].mxu0
    %v617 = vadd.f32 %v161, %v616
    %v618 = vpop.f32.mrb[0].mxu0
    %v619 = vadd.f32 %v165, %v618
    %620 = vmatprep.mubr.f32.mxu0 0.0
    %621 = vmatmul.mubr.f32.gmra.mrb[0].mxu0 %v185
    %v622 = vpop.f32.mrb[0].mxu0
    %v623 = vadd.f32 %v161, %v622
    %v624 = vpop.f32.mrb[0].mxu0
    %v625 = vadd.f32 %v165, %v624
    %626 = vmatprep.mubr.f32.mxu0 0.0
    %627 = vmatmul.mubr.f32.gmra.mrb[0].mxu0 %v188
    %v628 = vpop.f32.mrb[0].mxu0
    %v629 = vadd.f32 %v161, %v628
    %v630 = vpop.f32.mrb[0].mxu0
    %v631 = vadd.f32 %v165, %v630
    %632 = vmatprep.mubr.f32.mxu0 0.0
    %633 = vmatmul.mubr.f32.gmra.mrb[0].mxu0 %v191
    %v634 = vpop.f32.mrb[0].mxu0
    %v635 = vadd.f32 %v161, %v634
    %v636 = vpop.f32.mrb[0].mxu0
    %v637 = vadd.f32 %v165, %v636
    %638 = vmatprep.mubr.f32.mxu0 0.0
    %639 = vmatmul.mubr.f32.gmra.mrb[0].mxu0 %v194
    %v640 = vpop.f32.mrb[0].mxu0
    %v641 = vadd.f32 %v161, %v640
    %v642 = vpop.f32.mrb[0].mxu0
    %v643 = vadd.f32 %v165, %v642
    %644 = vmatprep.mubr.f32.mxu0 0.0
    %645 = vmatmul.mubr.f32.gmra.mrb[0].mxu0 %v197
    %v646 = vpop.f32.mrb[0].mxu0
    %v647 = vadd.f32 %v161, %v646
    %v648 = vpop.f32.mrb[0].mxu0
    %v649 = vadd.f32 %v165, %v648
    %650 = vdwg.mxu0
    %651 = vst [vmem:[#allocation2] sm:$0xff] %v266
    %652 = vst [vmem:[#allocation2 + $0x8] sm:$0xff] %v268
    %653 = vst [vmem:[#allocation2 + $0x10] sm:$0xff] %v379
    %654 = vst [vmem:[#allocation2 + $0x18] sm:$0xff] %v381
    %655 = vst [vmem:[#allocation2 + $0x20] sm:$0xff] %v492
    %656 = vst [vmem:[#allocation2 + $0x28] sm:$0xff] %v494
    %657 = vst [vmem:[#allocation2 + $0x30] sm:$0xff] %v605
    %658 = vst [vmem:[#allocation2 + $0x38] sm:$0xff] %v607
    %659 = vst [vmem:[#allocation2 + $0x40] sm:$0xff] %v272
    %660 = vst [vmem:[#allocation2 + $0x48] sm:$0xff] %v274
    %661 = vst [vmem:[#allocation2 + $0x50] sm:$0xff] %v385
    %662 = vst [vmem:[#allocation2 + $0x58] sm:$0xff] %v387
    %663 = vst [vmem:[#allocation2 + $0x60] sm:$0xff] %v498
    %664 = vst [vmem:[#allocation2 + $0x68] sm:$0xff] %v500
    %665 = vst [vmem:[#allocation2 + $0x70] sm:$0xff] %v611
    %666 = vst [vmem:[#allocation2 + $0x78] sm:$0xff] %v613
    %667 = vst [vmem:[#allocation2 + $0x80] sm:$0xff] %v278
    %668 = vst [vmem:[#allocation2 + $0x88] sm:$0xff] %v280
    %669 = vst [vmem:[#allocation2 + $0x90] sm:$0xff] %v391
    %670 = vst [vmem:[#allocation2 + $0x98] sm:$0xff] %v393
    %671 = vst [vmem:[#allocation2 + $0xa0] sm:$0xff] %v504
    %672 = vst [vmem:[#allocation2 + $0xa8] sm:$0xff] %v506
    %673 = vst [vmem:[#allocation2 + $0xb0] sm:$0xff] %v617
    %674 = vst [vmem:[#allocation2 + $0xb8] sm:$0xff] %v619
    %675 = vst [vmem:[#allocation2 + $0xc0] sm:$0xff] %v284
    %676 = vst [vmem:[#allocation2 + $0xc8] sm:$0xff] %v286
    %677 = vst [vmem:[#allocation2 + $0xd0] sm:$0xff] %v397
    %678 = vst [vmem:[#allocation2 + $0xd8] sm:$0xff] %v399
    %679 = vst [vmem:[#allocation2 + $0xe0] sm:$0xff] %v510
    %680 = vst [vmem:[#allocation2 + $0xe8] sm:$0xff] %v512
    %681 = vst [vmem:[#allocation2 + $0xf0] sm:$0xff] %v623
    %682 = vst [vmem:[#allocation2 + $0xf8] sm:$0xff] %v625
    %683 = vst [vmem:[#allocation2 + $0x100] sm:$0xff] %v290
    %684 = vst [vmem:[#allocation2 + $0x108] sm:$0xff] %v292
    %685 = vst [vmem:[#allocation2 + $0x110] sm:$0xff] %v403
    %686 = vst [vmem:[#allocation2 + $0x118] sm:$0xff] %v405
    %687 = vst [vmem:[#allocation2 + $0x120] sm:$0xff] %v516
    %688 = vst [vmem:[#allocation2 + $0x128] sm:$0xff] %v518
    %689 = vst [vmem:[#allocation2 + $0x130] sm:$0xff] %v629
    %690 = vst [vmem:[#allocation2 + $0x138] sm:$0xff] %v631
    %691 = vst [vmem:[#allocation2 + $0x140] sm:$0xff] %v296
    %692 = vst [vmem:[#allocation2 + $0x148] sm:$0xff] %v298
    %693 = vst [vmem:[#allocation2 + $0x150] sm:$0xff] %v409
    %694 = vst [vmem:[#allocation2 + $0x158] sm:$0xff] %v411
    %695 = vst [vmem:[#allocation2 + $0x160] sm:$0xff] %v522
    %696 = vst [vmem:[#allocation2 + $0x168] sm:$0xff] %v524
    %697 = vst [vmem:[#allocation2 + $0x170] sm:$0xff] %v635
    %698 = vst [vmem:[#allocation2 + $0x178] sm:$0xff] %v637
    %699 = vst [vmem:[#allocation2 + $0x180] sm:$0xff] %v302
    %700 = vst [vmem:[#allocation2 + $0x188] sm:$0xff] %v304
    %701 = vst [vmem:[#allocation2 + $0x190] sm:$0xff] %v415
    %702 = vst [vmem:[#allocation2 + $0x198] sm:$0xff] %v417
    %703 = vst [vmem:[#allocation2 + $0x1a0] sm:$0xff] %v528
    %704 = vst [vmem:[#allocation2 + $0x1a8] sm:$0xff] %v530
    %705 = vst [vmem:[#allocation2 + $0x1b0] sm:$0xff] %v641
    %706 = vst [vmem:[#allocation2 + $0x1b8] sm:$0xff] %v643
    %707 = vst [vmem:[#allocation2 + $0x1c0] sm:$0xff] %v308
    %708 = vst [vmem:[#allocation2 + $0x1c8] sm:$0xff] %v310
    %709 = vst [vmem:[#allocation2 + $0x1d0] sm:$0xff] %v421
    %710 = vst [vmem:[#allocation2 + $0x1d8] sm:$0xff] %v423
    %711 = vst [vmem:[#allocation2 + $0x1e0] sm:$0xff] %v534
    %712 = vst [vmem:[#allocation2 + $0x1e8] sm:$0xff] %v536
    %713 = vst [vmem:[#allocation2 + $0x1f0] sm:$0xff] %v647
    %714 = vst [vmem:[#allocation2 + $0x1f8] sm:$0xff] %v649
    %v715 = vld [vmem:[#allocation11] sm:$0xff]
    %v716 = vld [vmem:[#allocation11 + $0x8] sm:$0xff]
    %v717 = vld [vmem:[#allocation11 + $0x10] sm:$0xff]
    %v718 = vld [vmem:[#allocation11 + $0x18] sm:$0xff]
    %v719 = vld [vmem:[#allocation11 + $0x40] sm:$0xff]
    %v720 = vld [vmem:[#allocation11 + $0x48] sm:$0xff]
    %v721 = vld [vmem:[#allocation11 + $0x50] sm:$0xff]
    %v722 = vld [vmem:[#allocation11 + $0x58] sm:$0xff]
    %v723 = vld [vmem:[#allocation11 + $0x80] sm:$0xff]
    %v724 = vld [vmem:[#allocation11 + $0x88] sm:$0xff]
    %v725 = vld [vmem:[#allocation11 + $0x90] sm:$0xff]
    %v726 = vld [vmem:[#allocation11 + $0x98] sm:$0xff]
    %v727 = vld [vmem:[#allocation11 + $0xc0] sm:$0xff]
    %v728 = vld [vmem:[#allocation11 + $0xc8] sm:$0xff]
    %v729 = vld [vmem:[#allocation11 + $0xd0] sm:$0xff]
    %v730 = vld [vmem:[#allocation11 + $0xd8] sm:$0xff]
    %v731 = vld [vmem:[#allocation11 + $0x100] sm:$0xff]
    %v732 = vld [vmem:[#allocation11 + $0x108] sm:$0xff]
    %v733 = vld [vmem:[#allocation11 + $0x110] sm:$0xff]
    %v734 = vld [vmem:[#allocation11 + $0x118] sm:$0xff]
    %v735 = vld [vmem:[#allocation11 + $0x140] sm:$0xff]
    %v736 = vld [vmem:[#allocation11 + $0x148] sm:$0xff]
    %v737 = vld [vmem:[#allocation11 + $0x150] sm:$0xff]
    %v738 = vld [vmem:[#allocation11 + $0x158] sm:$0xff]
    %v739 = vld [vmem:[#allocation11 + $0x180] sm:$0xff]
    %v740 = vld [vmem:[#allocation11 + $0x188] sm:$0xff]
    %v741 = vld [vmem:[#allocation11 + $0x190] sm:$0xff]
    %v742 = vld [vmem:[#allocation11 + $0x198] sm:$0xff]
    %v743 = vld [vmem:[#allocation11 + $0x1c0] sm:$0xff]
    %v744 = vld [vmem:[#allocation11 + $0x1c8] sm:$0xff]
    %v745 = vld [vmem:[#allocation11 + $0x1d0] sm:$0xff]
    %v746 = vld [vmem:[#allocation11 + $0x1d8] sm:$0xff]
    %v747 = vld [vmem:[#allocation11 + $0x200] sm:$0xff]
    %v748 = vld [vmem:[#allocation11 + $0x208] sm:$0xff]
    %v749 = vld [vmem:[#allocation11 + $0x210] sm:$0xff]
    %v750 = vld [vmem:[#allocation11 + $0x218] sm:$0xff]
    %v751 = vld [vmem:[#allocation11 + $0x240] sm:$0xff]
    %v752 = vld [vmem:[#allocation11 + $0x248] sm:$0xff]
    %v753 = vld [vmem:[#allocation11 + $0x250] sm:$0xff]
    %v754 = vld [vmem:[#allocation11 + $0x258] sm:$0xff]
    %v755 = vld [vmem:[#allocation11 + $0x280] sm:$0xff]
    %v756 = vld [vmem:[#allocation11 + $0x288] sm:$0xff]
    %v757 = vld [vmem:[#allocation11 + $0x290] sm:$0xff]
    %v758 = vld [vmem:[#allocation11 + $0x298] sm:$0xff]
    %v759 = vld [vmem:[#allocation11 + $0x2c0] sm:$0xff]
    %v760 = vld [vmem:[#allocation11 + $0x2c8] sm:$0xff]
    %v761 = vld [vmem:[#allocation11 + $0x2d0] sm:$0xff]
    %v762 = vld [vmem:[#allocation11 + $0x2d8] sm:$0xff]
    %v763 = vld [vmem:[#allocation11 + $0x300] sm:$0xff]
    %v764 = vld [vmem:[#allocation11 + $0x308] sm:$0xff]
    %v765 = vld [vmem:[#allocation11 + $0x310] sm:$0xff]
    %v766 = vld [vmem:[#allocation11 + $0x318] sm:$0xff]
    %v767 = vld [vmem:[#allocation11 + $0x340] sm:$0xff]
    %v768 = vld [vmem:[#allocation11 + $0x348] sm:$0xff]
    %v769 = vld [vmem:[#allocation11 + $0x350] sm:$0xff]
    %v770 = vld [vmem:[#allocation11 + $0x358] sm:$0xff]
    %v771 = vld [vmem:[#allocation11 + $0x380] sm:$0xff]
    %v772 = vld [vmem:[#allocation11 + $0x388] sm:$0xff]
    %v773 = vld [vmem:[#allocation11 + $0x390] sm:$0xff]
    %v774 = vld [vmem:[#allocation11 + $0x398] sm:$0xff]
    %v775 = vld [vmem:[#allocation11 + $0x3c0] sm:$0xff]
    %v776 = vld [vmem:[#allocation11 + $0x3c8] sm:$0xff]
    %v777 = vld [vmem:[#allocation11 + $0x3d0] sm:$0xff]
    %v778 = vld [vmem:[#allocation11 + $0x3d8] sm:$0xff]
    %v779 = vld [vmem:[#allocation11 + $0x20] sm:$0xff]
    %v780 = vld [vmem:[#allocation11 + $0x28] sm:$0xff]
    %v781 = vld [vmem:[#allocation11 + $0x30] sm:$0xff]
    %v782 = vld [vmem:[#allocation11 + $0x38] sm:$0xff]
    %v783 = vld [vmem:[#allocation11 + $0x60] sm:$0xff]
    %v784 = vld [vmem:[#allocation11 + $0x68] sm:$0xff]
    %v785 = vld [vmem:[#allocation11 + $0x70] sm:$0xff]
    %v786 = vld [vmem:[#allocation11 + $0x78] sm:$0xff]
    %v787 = vld [vmem:[#allocation11 + $0xa0] sm:$0xff]
    %v788 = vld [vmem:[#allocation11 + $0xa8] sm:$0xff]
    %v789 = vld [vmem:[#allocation11 + $0xb0] sm:$0xff]
    %v790 = vld [vmem:[#allocation11 + $0xb8] sm:$0xff]
    %v791 = vld [vmem:[#allocation11 + $0xe0] sm:$0xff]
    %v792 = vld [vmem:[#allocation11 + $0xe8] sm:$0xff]
    %v793 = vld [vmem:[#allocation11 + $0xf0] sm:$0xff]
    %v794 = vld [vmem:[#allocation11 + $0xf8] sm:$0xff]
    %v795 = vld [vmem:[#allocation11 + $0x120] sm:$0xff]
    %v796 = vld [vmem:[#allocation11 + $0x128] sm:$0xff]
    %v797 = vld [vmem:[#allocation11 + $0x130] sm:$0xff]
    %v798 = vld [vmem:[#allocation11 + $0x138] sm:$0xff]
    %v799 = vld [vmem:[#allocation11 + $0x160] sm:$0xff]
    %v800 = vld [vmem:[#allocation11 + $0x168] sm:$0xff]
    %v801 = vld [vmem:[#allocation11 + $0x170] sm:$0xff]
    %v802 = vld [vmem:[#allocation11 + $0x178] sm:$0xff]
    %v803 = vld [vmem:[#allocation11 + $0x1a0] sm:$0xff]
    %v804 = vld [vmem:[#allocation11 + $0x1a8] sm:$0xff]
    %v805 = vld [vmem:[#allocation11 + $0x1b0] sm:$0xff]
    %v806 = vld [vmem:[#allocation11 + $0x1b8] sm:$0xff]
    %v807 = vld [vmem:[#allocation11 + $0x1e0] sm:$0xff]
    %v808 = vld [vmem:[#allocation11 + $0x1e8] sm:$0xff]
    %v809 = vld [vmem:[#allocation11 + $0x1f0] sm:$0xff]
    %v810 = vld [vmem:[#allocation11 + $0x1f8] sm:$0xff]
    %v811 = vld [vmem:[#allocation11 + $0x220] sm:$0xff]
    %v812 = vld [vmem:[#allocation11 + $0x228] sm:$0xff]
    %v813 = vld [vmem:[#allocation11 + $0x230] sm:$0xff]
    %v814 = vld [vmem:[#allocation11 + $0x238] sm:$0xff]
    %v815 = vld [vmem:[#allocation11 + $0x260] sm:$0xff]
    %v816 = vld [vmem:[#allocation11 + $0x268] sm:$0xff]
    %v817 = vld [vmem:[#allocation11 + $0x270] sm:$0xff]
    %v818 = vld [vmem:[#allocation11 + $0x278] sm:$0xff]
    %v819 = vld [vmem:[#allocation11 + $0x2a0] sm:$0xff]
    %v820 = vld [vmem:[#allocation11 + $0x2a8] sm:$0xff]
    %v821 = vld [vmem:[#allocation11 + $0x2b0] sm:$0xff]
    %v822 = vld [vmem:[#allocation11 + $0x2b8] sm:$0xff]
    %v823 = vld [vmem:[#allocation11 + $0x2e0] sm:$0xff]
    %v824 = vld [vmem:[#allocation11 + $0x2e8] sm:$0xff]
    %v825 = vld [vmem:[#allocation11 + $0x2f0] sm:$0xff]
    %v826 = vld [vmem:[#allocation11 + $0x2f8] sm:$0xff]
    %v827 = vld [vmem:[#allocation11 + $0x320] sm:$0xff]
    %v828 = vld [vmem:[#allocation11 + $0x328] sm:$0xff]
    %v829 = vld [vmem:[#allocation11 + $0x330] sm:$0xff]
    %v830 = vld [vmem:[#allocation11 + $0x338] sm:$0xff]
    %v831 = vld [vmem:[#allocation11 + $0x360] sm:$0xff]
    %v832 = vld [vmem:[#allocation11 + $0x368] sm:$0xff]
    %v833 = vld [vmem:[#allocation11 + $0x370] sm:$0xff]
    %v834 = vld [vmem:[#allocation11 + $0x378] sm:$0xff]
    %v835 = vld [vmem:[#allocation11 + $0x3a0] sm:$0xff]
    %v836 = vld [vmem:[#allocation11 + $0x3a8] sm:$0xff]
    %v837 = vld [vmem:[#allocation11 + $0x3b0] sm:$0xff]
    %v838 = vld [vmem:[#allocation11 + $0x3b8] sm:$0xff]
    %v839 = vld [vmem:[#allocation11 + $0x3e0] sm:$0xff]
    %v840 = vld [vmem:[#allocation11 + $0x3e8] sm:$0xff]
    %v841 = vld [vmem:[#allocation11 + $0x3f0] sm:$0xff]
    %v842 = vld [vmem:[#allocation11 + $0x3f8] sm:$0xff]
    %843 = vmatprep.subr.mxu0 %v716
    %844 = vmatpush1.msra.mxu0 %v715
    %845 = vmatprep.subr.mxu0 %v720
    %846 = vmatpush1.msra.mxu0 %v719
    %847 = vmatprep.subr.mxu0 %v724
    %848 = vmatpush1.msra.mxu0 %v723
    %849 = vmatprep.subr.mxu0 %v728
    %850 = vmatpush1.msra.mxu0 %v727
    %851 = vmatprep.subr.mxu0 %v732
    %852 = vmatpush1.msra.mxu0 %v731
    %853 = vmatprep.subr.mxu0 %v736
    %854 = vmatpush1.msra.mxu0 %v735
    %855 = vmatprep.subr.mxu0 %v740
    %856 = vmatpush1.msra.mxu0 %v739
    %857 = vmatprep.subr.mxu0 %v744
    %858 = vmatpush1.msra.mxu0 %v743
    %859 = vmatprep.subr.mxu0 %v748
    %860 = vmatpush1.msra.mxu0 %v747
    %861 = vmatprep.subr.mxu0 %v752
    %862 = vmatpush1.msra.mxu0 %v751
    %863 = vmatprep.subr.mxu0 %v756
    %864 = vmatpush1.msra.mxu0 %v755
    %865 = vmatprep.subr.mxu0 %v760
    %866 = vmatpush1.msra.mxu0 %v759
    %867 = vmatprep.subr.mxu0 %v764
    %868 = vmatpush1.msra.mxu0 %v763
    %869 = vmatprep.subr.mxu0 %v768
    %870 = vmatpush1.msra.mxu0 %v767
    %871 = vmatprep.subr.mxu0 %v772
    %872 = vmatpush1.msra.mxu0 %v771
    %873 = vmatprep.subr.mxu0 %v776
    %874 = vmatpush1.msra.mxu0 %v775
    %875 = vmatprep.subr.mxu0 0.0
    %876 = vmatpush1.msra.mxu0 0.0
    %877 = vmatprep.subr.mxu0 0.0
    %878 = vmatpush1.msra.mxu0 0.0
    %879 = vmatprep.subr.mxu0 0.0
    %880 = vmatpush1.msra.mxu0 0.0
    %881 = vmatprep.subr.mxu0 0.0
    %882 = vmatpush1.msra.mxu0 0.0
    %883 = vmatprep.subr.mxu0 0.0
    %884 = vmatpush1.msra.mxu0 0.0
    %885 = vmatprep.subr.mxu0 0.0
    %886 = vmatpush1.msra.mxu0 0.0
    %887 = vmatprep.subr.mxu0 0.0
    %888 = vmatpush1.msra.mxu0 0.0
    %889 = vmatprep.subr.mxu0 0.0
    %890 = vmatpush1.msra.mxu0 0.0
    %891 = vmatprep.subr.mxu0 0.0
    %892 = vmatpush1.msra.mxu0 0.0
    %893 = vmatprep.subr.mxu0 0.0
    %894 = vmatpush1.msra.mxu0 0.0
    %895 = vmatprep.subr.mxu0 0.0
    %896 = vmatpush1.msra.mxu0 0.0
    %897 = vmatprep.subr.mxu0 0.0
    %898 = vmatpush1.msra.mxu0 0.0
    %899 = vmatprep.subr.mxu0 0.0
    %900 = vmatpush1.msra.mxu0 0.0
    %901 = vmatprep.subr.mxu0 0.0
    %902 = vmatpush1.msra.mxu0 0.0
    %903 = vmatprep.subr.mxu0 0.0
    %904 = vmatpush1.msra.mxu0 0.0
    %905 = vmatprep.subr.mxu0 0.0
    %906 = vmatpush1.msra.mxu0 0.0
    %907 = vmatprep.mubr.f32.mxu0 0.0
    %908 = vmatmul.mubr.f32.gmra.mrb[0].mxu0 0.0
    %v909 = vpop.f32.mrb[0].mxu0
    %v910 = vadd.f32 0.0, %v909
    %v911 = vpop.f32.mrb[0].mxu0
    %v912 = vadd.f32 0.0, %v911
    %913 = vmatprep.mubr.f32.mxu0 0.0
    %914 = vmatmul.mubr.f32.gmra.mrb[0].mxu0 0.0
    %v915 = vpop.f32.mrb[0].mxu0
    %v916 = vadd.f32 0.0, %v915
    %v917 = vpop.f32.mrb[0].mxu0
    %v918 = vadd.f32 0.0, %v917
    %919 = vdwg.mxu0
    %920 = vmatprep.subr.mxu0 %v718
    %921 = vmatpush1.msra.mxu0 %v717
    %922 = vmatprep.subr.mxu0 %v722
    %923 = vmatpush1.msra.mxu0 %v721
    %924 = vmatprep.subr.mxu0 %v726
    %925 = vmatpush1.msra.mxu0 %v725
    %926 = vmatprep.subr.mxu0 %v730
    %927 = vmatpush1.msra.mxu0 %v729
    %928 = vmatprep.subr.mxu0 %v734
    %929 = vmatpush1.msra.mxu0 %v733
    %930 = vmatprep.subr.mxu0 %v738
    %931 = vmatpush1.msra.mxu0 %v737
    %932 = vmatprep.subr.mxu0 %v742
    %933 = vmatpush1.msra.mxu0 %v741
    %934 = vmatprep.subr.mxu0 %v746
    %935 = vmatpush1.msra.mxu0 %v745
    %936 = vmatprep.subr.mxu0 %v750
    %937 = vmatpush1.msra.mxu0 %v749
    %938 = vmatprep.subr.mxu0 %v754
    %939 = vmatpush1.msra.mxu0 %v753
    %940 = vmatprep.subr.mxu0 %v758
    %941 = vmatpush1.msra.mxu0 %v757
    %942 = vmatprep.subr.mxu0 %v762
    %943 = vmatpush1.msra.mxu0 %v761
    %944 = vmatprep.subr.mxu0 %v766
    %945 = vmatpush1.msra.mxu0 %v765
    %946 = vmatprep.subr.mxu0 %v770
    %947 = vmatpush1.msra.mxu0 %v769
    %948 = vmatprep.subr.mxu0 %v774
    %949 = vmatpush1.msra.mxu0 %v773
    %950 = vmatprep.subr.mxu0 %v778
    %951 = vmatpush1.msra.mxu0 %v777
    %952 = vmatprep.subr.mxu0 0.0
    %953 = vmatpush1.msra.mxu0 0.0
    %954 = vmatprep.subr.mxu0 0.0
    %955 = vmatpush1.msra.mxu0 0.0
    %956 = vmatprep.subr.mxu0 0.0
    %957 = vmatpush1.msra.mxu0 0.0
    %958 = vmatprep.subr.mxu0 0.0
    %959 = vmatpush1.msra.mxu0 0.0
    %960 = vmatprep.subr.mxu0 0.0
    %961 = vmatpush1.msra.mxu0 0.0
    %962 = vmatprep.subr.mxu0 0.0
    %963 = vmatpush1.msra.mxu0 0.0
    %964 = vmatprep.subr.mxu0 0.0
    %965 = vmatpush1.msra.mxu0 0.0
    %966 = vmatprep.subr.mxu0 0.0
    %967 = vmatpush1.msra.mxu0 0.0
    %968 = vmatprep.subr.mxu0 0.0
    %969 = vmatpush1.msra.mxu0 0.0
    %970 = vmatprep.subr.mxu0 0.0
    %971 = vmatpush1.msra.mxu0 0.0
    %972 = vmatprep.subr.mxu0 0.0
    %973 = vmatpush1.msra.mxu0 0.0
    %974 = vmatprep.subr.mxu0 0.0
    %975 = vmatpush1.msra.mxu0 0.0
    %976 = vmatprep.subr.mxu0 0.0
    %977 = vmatpush1.msra.mxu0 0.0
    %978 = vmatprep.subr.mxu0 0.0
    %979 = vmatpush1.msra.mxu0 0.0
    %980 = vmatprep.subr.mxu0 0.0
    %981 = vmatpush1.msra.mxu0 0.0
    %982 = vmatprep.subr.mxu0 0.0
    %983 = vmatpush1.msra.mxu0 0.0
    %984 = vmatprep.mubr.f32.mxu0 0.0
    %985 = vmatmul.mubr.f32.gmra.mrb[0].mxu0 0.0
    %v986 = vpop.f32.mrb[0].mxu0
    %v987 = vadd.f32 0.0, %v986
    %v988 = vpop.f32.mrb[0].mxu0
    %v989 = vadd.f32 0.0, %v988
    %990 = vmatprep.mubr.f32.mxu0 0.0
    %991 = vmatmul.mubr.f32.gmra.mrb[0].mxu0 0.0
    %v992 = vpop.f32.mrb[0].mxu0
    %v993 = vadd.f32 0.0, %v992
    %v994 = vpop.f32.mrb[0].mxu0
    %v995 = vadd.f32 0.0, %v994
    %996 = vdwg.mxu0
    %997 = vmatprep.subr.mxu0 %v780
    %998 = vmatpush1.msra.mxu0 %v779
    %999 = vmatprep.subr.mxu0 %v784
    %1000 = vmatpush1.msra.mxu0 %v783
    %1001 = vmatprep.subr.mxu0 %v788
    %1002 = vmatpush1.msra.mxu0 %v787
    %1003 = vmatprep.subr.mxu0 %v792
    %1004 = vmatpush1.msra.mxu0 %v791
    %1005 = vmatprep.subr.mxu0 %v796
    %1006 = vmatpush1.msra.mxu0 %v795
    %1007 = vmatprep.subr.mxu0 %v800
    %1008 = vmatpush1.msra.mxu0 %v799
    %1009 = vmatprep.subr.mxu0 %v804
    %1010 = vmatpush1.msra.mxu0 %v803
    %1011 = vmatprep.subr.mxu0 %v808
    %1012 = vmatpush1.msra.mxu0 %v807
    %1013 = vmatprep.subr.mxu0 %v812
    %1014 = vmatpush1.msra.mxu0 %v811
    %1015 = vmatprep.subr.mxu0 %v816
    %1016 = vmatpush1.msra.mxu0 %v815
    %1017 = vmatprep.subr.mxu0 %v820
    %1018 = vmatpush1.msra.mxu0 %v819
    %1019 = vmatprep.subr.mxu0 %v824
    %1020 = vmatpush1.msra.mxu0 %v823
    %1021 = vmatprep.subr.mxu0 %v828
    %1022 = vmatpush1.msra.mxu0 %v827
    %1023 = vmatprep.subr.mxu0 %v832
    %1024 = vmatpush1.msra.mxu0 %v831
    %1025 = vmatprep.subr.mxu0 %v836
    %1026 = vmatpush1.msra.mxu0 %v835
    %1027 = vmatprep.subr.mxu0 %v840
    %1028 = vmatpush1.msra.mxu0 %v839
    %1029 = vmatprep.subr.mxu0 0.0
    %1030 = vmatpush1.msra.mxu0 0.0
    %1031 = vmatprep.subr.mxu0 0.0
    %1032 = vmatpush1.msra.mxu0 0.0
    %1033 = vmatprep.subr.mxu0 0.0
    %1034 = vmatpush1.msra.mxu0 0.0
    %1035 = vmatprep.subr.mxu0 0.0
    %1036 = vmatpush1.msra.mxu0 0.0
    %1037 = vmatprep.subr.mxu0 0.0
    %1038 = vmatpush1.msra.mxu0 0.0
    %1039 = vmatprep.subr.mxu0 0.0
    %1040 = vmatpush1.msra.mxu0 0.0
    %1041 = vmatprep.subr.mxu0 0.0
    %1042 = vmatpush1.msra.mxu0 0.0
    %1043 = vmatprep.subr.mxu0 0.0
    %1044 = vmatpush1.msra.mxu0 0.0
    %1045 = vmatprep.subr.mxu0 0.0
    %1046 = vmatpush1.msra.mxu0 0.0
    %1047 = vmatprep.subr.mxu0 0.0
    %1048 = vmatpush1.msra.mxu0 0.0
    %1049 = vmatprep.subr.mxu0 0.0
    %1050 = vmatpush1.msra.mxu0 0.0
    %1051 = vmatprep.subr.mxu0 0.0
    %1052 = vmatpush1.msra.mxu0 0.0
    %1053 = vmatprep.subr.mxu0 0.0
    %1054 = vmatpush1.msra.mxu0 0.0
    %1055 = vmatprep.subr.mxu0 0.0
    %1056 = vmatpush1.msra.mxu0 0.0
    %1057 = vmatprep.subr.mxu0 0.0
    %1058 = vmatpush1.msra.mxu0 0.0
    %1059 = vmatprep.subr.mxu0 0.0
    %1060 = vmatpush1.msra.mxu0 0.0
    %1061 = vmatprep.mubr.f32.mxu0 0.0
    %1062 = vmatmul.mubr.f32.gmra.mrb[0].mxu0 0.0
    %v1063 = vpop.f32.mrb[0].mxu0
    %v1064 = vadd.f32 0.0, %v1063
    %v1065 = vpop.f32.mrb[0].mxu0
    %v1066 = vadd.f32 0.0, %v1065
    %1067 = vmatprep.mubr.f32.mxu0 0.0
    %1068 = vmatmul.mubr.f32.gmra.mrb[0].mxu0 0.0
    %v1069 = vpop.f32.mrb[0].mxu0
    %v1070 = vadd.f32 0.0, %v1069
    %v1071 = vpop.f32.mrb[0].mxu0
    %v1072 = vadd.f32 0.0, %v1071
    %1073 = vdwg.mxu0
    %1074 = vmatprep.subr.mxu0 %v782
    %1075 = vmatpush1.msra.mxu0 %v781
    %1076 = vmatprep.subr.mxu0 %v786
    %1077 = vmatpush1.msra.mxu0 %v785
    %1078 = vmatprep.subr.mxu0 %v790
    %1079 = vmatpush1.msra.mxu0 %v789
    %1080 = vmatprep.subr.mxu0 %v794
    %1081 = vmatpush1.msra.mxu0 %v793
    %1082 = vmatprep.subr.mxu0 %v798
    %1083 = vmatpush1.msra.mxu0 %v797
    %1084 = vmatprep.subr.mxu0 %v802
    %1085 = vmatpush1.msra.mxu0 %v801
    %1086 = vmatprep.subr.mxu0 %v806
    %1087 = vmatpush1.msra.mxu0 %v805
    %1088 = vmatprep.subr.mxu0 %v810
    %1089 = vmatpush1.msra.mxu0 %v809
    %1090 = vmatprep.subr.mxu0 %v814
    %1091 = vmatpush1.msra.mxu0 %v813
    %1092 = vmatprep.subr.mxu0 %v818
    %1093 = vmatpush1.msra.mxu0 %v817
    %1094 = vmatprep.subr.mxu0 %v822
    %1095 = vmatpush1.msra.mxu0 %v821
    %1096 = vmatprep.subr.mxu0 %v826
    %1097 = vmatpush1.msra.mxu0 %v825
    %1098 = vmatprep.subr.mxu0 %v830
    %1099 = vmatpush1.msra.mxu0 %v829
    %1100 = vmatprep.subr.mxu0 %v834
    %1101 = vmatpush1.msra.mxu0 %v833
    %1102 = vmatprep.subr.mxu0 %v838
    %1103 = vmatpush1.msra.mxu0 %v837
    %1104 = vmatprep.subr.mxu0 %v842
    %1105 = vmatpush1.msra.mxu0 %v841
    %1106 = vmatprep.subr.mxu0 0.0
    %1107 = vmatpush1.msra.mxu0 0.0
    %1108 = vmatprep.subr.mxu0 0.0
    %1109 = vmatpush1.msra.mxu0 0.0
    %1110 = vmatprep.subr.mxu0 0.0
    %1111 = vmatpush1.msra.mxu0 0.0
    %1112 = vmatprep.subr.mxu0 0.0
    %1113 = vmatpush1.msra.mxu0 0.0
    %1114 = vmatprep.subr.mxu0 0.0
    %1115 = vmatpush1.msra.mxu0 0.0
    %1116 = vmatprep.subr.mxu0 0.0
    %1117 = vmatpush1.msra.mxu0 0.0
    %1118 = vmatprep.subr.mxu0 0.0
    %1119 = vmatpush1.msra.mxu0 0.0
    %1120 = vmatprep.subr.mxu0 0.0
    %1121 = vmatpush1.msra.mxu0 0.0
    %1122 = vmatprep.subr.mxu0 0.0
    %1123 = vmatpush1.msra.mxu0 0.0
    %1124 = vmatprep.subr.mxu0 0.0
    %1125 = vmatpush1.msra.mxu0 0.0
    %1126 = vmatprep.subr.mxu0 0.0
    %1127 = vmatpush1.msra.mxu0 0.0
    %1128 = vmatprep.subr.mxu0 0.0
    %1129 = vmatpush1.msra.mxu0 0.0
    %1130 = vmatprep.subr.mxu0 0.0
    %1131 = vmatpush1.msra.mxu0 0.0
    %1132 = vmatprep.subr.mxu0 0.0
    %1133 = vmatpush1.msra.mxu0 0.0
    %1134 = vmatprep.subr.mxu0 0.0
    %1135 = vmatpush1.msra.mxu0 0.0
    %1136 = vmatprep.subr.mxu0 0.0
    %1137 = vmatpush1.msra.mxu0 0.0
    %1138 = vmatprep.mubr.f32.mxu0 0.0
    %1139 = vmatmul.mubr.f32.gmra.mrb[0].mxu0 0.0
    %v1140 = vpop.f32.mrb[0].mxu0
    %v1141 = vadd.f32 0.0, %v1140
    %v1142 = vpop.f32.mrb[0].mxu0
    %v1143 = vadd.f32 0.0, %v1142
    %1144 = vmatprep.mubr.f32.mxu0 0.0
    %1145 = vmatmul.mubr.f32.gmra.mrb[0].mxu0 0.0
    %v1146 = vpop.f32.mrb[0].mxu0
    %v1147 = vadd.f32 0.0, %v1146
    %v1148 = vpop.f32.mrb[0].mxu0
    %v1149 = vadd.f32 0.0, %v1148
    %1150 = vdwg.mxu0
    %v1151 = vld [vmem:[#allocation2] sm:$0xff]
    %v1152 = vld [vmem:[#allocation2 + $0x8] sm:$0xff]
    %v1153 = vld [vmem:[#allocation2 + $0x10] sm:$0xff]
    %v1154 = vld [vmem:[#allocation2 + $0x18] sm:$0xff]
    %v1155 = vld [vmem:[#allocation2 + $0x40] sm:$0xff]
    %v1156 = vld [vmem:[#allocation2 + $0x48] sm:$0xff]
    %v1157 = vld [vmem:[#allocation2 + $0x50] sm:$0xff]
    %v1158 = vld [vmem:[#allocation2 + $0x58] sm:$0xff]
    %v1159 = vadd.f32 %v1151, %v910
    %v1160 = vadd.f32 %v1152, %v912
    %v1161 = vadd.f32 %v1153, %v987
    %v1162 = vadd.f32 %v1154, %v989
    %v1163 = vadd.f32 %v1155, %v916
    %v1164 = vadd.f32 %v1156, %v918
    %v1165 = vadd.f32 %v1157, %v993
    %v1166 = vadd.f32 %v1158, %v995
    %v1167 = vxor.u32 %v1159, 2147483648
    %v1168 = vxor.u32 %v1163, 2147483648
    %v1169 = vmul.f32 %v1167, 1.442695
    %v1170 = vpow.pop %v1169
    %v1171 = vmul.f32 %v1168, 1.442695
    %v1172 = vpow.pop %v1171
    %v1173 = vadd.f32 %v1170, 1.0
    %v1174 = vadd.f32 %v1172, 1.0
    %v1175 = vrcp.pop %v1173
    %v1176 = vmul.f32 1.0, %v1175
    %v1177 = vrcp.pop %v1174
    %v1178 = vmul.f32 1.0, %v1177
    %v1179 = vxor.u32 %v1160, 2147483648
    %v1180 = vxor.u32 %v1164, 2147483648
    %v1181 = vmul.f32 %v1179, 1.442695
    %v1182 = vpow.pop %v1181
    %v1183 = vmul.f32 %v1180, 1.442695
    %v1184 = vpow.pop %v1183
    %v1185 = vadd.f32 %v1182, 1.0
    %v1186 = vadd.f32 %v1184, 1.0
    %v1187 = vrcp.pop %v1185
    %v1188 = vmul.f32 1.0, %v1187
    %v1189 = vrcp.pop %v1186
    %v1190 = vmul.f32 1.0, %v1189
    %v1191 = vtanh.pop %v1161
    %v1192 = vtanh.pop %v1165
    %v1193 = vxor.u32 %v1162, 2147483648
    %v1194 = vxor.u32 %v1166, 2147483648
    %v1195 = vmul.f32 %v1193, 1.442695
    %v1196 = vpow.pop %v1195
    %v1197 = vmul.f32 %v1194, 1.442695
    %v1198 = vpow.pop %v1197
    %v1199 = vadd.f32 %v1196, 1.0
    %v1200 = vadd.f32 %v1198, 1.0
    %v1201 = vrcp.pop %v1199
    %v1202 = vmul.f32 1.0, %v1201
    %v1203 = vrcp.pop %v1200
    %v1204 = vmul.f32 1.0, %v1203
    %v1205 = vmul.f32 %v1188, 0.0
    %v1206 = vmul.f32 %v1190, 0.0
    %v1207 = vmul.f32 %v1176, %v1191
    %v1208 = vmul.f32 %v1178, %v1192
    %v1209 = vadd.f32 %v1205, %v1207
    %v1210 = vadd.f32 %v1206, %v1208
    %v1211 = vtanh.pop %v1209
    %v1212 = vtanh.pop %v1210
    %v1213 = vmul.f32 %v1202, %v1211
    %v1214 = vmul.f32 %v1204, %v1212
    %s1215 = scalar_lea.vmem [#allocation2], 384
    %v1216 = vld [vmem:[%s1215 + $0x20] sm:$0xff]
    %v1217 = vld [vmem:[%s1215 + $0x28] sm:$0xff]
    %v1218 = vld [vmem:[%s1215 + $0x30] sm:$0xff]
    %v1219 = vld [vmem:[%s1215 + $0x38] sm:$0xff]
    %v1220 = vld [vmem:[%s1215 + $0x60] sm:$0xff]
    %v1221 = vld [vmem:[%s1215 + $0x68] sm:$0xff]
    %v1222 = vld [vmem:[%s1215 + $0x70] sm:$0xff]
    %v1223 = vld [vmem:[%s1215 + $0x78] sm:$0xff]
    %v1224 = vadd.f32 %v1216, %v1064
    %v1225 = vadd.f32 %v1217, %v1066
    %v1226 = vadd.f32 %v1218, %v1141
    %v1227 = vadd.f32 %v1219, %v1143
    %v1228 = vadd.f32 %v1220, %v1070
    %v1229 = vadd.f32 %v1221, %v1072
    %v1230 = vadd.f32 %v1222, %v1147
    %v1231 = vadd.f32 %v1223, %v1149
    %v1232 = vxor.u32 %v1224, 2147483648
    %v1233 = vxor.u32 %v1228, 2147483648
    %v1234 = vmul.f32 %v1232, 1.442695
    %v1235 = vpow.pop %v1234
    %v1236 = vmul.f32 %v1233, 1.442695
    %v1237 = vpow.pop %v1236
    %v1238 = vadd.f32 %v1235, 1.0
    %v1239 = vadd.f32 %v1237, 1.0
    %v1240 = vrcp.pop %v1238
    %v1241 = vmul.f32 1.0, %v1240
    %v1242 = vrcp.pop %v1239
    %v1243 = vmul.f32 1.0, %v1242
    %v1244 = vxor.u32 %v1225, 2147483648
    %v1245 = vxor.u32 %v1229, 2147483648
    %v1246 = vmul.f32 %v1244, 1.442695
    %v1247 = vpow.pop %v1246
    %v1248 = vmul.f32 %v1245, 1.442695
    %v1249 = vpow.pop %v1248
    %v1250 = vadd.f32 %v1247, 1.0
    %v1251 = vadd.f32 %v1249, 1.0
    %v1252 = vrcp.pop %v1250
    %v1253 = vmul.f32 1.0, %v1252
    %v1254 = vrcp.pop %v1251
    %v1255 = vmul.f32 1.0, %v1254
    %v1256 = vtanh.pop %v1226
    %v1257 = vtanh.pop %v1230
    %v1258 = vxor.u32 %v1227, 2147483648
    %v1259 = vxor.u32 %v1231, 2147483648
    %v1260 = vmul.f32 %v1258, 1.442695
    %v1261 = vpow.pop %v1260
    %v1262 = vmul.f32 %v1259, 1.442695
    %v1263 = vpow.pop %v1262
    %v1264 = vadd.f32 %v1261, 1.0
    %v1265 = vadd.f32 %v1263, 1.0
    %v1266 = vrcp.pop %v1264
    %v1267 = vmul.f32 1.0, %v1266
    %v1268 = vrcp.pop %v1265
    %v1269 = vmul.f32 1.0, %v1268
    %v1270 = vmul.f32 %v1253, 0.0
    %v1271 = vmul.f32 %v1255, 0.0
    %v1272 = vmul.f32 %v1241, %v1256
    %v1273 = vmul.f32 %v1243, %v1257
    %v1274 = vadd.f32 %v1270, %v1272
    %v1275 = vadd.f32 %v1271, %v1273
    %v1276 = vtanh.pop %v1274
    %v1277 = vtanh.pop %v1275
    %v1278 = vmul.f32 %v1267, %v1276
    %v1279 = vmul.f32 %v1269, %v1277
    %1280 = vst [vmem:[#allocation3] sm:$0xff] %v1213
    %1281 = vst [vmem:[#allocation3 + $0x10] sm:$0xff] %v1214
    %s1282 = scalar_lea.vmem [#allocation3], 96
    %1283 = vst [vmem:[%s1282 + $0x8] sm:$0xff] %v1278
    %1284 = vst [vmem:[%s1282 + $0x18] sm:$0xff] %v1279
    %1285 = vmatprep.subr.mxu0 %v716
    %1286 = vmatpush1.msra.mxu0 %v715
    %1287 = vmatprep.subr.mxu0 %v720
    %1288 = vmatpush1.msra.mxu0 %v719
    %1289 = vmatprep.subr.mxu0 %v724
    %1290 = vmatpush1.msra.mxu0 %v723
    %1291 = vmatprep.subr.mxu0 %v728
    %1292 = vmatpush1.msra.mxu0 %v727
    %1293 = vmatprep.subr.mxu0 %v732
    %1294 = vmatpush1.msra.mxu0 %v731
    %1295 = vmatprep.subr.mxu0 %v736
    %1296 = vmatpush1.msra.mxu0 %v735
    %1297 = vmatprep.subr.mxu0 %v740
    %1298 = vmatpush1.msra.mxu0 %v739
    %1299 = vmatprep.subr.mxu0 %v744
    %1300 = vmatpush1.msra.mxu0 %v743
    %1301 = vmatprep.subr.mxu0 %v748
    %1302 = vmatpush1.msra.mxu0 %v747
    %1303 = vmatprep.subr.mxu0 %v752
    %1304 = vmatpush1.msra.mxu0 %v751
    %1305 = vmatprep.subr.mxu0 %v756
    %1306 = vmatpush1.msra.mxu0 %v755
    %1307 = vmatprep.subr.mxu0 %v760
    %1308 = vmatpush1.msra.mxu0 %v759
    %1309 = vmatprep.subr.mxu0 %v764
    %1310 = vmatpush1.msra.mxu0 %v763
    %1311 = vmatprep.subr.mxu0 %v768
    %1312 = vmatpush1.msra.mxu0 %v767
    %1313 = vmatprep.subr.mxu0 %v772
    %1314 = vmatpush1.msra.mxu0 %v771
    %1315 = vmatprep.subr.mxu0 %v776
    %1316 = vmatpush1.msra.mxu0 %v775
    %1317 = vmatprep.subr.mxu0 0.0
    %1318 = vmatpush1.msra.mxu0 0.0
    %1319 = vmatprep.subr.mxu0 0.0
    %1320 = vmatpush1.msra.mxu0 0.0
    %1321 = vmatprep.subr.mxu0 0.0
    %1322 = vmatpush1.msra.mxu0 0.0
    %1323 = vmatprep.subr.mxu0 0.0
    %1324 = vmatpush1.msra.mxu0 0.0
    %1325 = vmatprep.subr.mxu0 0.0
    %1326 = vmatpush1.msra.mxu0 0.0
    %1327 = vmatprep.subr.mxu0 0.0
    %1328 = vmatpush1.msra.mxu0 0.0
    %1329 = vmatprep.subr.mxu0 0.0
    %1330 = vmatpush1.msra.mxu0 0.0
    %1331 = vmatprep.subr.mxu0 0.0
    %1332 = vmatpush1.msra.mxu0 0.0
    %1333 = vmatprep.subr.mxu0 0.0
    %1334 = vmatpush1.msra.mxu0 0.0
    %1335 = vmatprep.subr.mxu0 0.0
    %1336 = vmatpush1.msra.mxu0 0.0
    %1337 = vmatprep.subr.mxu0 0.0
    %1338 = vmatpush1.msra.mxu0 0.0
    %1339 = vmatprep.subr.mxu0 0.0
    %1340 = vmatpush1.msra.mxu0 0.0
    %1341 = vmatprep.subr.mxu0 0.0
    %1342 = vmatpush1.msra.mxu0 0.0
    %1343 = vmatprep.subr.mxu0 0.0
    %1344 = vmatpush1.msra.mxu0 0.0
    %1345 = vmatprep.subr.mxu0 0.0
    %1346 = vmatpush1.msra.mxu0 0.0
    %1347 = vmatprep.subr.mxu0 0.0
    %1348 = vmatpush1.msra.mxu0 0.0
    %1349 = vmatprep.mubr.f32.mxu0 0.0
    %1350 = vmatmul.mubr.f32.gmra.mrb[0].mxu0 %v1213
    %v1351 = vpop.f32.mrb[0].mxu0
    %v1352 = vadd.f32 0.0, %v1351
    %v1353 = vpop.f32.mrb[0].mxu0
    %v1354 = vadd.f32 0.0, %v1353
    %1355 = vmatprep.mubr.f32.mxu0 0.0
    %1356 = vmatmul.mubr.f32.gmra.mrb[0].mxu0 %v1214
    %v1357 = vpop.f32.mrb[0].mxu0
    %v1358 = vadd.f32 0.0, %v1357
    %v1359 = vpop.f32.mrb[0].mxu0
    %v1360 = vadd.f32 0.0, %v1359
    %1361 = vdwg.mxu0
    %1362 = vmatprep.subr.mxu0 %v718
    %1363 = vmatpush1.msra.mxu0 %v717
    %1364 = vmatprep.subr.mxu0 %v722
    %1365 = vmatpush1.msra.mxu0 %v721
    %1366 = vmatprep.subr.mxu0 %v726
    %1367 = vmatpush1.msra.mxu0 %v725
    %1368 = vmatprep.subr.mxu0 %v730
    %1369 = vmatpush1.msra.mxu0 %v729
    %1370 = vmatprep.subr.mxu0 %v734
    %1371 = vmatpush1.msra.mxu0 %v733
    %1372 = vmatprep.subr.mxu0 %v738
    %1373 = vmatpush1.msra.mxu0 %v737
    %1374 = vmatprep.subr.mxu0 %v742
    %1375 = vmatpush1.msra.mxu0 %v741
    %1376 = vmatprep.subr.mxu0 %v746
    %1377 = vmatpush1.msra.mxu0 %v745
    %1378 = vmatprep.subr.mxu0 %v750
    %1379 = vmatpush1.msra.mxu0 %v749
    %1380 = vmatprep.subr.mxu0 %v754
    %1381 = vmatpush1.msra.mxu0 %v753
    %1382 = vmatprep.subr.mxu0 %v758
    %1383 = vmatpush1.msra.mxu0 %v757
    %1384 = vmatprep.subr.mxu0 %v762
    %1385 = vmatpush1.msra.mxu0 %v761
    %1386 = vmatprep.subr.mxu0 %v766
    %1387 = vmatpush1.msra.mxu0 %v765
    %1388 = vmatprep.subr.mxu0 %v770
    %1389 = vmatpush1.msra.mxu0 %v769
    %1390 = vmatprep.subr.mxu0 %v774
    %1391 = vmatpush1.msra.mxu0 %v773
    %1392 = vmatprep.subr.mxu0 %v778
    %1393 = vmatpush1.msra.mxu0 %v777
    %1394 = vmatprep.subr.mxu0 0.0
    %1395 = vmatpush1.msra.mxu0 0.0
    %1396 = vmatprep.subr.mxu0 0.0
    %1397 = vmatpush1.msra.mxu0 0.0
    %1398 = vmatprep.subr.mxu0 0.0
    %1399 = vmatpush1.msra.mxu0 0.0
    %1400 = vmatprep.subr.mxu0 0.0
    %1401 = vmatpush1.msra.mxu0 0.0
    %1402 = vmatprep.subr.mxu0 0.0
    %1403 = vmatpush1.msra.mxu0 0.0
    %1404 = vmatprep.subr.mxu0 0.0
    %1405 = vmatpush1.msra.mxu0 0.0
    %1406 = vmatprep.subr.mxu0 0.0
    %1407 = vmatpush1.msra.mxu0 0.0
    %1408 = vmatprep.subr.mxu0 0.0
    %1409 = vmatpush1.msra.mxu0 0.0
    %1410 = vmatprep.subr.mxu0 0.0
    %1411 = vmatpush1.msra.mxu0 0.0
    %1412 = vmatprep.subr.mxu0 0.0
    %1413 = vmatpush1.msra.mxu0 0.0
    %1414 = vmatprep.subr.mxu0 0.0
    %1415 = vmatpush1.msra.mxu0 0.0
    %1416 = vmatprep.subr.mxu0 0.0
    %1417 = vmatpush1.msra.mxu0 0.0
    %1418 = vmatprep.subr.mxu0 0.0
    %1419 = vmatpush1.msra.mxu0 0.0
    %1420 = vmatprep.subr.mxu0 0.0
    %1421 = vmatpush1.msra.mxu0 0.0
    %1422 = vmatprep.subr.mxu0 0.0
    %1423 = vmatpush1.msra.mxu0 0.0
    %1424 = vmatprep.subr.mxu0 0.0
    %1425 = vmatpush1.msra.mxu0 0.0
    %1426 = vmatprep.mubr.f32.mxu0 0.0
    %1427 = vmatmul.mubr.f32.gmra.mrb[0].mxu0 %v1213
    %v1428 = vpop.f32.mrb[0].mxu0
    %v1429 = vadd.f32 0.0, %v1428
    %v1430 = vpop.f32.mrb[0].mxu0
    %v1431 = vadd.f32 0.0, %v1430
    %1432 = vmatprep.mubr.f32.mxu0 0.0
    %1433 = vmatmul.mubr.f32.gmra.mrb[0].mxu0 %v1214
    %v1434 = vpop.f32.mrb[0].mxu0
    %v1435 = vadd.f32 0.0, %v1434
    %v1436 = vpop.f32.mrb[0].mxu0
    %v1437 = vadd.f32 0.0, %v1436
    %1438 = vdwg.mxu0
    %1439 = vmatprep.subr.mxu0 %v780
    %1440 = vmatpush1.msra.mxu0 %v779
    %1441 = vmatprep.subr.mxu0 %v784
    %1442 = vmatpush1.msra.mxu0 %v783
    %1443 = vmatprep.subr.mxu0 %v788
    %1444 = vmatpush1.msra.mxu0 %v787
    %1445 = vmatprep.subr.mxu0 %v792
    %1446 = vmatpush1.msra.mxu0 %v791
    %1447 = vmatprep.subr.mxu0 %v796
    %1448 = vmatpush1.msra.mxu0 %v795
    %1449 = vmatprep.subr.mxu0 %v800
    %1450 = vmatpush1.msra.mxu0 %v799
    %1451 = vmatprep.subr.mxu0 %v804
    %1452 = vmatpush1.msra.mxu0 %v803
    %1453 = vmatprep.subr.mxu0 %v808
    %1454 = vmatpush1.msra.mxu0 %v807
    %1455 = vmatprep.subr.mxu0 %v812
    %1456 = vmatpush1.msra.mxu0 %v811
    %1457 = vmatprep.subr.mxu0 %v816
    %1458 = vmatpush1.msra.mxu0 %v815
    %1459 = vmatprep.subr.mxu0 %v820
    %1460 = vmatpush1.msra.mxu0 %v819
    %1461 = vmatprep.subr.mxu0 %v824
    %1462 = vmatpush1.msra.mxu0 %v823
    %1463 = vmatprep.subr.mxu0 %v828
    %1464 = vmatpush1.msra.mxu0 %v827
    %1465 = vmatprep.subr.mxu0 %v832
    %1466 = vmatpush1.msra.mxu0 %v831
    %1467 = vmatprep.subr.mxu0 %v836
    %1468 = vmatpush1.msra.mxu0 %v835
    %1469 = vmatprep.subr.mxu0 %v840
    %1470 = vmatpush1.msra.mxu0 %v839
    %1471 = vmatprep.subr.mxu0 0.0
    %1472 = vmatpush1.msra.mxu0 0.0
    %1473 = vmatprep.subr.mxu0 0.0
    %1474 = vmatpush1.msra.mxu0 0.0
    %1475 = vmatprep.subr.mxu0 0.0
    %1476 = vmatpush1.msra.mxu0 0.0
    %1477 = vmatprep.subr.mxu0 0.0
    %1478 = vmatpush1.msra.mxu0 0.0
    %1479 = vmatprep.subr.mxu0 0.0
    %1480 = vmatpush1.msra.mxu0 0.0
    %1481 = vmatprep.subr.mxu0 0.0
    %1482 = vmatpush1.msra.mxu0 0.0
    %1483 = vmatprep.subr.mxu0 0.0
    %1484 = vmatpush1.msra.mxu0 0.0
    %1485 = vmatprep.subr.mxu0 0.0
    %1486 = vmatpush1.msra.mxu0 0.0
    %1487 = vmatprep.subr.mxu0 0.0
    %1488 = vmatpush1.msra.mxu0 0.0
    %1489 = vmatprep.subr.mxu0 0.0
    %1490 = vmatpush1.msra.mxu0 0.0
    %1491 = vmatprep.subr.mxu0 0.0
    %1492 = vmatpush1.msra.mxu0 0.0
    %1493 = vmatprep.subr.mxu0 0.0
    %1494 = vmatpush1.msra.mxu0 0.0
    %1495 = vmatprep.subr.mxu0 0.0
    %1496 = vmatpush1.msra.mxu0 0.0
    %1497 = vmatprep.subr.mxu0 0.0
    %1498 = vmatpush1.msra.mxu0 0.0
    %1499 = vmatprep.subr.mxu0 0.0
    %1500 = vmatpush1.msra.mxu0 0.0
    %1501 = vmatprep.subr.mxu0 0.0
    %1502 = vmatpush1.msra.mxu0 0.0
    %1503 = vmatprep.mubr.f32.mxu0 0.0
    %1504 = vmatmul.mubr.f32.gmra.mrb[0].mxu0 %v1278
    %v1505 = vpop.f32.mrb[0].mxu0
    %v1506 = vadd.f32 0.0, %v1505
    %v1507 = vpop.f32.mrb[0].mxu0
    %v1508 = vadd.f32 0.0, %v1507
    %1509 = vmatprep.mubr.f32.mxu0 0.0
    %1510 = vmatmul.mubr.f32.gmra.mrb[0].mxu0 %v1279
    %v1511 = vpop.f32.mrb[0].mxu0
    %v1512 = vadd.f32 0.0, %v1511
    %v1513 = vpop.f32.mrb[0].mxu0
    %v1514 = vadd.f32 0.0, %v1513
    %1515 = vdwg.mxu0
    %1516 = vmatprep.subr.mxu0 %v782
    %1517 = vmatpush1.msra.mxu0 %v781
    %1518 = vmatprep.subr.mxu0 %v786
    %1519 = vmatpush1.msra.mxu0 %v785
    %1520 = vmatprep.subr.mxu0 %v790
    %1521 = vmatpush1.msra.mxu0 %v789
    %1522 = vmatprep.subr.mxu0 %v794
    %1523 = vmatpush1.msra.mxu0 %v793
    %1524 = vmatprep.subr.mxu0 %v798
    %1525 = vmatpush1.msra.mxu0 %v797
    %1526 = vmatprep.subr.mxu0 %v802
    %1527 = vmatpush1.msra.mxu0 %v801
    %1528 = vmatprep.subr.mxu0 %v806
    %1529 = vmatpush1.msra.mxu0 %v805
    %1530 = vmatprep.subr.mxu0 %v810
    %1531 = vmatpush1.msra.mxu0 %v809
    %1532 = vmatprep.subr.mxu0 %v814
    %1533 = vmatpush1.msra.mxu0 %v813
    %1534 = vmatprep.subr.mxu0 %v818
    %1535 = vmatpush1.msra.mxu0 %v817
    %1536 = vmatprep.subr.mxu0 %v822
    %1537 = vmatpush1.msra.mxu0 %v821
    %1538 = vmatprep.subr.mxu0 %v826
    %1539 = vmatpush1.msra.mxu0 %v825
    %1540 = vmatprep.subr.mxu0 %v830
    %1541 = vmatpush1.msra.mxu0 %v829
    %1542 = vmatprep.subr.mxu0 %v834
    %1543 = vmatpush1.msra.mxu0 %v833
    %1544 = vmatprep.subr.mxu0 %v838
    %1545 = vmatpush1.msra.mxu0 %v837
    %1546 = vmatprep.subr.mxu0 %v842
    %1547 = vmatpush1.msra.mxu0 %v841
    %1548 = vmatprep.subr.mxu0 0.0
    %1549 = vmatpush1.msra.mxu0 0.0
    %1550 = vmatprep.subr.mxu0 0.0
    %1551 = vmatpush1.msra.mxu0 0.0
    %1552 = vmatprep.subr.mxu0 0.0
    %1553 = vmatpush1.msra.mxu0 0.0
    %1554 = vmatprep.subr.mxu0 0.0
    %1555 = vmatpush1.msra.mxu0 0.0
    %1556 = vmatprep.subr.mxu0 0.0
    %1557 = vmatpush1.msra.mxu0 0.0
    %1558 = vmatprep.subr.mxu0 0.0
    %1559 = vmatpush1.msra.mxu0 0.0
    %1560 = vmatprep.subr.mxu0 0.0
    %1561 = vmatpush1.msra.mxu0 0.0
    %1562 = vmatprep.subr.mxu0 0.0
    %1563 = vmatpush1.msra.mxu0 0.0
    %1564 = vmatprep.subr.mxu0 0.0
    %1565 = vmatpush1.msra.mxu0 0.0
    %1566 = vmatprep.subr.mxu0 0.0
    %1567 = vmatpush1.msra.mxu0 0.0
    %1568 = vmatprep.subr.mxu0 0.0
    %1569 = vmatpush1.msra.mxu0 0.0
    %1570 = vmatprep.subr.mxu0 0.0
    %1571 = vmatpush1.msra.mxu0 0.0
    %1572 = vmatprep.subr.mxu0 0.0
    %1573 = vmatpush1.msra.mxu0 0.0
    %1574 = vmatprep.subr.mxu0 0.0
    %1575 = vmatpush1.msra.mxu0 0.0
    %1576 = vmatprep.subr.mxu0 0.0
    %1577 = vmatpush1.msra.mxu0 0.0
    %1578 = vmatprep.subr.mxu0 0.0
    %1579 = vmatpush1.msra.mxu0 0.0
    %1580 = vmatprep.mubr.f32.mxu0 0.0
    %1581 = vmatmul.mubr.f32.gmra.mrb[0].mxu0 %v1278
    %v1582 = vpop.f32.mrb[0].mxu0
    %v1583 = vadd.f32 0.0, %v1582
    %v1584 = vpop.f32.mrb[0].mxu0
    %v1585 = vadd.f32 0.0, %v1584
    %1586 = vmatprep.mubr.f32.mxu0 0.0
    %1587 = vmatmul.mubr.f32.gmra.mrb[0].mxu0 %v1279
    %v1588 = vpop.f32.mrb[0].mxu0
    %v1589 = vadd.f32 0.0, %v1588
    %v1590 = vpop.f32.mrb[0].mxu0
    %v1591 = vadd.f32 0.0, %v1590
    %1592 = vdwg.mxu0
    %s1593 = scalar_lea.vmem [#allocation2], 128
    %v1594 = vld [vmem:[%s1593] sm:$0xff]
    %v1595 = vld [vmem:[%s1593 + $0x8] sm:$0xff]
    %v1596 = vld [vmem:[%s1593 + $0x10] sm:$0xff]
    %v1597 = vld [vmem:[%s1593 + $0x18] sm:$0xff]
    %v1598 = vld [vmem:[%s1593 + $0x40] sm:$0xff]
    %v1599 = vld [vmem:[%s1593 + $0x48] sm:$0xff]
    %v1600 = vld [vmem:[%s1593 + $0x50] sm:$0xff]
    %v1601 = vld [vmem:[%s1593 + $0x58] sm:$0xff]
    %v1602 = vadd.f32 %v1594, %v1352
    %v1603 = vadd.f32 %v1595, %v1354
    %v1604 = vadd.f32 %v1596, %v1429
    %v1605 = vadd.f32 %v1597, %v1431
    %v1606 = vadd.f32 %v1598, %v1358
    %v1607 = vadd.f32 %v1599, %v1360
    %v1608 = vadd.f32 %v1600, %v1435
    %v1609 = vadd.f32 %v1601, %v1437
    %v1610 = vxor.u32 %v1602, 2147483648
    %v1611 = vxor.u32 %v1606, 2147483648
    %v1612 = vmul.f32 %v1610, 1.442695
    %v1613 = vpow.pop %v1612
    %v1614 = vmul.f32 %v1611, 1.442695
    %v1615 = vpow.pop %v1614
    %v1616 = vadd.f32 %v1613, 1.0
    %v1617 = vadd.f32 %v1615, 1.0
    %v1618 = vrcp.pop %v1616
    %v1619 = vmul.f32 1.0, %v1618
    %v1620 = vrcp.pop %v1617
    %v1621 = vmul.f32 1.0, %v1620
    %v1622 = vxor.u32 %v1603, 2147483648
    %v1623 = vxor.u32 %v1607, 2147483648
    %v1624 = vmul.f32 %v1622, 1.442695
    %v1625 = vpow.pop %v1624
    %v1626 = vmul.f32 %v1623, 1.442695
    %v1627 = vpow.pop %v1626
    %v1628 = vadd.f32 %v1625, 1.0
    %v1629 = vadd.f32 %v1627, 1.0
    %v1630 = vrcp.pop %v1628
    %v1631 = vmul.f32 1.0, %v1630
    %v1632 = vrcp.pop %v1629
    %v1633 = vmul.f32 1.0, %v1632
    %v1634 = vtanh.pop %v1604
    %v1635 = vtanh.pop %v1608
    %v1636 = vxor.u32 %v1605, 2147483648
    %v1637 = vxor.u32 %v1609, 2147483648
    %v1638 = vmul.f32 %v1636, 1.442695
    %v1639 = vpow.pop %v1638
    %v1640 = vmul.f32 %v1637, 1.442695
    %v1641 = vpow.pop %v1640
    %v1642 = vadd.f32 %v1639, 1.0
    %v1643 = vadd.f32 %v1641, 1.0
    %v1644 = vrcp.pop %v1642
    %v1645 = vmul.f32 1.0, %v1644
    %v1646 = vrcp.pop %v1643
    %v1647 = vmul.f32 1.0, %v1646
    %v1648 = vmul.f32 %v1631, %v1209
    %v1649 = vmul.f32 %v1633, %v1210
    %v1650 = vmul.f32 %v1619, %v1634
    %v1651 = vmul.f32 %v1621, %v1635
    %v1652 = vadd.f32 %v1648, %v1650
    %v1653 = vadd.f32 %v1649, %v1651
    %v1654 = vtanh.pop %v1652
    %v1655 = vtanh.pop %v1653
    %v1656 = vmul.f32 %v1645, %v1654
    %v1657 = vmul.f32 %v1647, %v1655
    %s1658 = scalar_lea.vmem [#allocation2], 256
    %v1659 = vld [vmem:[%s1658 + $0x20] sm:$0xff]
    %v1660 = vld [vmem:[%s1658 + $0x28] sm:$0xff]
    %v1661 = vld [vmem:[%s1658 + $0x30] sm:$0xff]
    %v1662 = vld [vmem:[%s1658 + $0x38] sm:$0xff]
    %v1663 = vld [vmem:[%s1658 + $0x60] sm:$0xff]
    %v1664 = vld [vmem:[%s1658 + $0x68] sm:$0xff]
    %v1665 = vld [vmem:[%s1658 + $0x70] sm:$0xff]
    %v1666 = vld [vmem:[%s1658 + $0x78] sm:$0xff]
    %v1667 = vadd.f32 %v1659, %v1506
    %v1668 = vadd.f32 %v1660, %v1508
    %v1669 = vadd.f32 %v1661, %v1583
    %v1670 = vadd.f32 %v1662, %v1585
    %v1671 = vadd.f32 %v1663, %v1512
    %v1672 = vadd.f32 %v1664, %v1514
    %v1673 = vadd.f32 %v1665, %v1589
    %v1674 = vadd.f32 %v1666, %v1591
    %v1675 = vxor.u32 %v1667, 2147483648
    %v1676 = vxor.u32 %v1671, 2147483648
    %v1677 = vmul.f32 %v1675, 1.442695
    %v1678 = vpow.pop %v1677
    %v1679 = vmul.f32 %v1676, 1.442695
    %v1680 = vpow.pop %v1679
    %v1681 = vadd.f32 %v1678, 1.0
    %v1682 = vadd.f32 %v1680, 1.0
    %v1683 = vrcp.pop %v1681
    %v1684 = vmul.f32 1.0, %v1683
    %v1685 = vrcp.pop %v1682
    %v1686 = vmul.f32 1.0, %v1685
    %v1687 = vxor.u32 %v1668, 2147483648
    %v1688 = vxor.u32 %v1672, 2147483648
    %v1689 = vmul.f32 %v1687, 1.442695
    %v1690 = vpow.pop %v1689
    %v1691 = vmul.f32 %v1688, 1.442695
    %v1692 = vpow.pop %v1691
    %v1693 = vadd.f32 %v1690, 1.0
    %v1694 = vadd.f32 %v1692, 1.0
    %v1695 = vrcp.pop %v1693
    %v1696 = vmul.f32 1.0, %v1695
    %v1697 = vrcp.pop %v1694
    %v1698 = vmul.f32 1.0, %v1697
    %v1699 = vtanh.pop %v1669
    %v1700 = vtanh.pop %v1673
    %v1701 = vxor.u32 %v1670, 2147483648
    %v1702 = vxor.u32 %v1674, 2147483648
    %v1703 = vmul.f32 %v1701, 1.442695
    %v1704 = vpow.pop %v1703
    %v1705 = vmul.f32 %v1702, 1.442695
    %v1706 = vpow.pop %v1705
    %v1707 = vadd.f32 %v1704, 1.0
    %v1708 = vadd.f32 %v1706, 1.0
    %v1709 = vrcp.pop %v1707
    %v1710 = vmul.f32 1.0, %v1709
    %v1711 = vrcp.pop %v1708
    %v1712 = vmul.f32 1.0, %v1711
    %v1713 = vmul.f32 %v1696, %v1274
    %v1714 = vmul.f32 %v1698, %v1275
    %v1715 = vmul.f32 %v1684, %v1699
    %v1716 = vmul.f32 %v1686, %v1700
    %v1717 = vadd.f32 %v1713, %v1715
    %v1718 = vadd.f32 %v1714, %v1716
    %v1719 = vtanh.pop %v1717
    %v1720 = vtanh.pop %v1718
    %v1721 = vmul.f32 %v1710, %v1719
    %v1722 = vmul.f32 %v1712, %v1720
    %s1723 = scalar_lea.vmem [#allocation3], 32
    %1724 = vst [vmem:[%s1723] sm:$0xff] %v1656
    %1725 = vst [vmem:[%s1723 + $0x10] sm:$0xff] %v1657
    %s1726 = scalar_lea.vmem [#allocation3], 64
    %1727 = vst [vmem:[%s1726 + $0x8] sm:$0xff] %v1721
    %1728 = vst [vmem:[%s1726 + $0x18] sm:$0xff] %v1722
    %1729 = vmatprep.subr.mxu0 %v716
    %1730 = vmatpush1.msra.mxu0 %v715
    %1731 = vmatprep.subr.mxu0 %v720
    %1732 = vmatpush1.msra.mxu0 %v719
    %1733 = vmatprep.subr.mxu0 %v724
    %1734 = vmatpush1.msra.mxu0 %v723
    %1735 = vmatprep.subr.mxu0 %v728
    %1736 = vmatpush1.msra.mxu0 %v727
    %1737 = vmatprep.subr.mxu0 %v732
    %1738 = vmatpush1.msra.mxu0 %v731
    %1739 = vmatprep.subr.mxu0 %v736
    %1740 = vmatpush1.msra.mxu0 %v735
    %1741 = vmatprep.subr.mxu0 %v740
    %1742 = vmatpush1.msra.mxu0 %v739
    %1743 = vmatprep.subr.mxu0 %v744
    %1744 = vmatpush1.msra.mxu0 %v743
    %1745 = vmatprep.subr.mxu0 %v748
    %1746 = vmatpush1.msra.mxu0 %v747
    %1747 = vmatprep.subr.mxu0 %v752
    %1748 = vmatpush1.msra.mxu0 %v751
    %1749 = vmatprep.subr.mxu0 %v756
    %1750 = vmatpush1.msra.mxu0 %v755
    %1751 = vmatprep.subr.mxu0 %v760
    %1752 = vmatpush1.msra.mxu0 %v759
    %1753 = vmatprep.subr.mxu0 %v764
    %1754 = vmatpush1.msra.mxu0 %v763
    %1755 = vmatprep.subr.mxu0 %v768
    %1756 = vmatpush1.msra.mxu0 %v767
    %1757 = vmatprep.subr.mxu0 %v772
    %1758 = vmatpush1.msra.mxu0 %v771
    %1759 = vmatprep.subr.mxu0 %v776
    %1760 = vmatpush1.msra.mxu0 %v775
    %1761 = vmatprep.subr.mxu0 0.0
    %1762 = vmatpush1.msra.mxu0 0.0
    %1763 = vmatprep.subr.mxu0 0.0
    %1764 = vmatpush1.msra.mxu0 0.0
    %1765 = vmatprep.subr.mxu0 0.0
    %1766 = vmatpush1.msra.mxu0 0.0
    %1767 = vmatprep.subr.mxu0 0.0
    %1768 = vmatpush1.msra.mxu0 0.0
    %1769 = vmatprep.subr.mxu0 0.0
    %1770 = vmatpush1.msra.mxu0 0.0
    %1771 = vmatprep.subr.mxu0 0.0
    %1772 = vmatpush1.msra.mxu0 0.0
    %1773 = vmatprep.subr.mxu0 0.0
    %1774 = vmatpush1.msra.mxu0 0.0
    %1775 = vmatprep.subr.mxu0 0.0
    %1776 = vmatpush1.msra.mxu0 0.0
    %1777 = vmatprep.subr.mxu0 0.0
    %1778 = vmatpush1.msra.mxu0 0.0
    %1779 = vmatprep.subr.mxu0 0.0
    %1780 = vmatpush1.msra.mxu0 0.0
    %1781 = vmatprep.subr.mxu0 0.0
    %1782 = vmatpush1.msra.mxu0 0.0
    %1783 = vmatprep.subr.mxu0 0.0
    %1784 = vmatpush1.msra.mxu0 0.0
    %1785 = vmatprep.subr.mxu0 0.0
    %1786 = vmatpush1.msra.mxu0 0.0
    %1787 = vmatprep.subr.mxu0 0.0
    %1788 = vmatpush1.msra.mxu0 0.0
    %1789 = vmatprep.subr.mxu0 0.0
    %1790 = vmatpush1.msra.mxu0 0.0
    %1791 = vmatprep.subr.mxu0 0.0
    %1792 = vmatpush1.msra.mxu0 0.0
    %1793 = vmatprep.mubr.f32.mxu0 0.0
    %1794 = vmatmul.mubr.f32.gmra.mrb[0].mxu0 %v1656
    %v1795 = vpop.f32.mrb[0].mxu0
    %v1796 = vadd.f32 0.0, %v1795
    %v1797 = vpop.f32.mrb[0].mxu0
    %v1798 = vadd.f32 0.0, %v1797
    %1799 = vmatprep.mubr.f32.mxu0 0.0
    %1800 = vmatmul.mubr.f32.gmra.mrb[0].mxu0 %v1657
    %v1801 = vpop.f32.mrb[0].mxu0
    %v1802 = vadd.f32 0.0, %v1801
    %v1803 = vpop.f32.mrb[0].mxu0
    %v1804 = vadd.f32 0.0, %v1803
    %1805 = vdwg.mxu0
    %1806 = vmatprep.subr.mxu0 %v718
    %1807 = vmatpush1.msra.mxu0 %v717
    %1808 = vmatprep.subr.mxu0 %v722
    %1809 = vmatpush1.msra.mxu0 %v721
    %1810 = vmatprep.subr.mxu0 %v726
    %1811 = vmatpush1.msra.mxu0 %v725
    %1812 = vmatprep.subr.mxu0 %v730
    %1813 = vmatpush1.msra.mxu0 %v729
    %1814 = vmatprep.subr.mxu0 %v734
    %1815 = vmatpush1.msra.mxu0 %v733
    %1816 = vmatprep.subr.mxu0 %v738
    %1817 = vmatpush1.msra.mxu0 %v737
    %1818 = vmatprep.subr.mxu0 %v742
    %1819 = vmatpush1.msra.mxu0 %v741
    %1820 = vmatprep.subr.mxu0 %v746
    %1821 = vmatpush1.msra.mxu0 %v745
    %1822 = vmatprep.subr.mxu0 %v750
    %1823 = vmatpush1.msra.mxu0 %v749
    %1824 = vmatprep.subr.mxu0 %v754
    %1825 = vmatpush1.msra.mxu0 %v753
    %1826 = vmatprep.subr.mxu0 %v758
    %1827 = vmatpush1.msra.mxu0 %v757
    %1828 = vmatprep.subr.mxu0 %v762
    %1829 = vmatpush1.msra.mxu0 %v761
    %1830 = vmatprep.subr.mxu0 %v766
    %1831 = vmatpush1.msra.mxu0 %v765
    %1832 = vmatprep.subr.mxu0 %v770
    %1833 = vmatpush1.msra.mxu0 %v769
    %1834 = vmatprep.subr.mxu0 %v774
    %1835 = vmatpush1.msra.mxu0 %v773
    %1836 = vmatprep.subr.mxu0 %v778
    %1837 = vmatpush1.msra.mxu0 %v777
    %1838 = vmatprep.subr.mxu0 0.0
    %1839 = vmatpush1.msra.mxu0 0.0
    %1840 = vmatprep.subr.mxu0 0.0
    %1841 = vmatpush1.msra.mxu0 0.0
    %1842 = vmatprep.subr.mxu0 0.0
    %1843 = vmatpush1.msra.mxu0 0.0
    %1844 = vmatprep.subr.mxu0 0.0
    %1845 = vmatpush1.msra.mxu0 0.0
    %1846 = vmatprep.subr.mxu0 0.0
    %1847 = vmatpush1.msra.mxu0 0.0
    %1848 = vmatprep.subr.mxu0 0.0
    %1849 = vmatpush1.msra.mxu0 0.0
    %1850 = vmatprep.subr.mxu0 0.0
    %1851 = vmatpush1.msra.mxu0 0.0
    %1852 = vmatprep.subr.mxu0 0.0
    %1853 = vmatpush1.msra.mxu0 0.0
    %1854 = vmatprep.subr.mxu0 0.0
    %1855 = vmatpush1.msra.mxu0 0.0
    %1856 = vmatprep.subr.mxu0 0.0
    %1857 = vmatpush1.msra.mxu0 0.0
    %1858 = vmatprep.subr.mxu0 0.0
    %1859 = vmatpush1.msra.mxu0 0.0
    %1860 = vmatprep.subr.mxu0 0.0
    %1861 = vmatpush1.msra.mxu0 0.0
    %1862 = vmatprep.subr.mxu0 0.0
    %1863 = vmatpush1.msra.mxu0 0.0
    %1864 = vmatprep.subr.mxu0 0.0
    %1865 = vmatpush1.msra.mxu0 0.0
    %1866 = vmatprep.subr.mxu0 0.0
    %1867 = vmatpush1.msra.mxu0 0.0
    %1868 = vmatprep.subr.mxu0 0.0
    %1869 = vmatpush1.msra.mxu0 0.0
    %1870 = vmatprep.mubr.f32.mxu0 0.0
    %1871 = vmatmul.mubr.f32.gmra.mrb[0].mxu0 %v1656
    %v1872 = vpop.f32.mrb[0].mxu0
    %v1873 = vadd.f32 0.0, %v1872
    %v1874 = vpop.f32.mrb[0].mxu0
    %v1875 = vadd.f32 0.0, %v1874
    %1876 = vmatprep.mubr.f32.mxu0 0.0
    %1877 = vmatmul.mubr.f32.gmra.mrb[0].mxu0 %v1657
    %v1878 = vpop.f32.mrb[0].mxu0
    %v1879 = vadd.f32 0.0, %v1878
    %v1880 = vpop.f32.mrb[0].mxu0
    %v1881 = vadd.f32 0.0, %v1880
    %1882 = vdwg.mxu0
    %1883 = vmatprep.subr.mxu0 %v780
    %1884 = vmatpush1.msra.mxu0 %v779
    %1885 = vmatprep.subr.mxu0 %v784
    %1886 = vmatpush1.msra.mxu0 %v783
    %1887 = vmatprep.subr.mxu0 %v788
    %1888 = vmatpush1.msra.mxu0 %v787
    %1889 = vmatprep.subr.mxu0 %v792
    %1890 = vmatpush1.msra.mxu0 %v791
    %1891 = vmatprep.subr.mxu0 %v796
    %1892 = vmatpush1.msra.mxu0 %v795
    %1893 = vmatprep.subr.mxu0 %v800
    %1894 = vmatpush1.msra.mxu0 %v799
    %1895 = vmatprep.subr.mxu0 %v804
    %1896 = vmatpush1.msra.mxu0 %v803
    %1897 = vmatprep.subr.mxu0 %v808
    %1898 = vmatpush1.msra.mxu0 %v807
    %1899 = vmatprep.subr.mxu0 %v812
    %1900 = vmatpush1.msra.mxu0 %v811
    %1901 = vmatprep.subr.mxu0 %v816
    %1902 = vmatpush1.msra.mxu0 %v815
    %1903 = vmatprep.subr.mxu0 %v820
    %1904 = vmatpush1.msra.mxu0 %v819
    %1905 = vmatprep.subr.mxu0 %v824
    %1906 = vmatpush1.msra.mxu0 %v823
    %1907 = vmatprep.subr.mxu0 %v828
    %1908 = vmatpush1.msra.mxu0 %v827
    %1909 = vmatprep.subr.mxu0 %v832
    %1910 = vmatpush1.msra.mxu0 %v831
    %1911 = vmatprep.subr.mxu0 %v836
    %1912 = vmatpush1.msra.mxu0 %v835
    %1913 = vmatprep.subr.mxu0 %v840
    %1914 = vmatpush1.msra.mxu0 %v839
    %1915 = vmatprep.subr.mxu0 0.0
    %1916 = vmatpush1.msra.mxu0 0.0
    %1917 = vmatprep.subr.mxu0 0.0
    %1918 = vmatpush1.msra.mxu0 0.0
    %1919 = vmatprep.subr.mxu0 0.0
    %1920 = vmatpush1.msra.mxu0 0.0
    %1921 = vmatprep.subr.mxu0 0.0
    %1922 = vmatpush1.msra.mxu0 0.0
    %1923 = vmatprep.subr.mxu0 0.0
    %1924 = vmatpush1.msra.mxu0 0.0
    %1925 = vmatprep.subr.mxu0 0.0
    %1926 = vmatpush1.msra.mxu0 0.0
    %1927 = vmatprep.subr.mxu0 0.0
    %1928 = vmatpush1.msra.mxu0 0.0
    %1929 = vmatprep.subr.mxu0 0.0
    %1930 = vmatpush1.msra.mxu0 0.0
    %1931 = vmatprep.subr.mxu0 0.0
    %1932 = vmatpush1.msra.mxu0 0.0
    %1933 = vmatprep.subr.mxu0 0.0
    %1934 = vmatpush1.msra.mxu0 0.0
    %1935 = vmatprep.subr.mxu0 0.0
    %1936 = vmatpush1.msra.mxu0 0.0
    %1937 = vmatprep.subr.mxu0 0.0
    %1938 = vmatpush1.msra.mxu0 0.0
    %1939 = vmatprep.subr.mxu0 0.0
    %1940 = vmatpush1.msra.mxu0 0.0
    %1941 = vmatprep.subr.mxu0 0.0
    %1942 = vmatpush1.msra.mxu0 0.0
    %1943 = vmatprep.subr.mxu0 0.0
    %1944 = vmatpush1.msra.mxu0 0.0
    %1945 = vmatprep.subr.mxu0 0.0
    %1946 = vmatpush1.msra.mxu0 0.0
    %1947 = vmatprep.mubr.f32.mxu0 0.0
    %1948 = vmatmul.mubr.f32.gmra.mrb[0].mxu0 %v1721
    %v1949 = vpop.f32.mrb[0].mxu0
    %v1950 = vadd.f32 0.0, %v1949
    %v1951 = vpop.f32.mrb[0].mxu0
    %v1952 = vadd.f32 0.0, %v1951
    %1953 = vmatprep.mubr.f32.mxu0 0.0
    %1954 = vmatmul.mubr.f32.gmra.mrb[0].mxu0 %v1722
    %v1955 = vpop.f32.mrb[0].mxu0
    %v1956 = vadd.f32 0.0, %v1955
    %v1957 = vpop.f32.mrb[0].mxu0
    %v1958 = vadd.f32 0.0, %v1957
    %1959 = vdwg.mxu0
    %1960 = vmatprep.subr.mxu0 %v782
    %1961 = vmatpush1.msra.mxu0 %v781
    %1962 = vmatprep.subr.mxu0 %v786
    %1963 = vmatpush1.msra.mxu0 %v785
    %1964 = vmatprep.subr.mxu0 %v790
    %1965 = vmatpush1.msra.mxu0 %v789
    %1966 = vmatprep.subr.mxu0 %v794
    %1967 = vmatpush1.msra.mxu0 %v793
    %1968 = vmatprep.subr.mxu0 %v798
    %1969 = vmatpush1.msra.mxu0 %v797
    %1970 = vmatprep.subr.mxu0 %v802
    %1971 = vmatpush1.msra.mxu0 %v801
    %1972 = vmatprep.subr.mxu0 %v806
    %1973 = vmatpush1.msra.mxu0 %v805
    %1974 = vmatprep.subr.mxu0 %v810
    %1975 = vmatpush1.msra.mxu0 %v809
    %1976 = vmatprep.subr.mxu0 %v814
    %1977 = vmatpush1.msra.mxu0 %v813
    %1978 = vmatprep.subr.mxu0 %v818
    %1979 = vmatpush1.msra.mxu0 %v817
    %1980 = vmatprep.subr.mxu0 %v822
    %1981 = vmatpush1.msra.mxu0 %v821
    %1982 = vmatprep.subr.mxu0 %v826
    %1983 = vmatpush1.msra.mxu0 %v825
    %1984 = vmatprep.subr.mxu0 %v830
    %1985 = vmatpush1.msra.mxu0 %v829
    %1986 = vmatprep.subr.mxu0 %v834
    %1987 = vmatpush1.msra.mxu0 %v833
    %1988 = vmatprep.subr.mxu0 %v838
    %1989 = vmatpush1.msra.mxu0 %v837
    %1990 = vmatprep.subr.mxu0 %v842
    %1991 = vmatpush1.msra.mxu0 %v841
    %1992 = vmatprep.subr.mxu0 0.0
    %1993 = vmatpush1.msra.mxu0 0.0
    %1994 = vmatprep.subr.mxu0 0.0
    %1995 = vmatpush1.msra.mxu0 0.0
    %1996 = vmatprep.subr.mxu0 0.0
    %1997 = vmatpush1.msra.mxu0 0.0
    %1998 = vmatprep.subr.mxu0 0.0
    %1999 = vmatpush1.msra.mxu0 0.0
    %2000 = vmatprep.subr.mxu0 0.0
    %2001 = vmatpush1.msra.mxu0 0.0
    %2002 = vmatprep.subr.mxu0 0.0
    %2003 = vmatpush1.msra.mxu0 0.0
    %2004 = vmatprep.subr.mxu0 0.0
    %2005 = vmatpush1.msra.mxu0 0.0
    %2006 = vmatprep.subr.mxu0 0.0
    %2007 = vmatpush1.msra.mxu0 0.0
    %2008 = vmatprep.subr.mxu0 0.0
    %2009 = vmatpush1.msra.mxu0 0.0
    %2010 = vmatprep.subr.mxu0 0.0
    %2011 = vmatpush1.msra.mxu0 0.0
    %2012 = vmatprep.subr.mxu0 0.0
    %2013 = vmatpush1.msra.mxu0 0.0
    %2014 = vmatprep.subr.mxu0 0.0
    %2015 = vmatpush1.msra.mxu0 0.0
    %2016 = vmatprep.subr.mxu0 0.0
    %2017 = vmatpush1.msra.mxu0 0.0
    %2018 = vmatprep.subr.mxu0 0.0
    %2019 = vmatpush1.msra.mxu0 0.0
    %2020 = vmatprep.subr.mxu0 0.0
    %2021 = vmatpush1.msra.mxu0 0.0
    %2022 = vmatprep.subr.mxu0 0.0
    %2023 = vmatpush1.msra.mxu0 0.0
    %2024 = vmatprep.mubr.f32.mxu0 0.0
    %2025 = vmatmul.mubr.f32.gmra.mrb[0].mxu0 %v1721
    %v2026 = vpop.f32.mrb[0].mxu0
    %v2027 = vadd.f32 0.0, %v2026
    %v2028 = vpop.f32.mrb[0].mxu0
    %v2029 = vadd.f32 0.0, %v2028
    %2030 = vmatprep.mubr.f32.mxu0 0.0
    %2031 = vmatmul.mubr.f32.gmra.mrb[0].mxu0 %v1722
    %v2032 = vpop.f32.mrb[0].mxu0
    %v2033 = vadd.f32 0.0, %v2032
    %v2034 = vpop.f32.mrb[0].mxu0
    %v2035 = vadd.f32 0.0, %v2034
    %2036 = vdwg.mxu0
    %v2037 = vld [vmem:[%s1658] sm:$0xff]
    %v2038 = vld [vmem:[%s1658 + $0x8] sm:$0xff]
    %v2039 = vld [vmem:[%s1658 + $0x10] sm:$0xff]
    %v2040 = vld [vmem:[%s1658 + $0x18] sm:$0xff]
    %v2041 = vld [vmem:[%s1658 + $0x40] sm:$0xff]
    %v2042 = vld [vmem:[%s1658 + $0x48] sm:$0xff]
    %v2043 = vld [vmem:[%s1658 + $0x50] sm:$0xff]
    %v2044 = vld [vmem:[%s1658 + $0x58] sm:$0xff]
    %v2045 = vadd.f32 %v2037, %v1796
    %v2046 = vadd.f32 %v2038, %v1798
    %v2047 = vadd.f32 %v2039, %v1873
    %v2048 = vadd.f32 %v2040, %v1875
    %v2049 = vadd.f32 %v2041, %v1802
    %v2050 = vadd.f32 %v2042, %v1804
    %v2051 = vadd.f32 %v2043, %v1879
    %v2052 = vadd.f32 %v2044, %v1881
    %v2053 = vxor.u32 %v2045, 2147483648
    %v2054 = vxor.u32 %v2049, 2147483648
    %v2055 = vmul.f32 %v2053, 1.442695
    %v2056 = vpow.pop %v2055
    %v2057 = vmul.f32 %v2054, 1.442695
    %v2058 = vpow.pop %v2057
    %v2059 = vadd.f32 %v2056, 1.0
    %v2060 = vadd.f32 %v2058, 1.0
    %v2061 = vrcp.pop %v2059
    %v2062 = vmul.f32 1.0, %v2061
    %v2063 = vrcp.pop %v2060
    %v2064 = vmul.f32 1.0, %v2063
    %v2065 = vxor.u32 %v2046, 2147483648
    %v2066 = vxor.u32 %v2050, 2147483648
    %v2067 = vmul.f32 %v2065, 1.442695
    %v2068 = vpow.pop %v2067
    %v2069 = vmul.f32 %v2066, 1.442695
    %v2070 = vpow.pop %v2069
    %v2071 = vadd.f32 %v2068, 1.0
    %v2072 = vadd.f32 %v2070, 1.0
    %v2073 = vrcp.pop %v2071
    %v2074 = vmul.f32 1.0, %v2073
    %v2075 = vrcp.pop %v2072
    %v2076 = vmul.f32 1.0, %v2075
    %v2077 = vtanh.pop %v2047
    %v2078 = vtanh.pop %v2051
    %v2079 = vxor.u32 %v2048, 2147483648
    %v2080 = vxor.u32 %v2052, 2147483648
    %v2081 = vmul.f32 %v2079, 1.442695
    %v2082 = vpow.pop %v2081
    %v2083 = vmul.f32 %v2080, 1.442695
    %v2084 = vpow.pop %v2083
    %v2085 = vadd.f32 %v2082, 1.0
    %v2086 = vadd.f32 %v2084, 1.0
    %v2087 = vrcp.pop %v2085
    %v2088 = vmul.f32 1.0, %v2087
    %v2089 = vrcp.pop %v2086
    %v2090 = vmul.f32 1.0, %v2089
    %v2091 = vmul.f32 %v2074, %v1652
    %v2092 = vmul.f32 %v2076, %v1653
    %v2093 = vmul.f32 %v2062, %v2077
    %v2094 = vmul.f32 %v2064, %v2078
    %v2095 = vadd.f32 %v2091, %v2093
    %v2096 = vadd.f32 %v2092, %v2094
    %v2097 = vtanh.pop %v2095
    %v2098 = vtanh.pop %v2096
    %v2099 = vmul.f32 %v2088, %v2097
    %v2100 = vmul.f32 %v2090, %v2098
    %v2101 = vld [vmem:[%s1593 + $0x20] sm:$0xff]
    %v2102 = vld [vmem:[%s1593 + $0x28] sm:$0xff]
    %v2103 = vld [vmem:[%s1593 + $0x30] sm:$0xff]
    %v2104 = vld [vmem:[%s1593 + $0x38] sm:$0xff]
    %v2105 = vld [vmem:[%s1593 + $0x60] sm:$0xff]
    %v2106 = vld [vmem:[%s1593 + $0x68] sm:$0xff]
    %v2107 = vld [vmem:[%s1593 + $0x70] sm:$0xff]
    %v2108 = vld [vmem:[%s1593 + $0x78] sm:$0xff]
    %v2109 = vadd.f32 %v2101, %v1950
    %v2110 = vadd.f32 %v2102, %v1952
    %v2111 = vadd.f32 %v2103, %v2027
    %v2112 = vadd.f32 %v2104, %v2029
    %v2113 = vadd.f32 %v2105, %v1956
    %v2114 = vadd.f32 %v2106, %v1958
    %v2115 = vadd.f32 %v2107, %v2033
    %v2116 = vadd.f32 %v2108, %v2035
    %v2117 = vxor.u32 %v2109, 2147483648
    %v2118 = vxor.u32 %v2113, 2147483648
    %v2119 = vmul.f32 %v2117, 1.442695
    %v2120 = vpow.pop %v2119
    %v2121 = vmul.f32 %v2118, 1.442695
    %v2122 = vpow.pop %v2121
    %v2123 = vadd.f32 %v2120, 1.0
    %v2124 = vadd.f32 %v2122, 1.0
    %v2125 = vrcp.pop %v2123
    %v2126 = vmul.f32 1.0, %v2125
    %v2127 = vrcp.pop %v2124
    %v2128 = vmul.f32 1.0, %v2127
    %v2129 = vxor.u32 %v2110, 2147483648
    %v2130 = vxor.u32 %v2114, 2147483648
    %v2131 = vmul.f32 %v2129, 1.442695
    %v2132 = vpow.pop %v2131
    %v2133 = vmul.f32 %v2130, 1.442695
    %v2134 = vpow.pop %v2133
    %v2135 = vadd.f32 %v2132, 1.0
    %v2136 = vadd.f32 %v2134, 1.0
    %v2137 = vrcp.pop %v2135
    %v2138 = vmul.f32 1.0, %v2137
    %v2139 = vrcp.pop %v2136
    %v2140 = vmul.f32 1.0, %v2139
    %v2141 = vtanh.pop %v2111
    %v2142 = vtanh.pop %v2115
    %v2143 = vxor.u32 %v2112, 2147483648
    %v2144 = vxor.u32 %v2116, 2147483648
    %v2145 = vmul.f32 %v2143, 1.442695
    %v2146 = vpow.pop %v2145
    %v2147 = vmul.f32 %v2144, 1.442695
    %v2148 = vpow.pop %v2147
    %v2149 = vadd.f32 %v2146, 1.0
    %v2150 = vadd.f32 %v2148, 1.0
    %v2151 = vrcp.pop %v2149
    %v2152 = vmul.f32 1.0, %v2151
    %v2153 = vrcp.pop %v2150
    %v2154 = vmul.f32 1.0, %v2153
    %v2155 = vmul.f32 %v2138, %v1717
    %v2156 = vmul.f32 %v2140, %v1718
    %v2157 = vmul.f32 %v2126, %v2141
    %v2158 = vmul.f32 %v2128, %v2142
    %v2159 = vadd.f32 %v2155, %v2157
    %v2160 = vadd.f32 %v2156, %v2158
    %v2161 = vtanh.pop %v2159
    %v2162 = vtanh.pop %v2160
    %v2163 = vmul.f32 %v2152, %v2161
    %v2164 = vmul.f32 %v2154, %v2162
    %2165 = vst [vmem:[%s1726] sm:$0xff] %v2099
    %2166 = vst [vmem:[%s1726 + $0x10] sm:$0xff] %v2100
    %2167 = vst [vmem:[%s1723 + $0x8] sm:$0xff] %v2163
    %2168 = vst [vmem:[%s1723 + $0x18] sm:$0xff] %v2164
    %2169 = vmatprep.subr.mxu0 %v716
    %2170 = vmatpush1.msra.mxu0 %v715
    %2171 = vmatprep.subr.mxu0 %v720
    %2172 = vmatpush1.msra.mxu0 %v719
    %2173 = vmatprep.subr.mxu0 %v724
    %2174 = vmatpush1.msra.mxu0 %v723
    %2175 = vmatprep.subr.mxu0 %v728
    %2176 = vmatpush1.msra.mxu0 %v727
    %2177 = vmatprep.subr.mxu0 %v732
    %2178 = vmatpush1.msra.mxu0 %v731
    %2179 = vmatprep.subr.mxu0 %v736
    %2180 = vmatpush1.msra.mxu0 %v735
    %2181 = vmatprep.subr.mxu0 %v740
    %2182 = vmatpush1.msra.mxu0 %v739
    %2183 = vmatprep.subr.mxu0 %v744
    %2184 = vmatpush1.msra.mxu0 %v743
    %2185 = vmatprep.subr.mxu0 %v748
    %2186 = vmatpush1.msra.mxu0 %v747
    %2187 = vmatprep.subr.mxu0 %v752
    %2188 = vmatpush1.msra.mxu0 %v751
    %2189 = vmatprep.subr.mxu0 %v756
    %2190 = vmatpush1.msra.mxu0 %v755
    %2191 = vmatprep.subr.mxu0 %v760
    %2192 = vmatpush1.msra.mxu0 %v759
    %2193 = vmatprep.subr.mxu0 %v764
    %2194 = vmatpush1.msra.mxu0 %v763
    %2195 = vmatprep.subr.mxu0 %v768
    %2196 = vmatpush1.msra.mxu0 %v767
    %2197 = vmatprep.subr.mxu0 %v772
    %2198 = vmatpush1.msra.mxu0 %v771
    %2199 = vmatprep.subr.mxu0 %v776
    %2200 = vmatpush1.msra.mxu0 %v775
    %2201 = vmatprep.subr.mxu0 0.0
    %2202 = vmatpush1.msra.mxu0 0.0
    %2203 = vmatprep.subr.mxu0 0.0
    %2204 = vmatpush1.msra.mxu0 0.0
    %2205 = vmatprep.subr.mxu0 0.0
    %2206 = vmatpush1.msra.mxu0 0.0
    %2207 = vmatprep.subr.mxu0 0.0
    %2208 = vmatpush1.msra.mxu0 0.0
    %2209 = vmatprep.subr.mxu0 0.0
    %2210 = vmatpush1.msra.mxu0 0.0
    %2211 = vmatprep.subr.mxu0 0.0
    %2212 = vmatpush1.msra.mxu0 0.0
    %2213 = vmatprep.subr.mxu0 0.0
    %2214 = vmatpush1.msra.mxu0 0.0
    %2215 = vmatprep.subr.mxu0 0.0
    %2216 = vmatpush1.msra.mxu0 0.0
    %2217 = vmatprep.subr.mxu0 0.0
    %2218 = vmatpush1.msra.mxu0 0.0
    %2219 = vmatprep.subr.mxu0 0.0
    %2220 = vmatpush1.msra.mxu0 0.0
    %2221 = vmatprep.subr.mxu0 0.0
    %2222 = vmatpush1.msra.mxu0 0.0
    %2223 = vmatprep.subr.mxu0 0.0
    %2224 = vmatpush1.msra.mxu0 0.0
    %2225 = vmatprep.subr.mxu0 0.0
    %2226 = vmatpush1.msra.mxu0 0.0
    %2227 = vmatprep.subr.mxu0 0.0
    %2228 = vmatpush1.msra.mxu0 0.0
    %2229 = vmatprep.subr.mxu0 0.0
    %2230 = vmatpush1.msra.mxu0 0.0
    %2231 = vmatprep.subr.mxu0 0.0
    %2232 = vmatpush1.msra.mxu0 0.0
    %2233 = vmatprep.mubr.f32.mxu0 0.0
    %2234 = vmatmul.mubr.f32.gmra.mrb[0].mxu0 %v2099
    %v2235 = vpop.f32.mrb[0].mxu0
    %v2236 = vadd.f32 0.0, %v2235
    %v2237 = vpop.f32.mrb[0].mxu0
    %v2238 = vadd.f32 0.0, %v2237
    %2239 = vmatprep.mubr.f32.mxu0 0.0
    %2240 = vmatmul.mubr.f32.gmra.mrb[0].mxu0 %v2100
    %v2241 = vpop.f32.mrb[0].mxu0
    %v2242 = vadd.f32 0.0, %v2241
    %v2243 = vpop.f32.mrb[0].mxu0
    %v2244 = vadd.f32 0.0, %v2243
    %2245 = vdwg.mxu0
    %2246 = vmatprep.subr.mxu0 %v718
    %2247 = vmatpush1.msra.mxu0 %v717
    %2248 = vmatprep.subr.mxu0 %v722
    %2249 = vmatpush1.msra.mxu0 %v721
    %2250 = vmatprep.subr.mxu0 %v726
    %2251 = vmatpush1.msra.mxu0 %v725
    %2252 = vmatprep.subr.mxu0 %v730
    %2253 = vmatpush1.msra.mxu0 %v729
    %2254 = vmatprep.subr.mxu0 %v734
    %2255 = vmatpush1.msra.mxu0 %v733
    %2256 = vmatprep.subr.mxu0 %v738
    %2257 = vmatpush1.msra.mxu0 %v737
    %2258 = vmatprep.subr.mxu0 %v742
    %2259 = vmatpush1.msra.mxu0 %v741
    %2260 = vmatprep.subr.mxu0 %v746
    %2261 = vmatpush1.msra.mxu0 %v745
    %2262 = vmatprep.subr.mxu0 %v750
    %2263 = vmatpush1.msra.mxu0 %v749
    %2264 = vmatprep.subr.mxu0 %v754
    %2265 = vmatpush1.msra.mxu0 %v753
    %2266 = vmatprep.subr.mxu0 %v758
    %2267 = vmatpush1.msra.mxu0 %v757
    %2268 = vmatprep.subr.mxu0 %v762
    %2269 = vmatpush1.msra.mxu0 %v761
    %2270 = vmatprep.subr.mxu0 %v766
    %2271 = vmatpush1.msra.mxu0 %v765
    %2272 = vmatprep.subr.mxu0 %v770
    %2273 = vmatpush1.msra.mxu0 %v769
    %2274 = vmatprep.subr.mxu0 %v774
    %2275 = vmatpush1.msra.mxu0 %v773
    %2276 = vmatprep.subr.mxu0 %v778
    %2277 = vmatpush1.msra.mxu0 %v777
    %2278 = vmatprep.subr.mxu0 0.0
    %2279 = vmatpush1.msra.mxu0 0.0
    %2280 = vmatprep.subr.mxu0 0.0
    %2281 = vmatpush1.msra.mxu0 0.0
    %2282 = vmatprep.subr.mxu0 0.0
    %2283 = vmatpush1.msra.mxu0 0.0
    %2284 = vmatprep.subr.mxu0 0.0
    %2285 = vmatpush1.msra.mxu0 0.0
    %2286 = vmatprep.subr.mxu0 0.0
    %2287 = vmatpush1.msra.mxu0 0.0
    %2288 = vmatprep.subr.mxu0 0.0
    %2289 = vmatpush1.msra.mxu0 0.0
    %2290 = vmatprep.subr.mxu0 0.0
    %2291 = vmatpush1.msra.mxu0 0.0
    %2292 = vmatprep.subr.mxu0 0.0
    %2293 = vmatpush1.msra.mxu0 0.0
    %2294 = vmatprep.subr.mxu0 0.0
    %2295 = vmatpush1.msra.mxu0 0.0
    %2296 = vmatprep.subr.mxu0 0.0
    %2297 = vmatpush1.msra.mxu0 0.0
    %2298 = vmatprep.subr.mxu0 0.0
    %2299 = vmatpush1.msra.mxu0 0.0
    %2300 = vmatprep.subr.mxu0 0.0
    %2301 = vmatpush1.msra.mxu0 0.0
    %2302 = vmatprep.subr.mxu0 0.0
    %2303 = vmatpush1.msra.mxu0 0.0
    %2304 = vmatprep.subr.mxu0 0.0
    %2305 = vmatpush1.msra.mxu0 0.0
    %2306 = vmatprep.subr.mxu0 0.0
    %2307 = vmatpush1.msra.mxu0 0.0
    %2308 = vmatprep.subr.mxu0 0.0
    %2309 = vmatpush1.msra.mxu0 0.0
    %2310 = vmatprep.mubr.f32.mxu0 0.0
    %2311 = vmatmul.mubr.f32.gmra.mrb[0].mxu0 %v2099
    %v2312 = vpop.f32.mrb[0].mxu0
    %v2313 = vadd.f32 0.0, %v2312
    %v2314 = vpop.f32.mrb[0].mxu0
    %v2315 = vadd.f32 0.0, %v2314
    %2316 = vmatprep.mubr.f32.mxu0 0.0
    %2317 = vmatmul.mubr.f32.gmra.mrb[0].mxu0 %v2100
    %v2318 = vpop.f32.mrb[0].mxu0
    %v2319 = vadd.f32 0.0, %v2318
    %v2320 = vpop.f32.mrb[0].mxu0
    %v2321 = vadd.f32 0.0, %v2320
    %2322 = vdwg.mxu0
    %2323 = vmatprep.subr.mxu0 %v780
    %2324 = vmatpush1.msra.mxu0 %v779
    %2325 = vmatprep.subr.mxu0 %v784
    %2326 = vmatpush1.msra.mxu0 %v783
    %2327 = vmatprep.subr.mxu0 %v788
    %2328 = vmatpush1.msra.mxu0 %v787
    %2329 = vmatprep.subr.mxu0 %v792
    %2330 = vmatpush1.msra.mxu0 %v791
    %2331 = vmatprep.subr.mxu0 %v796
    %2332 = vmatpush1.msra.mxu0 %v795
    %2333 = vmatprep.subr.mxu0 %v800
    %2334 = vmatpush1.msra.mxu0 %v799
    %2335 = vmatprep.subr.mxu0 %v804
    %2336 = vmatpush1.msra.mxu0 %v803
    %2337 = vmatprep.subr.mxu0 %v808
    %2338 = vmatpush1.msra.mxu0 %v807
    %2339 = vmatprep.subr.mxu0 %v812
    %2340 = vmatpush1.msra.mxu0 %v811
    %2341 = vmatprep.subr.mxu0 %v816
    %2342 = vmatpush1.msra.mxu0 %v815
    %2343 = vmatprep.subr.mxu0 %v820
    %2344 = vmatpush1.msra.mxu0 %v819
    %2345 = vmatprep.subr.mxu0 %v824
    %2346 = vmatpush1.msra.mxu0 %v823
    %2347 = vmatprep.subr.mxu0 %v828
    %2348 = vmatpush1.msra.mxu0 %v827
    %2349 = vmatprep.subr.mxu0 %v832
    %2350 = vmatpush1.msra.mxu0 %v831
    %2351 = vmatprep.subr.mxu0 %v836
    %2352 = vmatpush1.msra.mxu0 %v835
    %2353 = vmatprep.subr.mxu0 %v840
    %2354 = vmatpush1.msra.mxu0 %v839
    %2355 = vmatprep.subr.mxu0 0.0
    %2356 = vmatpush1.msra.mxu0 0.0
    %2357 = vmatprep.subr.mxu0 0.0
    %2358 = vmatpush1.msra.mxu0 0.0
    %2359 = vmatprep.subr.mxu0 0.0
    %2360 = vmatpush1.msra.mxu0 0.0
    %2361 = vmatprep.subr.mxu0 0.0
    %2362 = vmatpush1.msra.mxu0 0.0
    %2363 = vmatprep.subr.mxu0 0.0
    %2364 = vmatpush1.msra.mxu0 0.0
    %2365 = vmatprep.subr.mxu0 0.0
    %2366 = vmatpush1.msra.mxu0 0.0
    %2367 = vmatprep.subr.mxu0 0.0
    %2368 = vmatpush1.msra.mxu0 0.0
    %2369 = vmatprep.subr.mxu0 0.0
    %2370 = vmatpush1.msra.mxu0 0.0
    %2371 = vmatprep.subr.mxu0 0.0
    %2372 = vmatpush1.msra.mxu0 0.0
    %2373 = vmatprep.subr.mxu0 0.0
    %2374 = vmatpush1.msra.mxu0 0.0
    %2375 = vmatprep.subr.mxu0 0.0
    %2376 = vmatpush1.msra.mxu0 0.0
    %2377 = vmatprep.subr.mxu0 0.0
    %2378 = vmatpush1.msra.mxu0 0.0
    %2379 = vmatprep.subr.mxu0 0.0
    %2380 = vmatpush1.msra.mxu0 0.0
    %2381 = vmatprep.subr.mxu0 0.0
    %2382 = vmatpush1.msra.mxu0 0.0
    %2383 = vmatprep.subr.mxu0 0.0
    %2384 = vmatpush1.msra.mxu0 0.0
    %2385 = vmatprep.subr.mxu0 0.0
    %2386 = vmatpush1.msra.mxu0 0.0
    %2387 = vmatprep.mubr.f32.mxu0 0.0
    %2388 = vmatmul.mubr.f32.gmra.mrb[0].mxu0 %v2163
    %v2389 = vpop.f32.mrb[0].mxu0
    %v2390 = vadd.f32 0.0, %v2389
    %v2391 = vpop.f32.mrb[0].mxu0
    %v2392 = vadd.f32 0.0, %v2391
    %2393 = vmatprep.mubr.f32.mxu0 0.0
    %2394 = vmatmul.mubr.f32.gmra.mrb[0].mxu0 %v2164
    %v2395 = vpop.f32.mrb[0].mxu0
    %v2396 = vadd.f32 0.0, %v2395
    %v2397 = vpop.f32.mrb[0].mxu0
    %v2398 = vadd.f32 0.0, %v2397
    %2399 = vdwg.mxu0
    %2400 = vmatprep.subr.mxu0 %v782
    %2401 = vmatpush1.msra.mxu0 %v781
    %2402 = vmatprep.subr.mxu0 %v786
    %2403 = vmatpush1.msra.mxu0 %v785
    %2404 = vmatprep.subr.mxu0 %v790
    %2405 = vmatpush1.msra.mxu0 %v789
    %2406 = vmatprep.subr.mxu0 %v794
    %2407 = vmatpush1.msra.mxu0 %v793
    %2408 = vmatprep.subr.mxu0 %v798
    %2409 = vmatpush1.msra.mxu0 %v797
    %2410 = vmatprep.subr.mxu0 %v802
    %2411 = vmatpush1.msra.mxu0 %v801
    %2412 = vmatprep.subr.mxu0 %v806
    %2413 = vmatpush1.msra.mxu0 %v805
    %2414 = vmatprep.subr.mxu0 %v810
    %2415 = vmatpush1.msra.mxu0 %v809
    %2416 = vmatprep.subr.mxu0 %v814
    %2417 = vmatpush1.msra.mxu0 %v813
    %2418 = vmatprep.subr.mxu0 %v818
    %2419 = vmatpush1.msra.mxu0 %v817
    %2420 = vmatprep.subr.mxu0 %v822
    %2421 = vmatpush1.msra.mxu0 %v821
    %2422 = vmatprep.subr.mxu0 %v826
    %2423 = vmatpush1.msra.mxu0 %v825
    %2424 = vmatprep.subr.mxu0 %v830
    %2425 = vmatpush1.msra.mxu0 %v829
    %2426 = vmatprep.subr.mxu0 %v834
    %2427 = vmatpush1.msra.mxu0 %v833
    %2428 = vmatprep.subr.mxu0 %v838
    %2429 = vmatpush1.msra.mxu0 %v837
    %2430 = vmatprep.subr.mxu0 %v842
    %2431 = vmatpush1.msra.mxu0 %v841
    %2432 = vmatprep.subr.mxu0 0.0
    %2433 = vmatpush1.msra.mxu0 0.0
    %2434 = vmatprep.subr.mxu0 0.0
    %2435 = vmatpush1.msra.mxu0 0.0
    %2436 = vmatprep.subr.mxu0 0.0
    %2437 = vmatpush1.msra.mxu0 0.0
    %2438 = vmatprep.subr.mxu0 0.0
    %2439 = vmatpush1.msra.mxu0 0.0
    %2440 = vmatprep.subr.mxu0 0.0
    %2441 = vmatpush1.msra.mxu0 0.0
    %2442 = vmatprep.subr.mxu0 0.0
    %2443 = vmatpush1.msra.mxu0 0.0
    %2444 = vmatprep.subr.mxu0 0.0
    %2445 = vmatpush1.msra.mxu0 0.0
    %2446 = vmatprep.subr.mxu0 0.0
    %2447 = vmatpush1.msra.mxu0 0.0
    %2448 = vmatprep.subr.mxu0 0.0
    %2449 = vmatpush1.msra.mxu0 0.0
    %2450 = vmatprep.subr.mxu0 0.0
    %2451 = vmatpush1.msra.mxu0 0.0
    %2452 = vmatprep.subr.mxu0 0.0
    %2453 = vmatpush1.msra.mxu0 0.0
    %2454 = vmatprep.subr.mxu0 0.0
    %2455 = vmatpush1.msra.mxu0 0.0
    %2456 = vmatprep.subr.mxu0 0.0
    %2457 = vmatpush1.msra.mxu0 0.0
    %2458 = vmatprep.subr.mxu0 0.0
    %2459 = vmatpush1.msra.mxu0 0.0
    %2460 = vmatprep.subr.mxu0 0.0
    %2461 = vmatpush1.msra.mxu0 0.0
    %2462 = vmatprep.subr.mxu0 0.0
    %2463 = vmatpush1.msra.mxu0 0.0
    %2464 = vmatprep.mubr.f32.mxu0 0.0
    %2465 = vmatmul.mubr.f32.gmra.mrb[0].mxu0 %v2163
    %v2466 = vpop.f32.mrb[0].mxu0
    %v2467 = vadd.f32 0.0, %v2466
    %v2468 = vpop.f32.mrb[0].mxu0
    %v2469 = vadd.f32 0.0, %v2468
    %2470 = vmatprep.mubr.f32.mxu0 0.0
    %2471 = vmatmul.mubr.f32.gmra.mrb[0].mxu0 %v2164
    %v2472 = vpop.f32.mrb[0].mxu0
    %v2473 = vadd.f32 0.0, %v2472
    %v2474 = vpop.f32.mrb[0].mxu0
    %v2475 = vadd.f32 0.0, %v2474
    %2476 = vdwg.mxu0
    %v2477 = vld [vmem:[%s1215] sm:$0xff]
    %v2478 = vld [vmem:[%s1215 + $0x8] sm:$0xff]
    %v2479 = vld [vmem:[%s1215 + $0x10] sm:$0xff]
    %v2480 = vld [vmem:[%s1215 + $0x18] sm:$0xff]
    %v2481 = vld [vmem:[%s1215 + $0x40] sm:$0xff]
    %v2482 = vld [vmem:[%s1215 + $0x48] sm:$0xff]
    %v2483 = vld [vmem:[%s1215 + $0x50] sm:$0xff]
    %v2484 = vld [vmem:[%s1215 + $0x58] sm:$0xff]
    %v2485 = vadd.f32 %v2477, %v2236
    %v2486 = vadd.f32 %v2478, %v2238
    %v2487 = vadd.f32 %v2479, %v2313
    %v2488 = vadd.f32 %v2480, %v2315
    %v2489 = vadd.f32 %v2481, %v2242
    %v2490 = vadd.f32 %v2482, %v2244
    %v2491 = vadd.f32 %v2483, %v2319
    %v2492 = vadd.f32 %v2484, %v2321
    %v2493 = vxor.u32 %v2485, 2147483648
    %v2494 = vxor.u32 %v2489, 2147483648
    %v2495 = vmul.f32 %v2493, 1.442695
    %v2496 = vpow.pop %v2495
    %v2497 = vmul.f32 %v2494, 1.442695
    %v2498 = vpow.pop %v2497
    %v2499 = vadd.f32 %v2496, 1.0
    %v2500 = vadd.f32 %v2498, 1.0
    %v2501 = vrcp.pop %v2499
    %v2502 = vmul.f32 1.0, %v2501
    %v2503 = vrcp.pop %v2500
    %v2504 = vmul.f32 1.0, %v2503
    %v2505 = vxor.u32 %v2486, 2147483648
    %v2506 = vxor.u32 %v2490, 2147483648
    %v2507 = vmul.f32 %v2505, 1.442695
    %v2508 = vpow.pop %v2507
    %v2509 = vmul.f32 %v2506, 1.442695
    %v2510 = vpow.pop %v2509
    %v2511 = vadd.f32 %v2508, 1.0
    %v2512 = vadd.f32 %v2510, 1.0
    %v2513 = vrcp.pop %v2511
    %v2514 = vmul.f32 1.0, %v2513
    %v2515 = vrcp.pop %v2512
    %v2516 = vmul.f32 1.0, %v2515
    %v2517 = vtanh.pop %v2487
    %v2518 = vtanh.pop %v2491
    %v2519 = vxor.u32 %v2488, 2147483648
    %v2520 = vxor.u32 %v2492, 2147483648
    %v2521 = vmul.f32 %v2519, 1.442695
    %v2522 = vpow.pop %v2521
    %v2523 = vmul.f32 %v2520, 1.442695
    %v2524 = vpow.pop %v2523
    %v2525 = vadd.f32 %v2522, 1.0
    %v2526 = vadd.f32 %v2524, 1.0
    %v2527 = vrcp.pop %v2525
    %v2528 = vmul.f32 1.0, %v2527
    %v2529 = vrcp.pop %v2526
    %v2530 = vmul.f32 1.0, %v2529
    %v2531 = vmul.f32 %v2514, %v2095
    %v2532 = vmul.f32 %v2516, %v2096
    %v2533 = vmul.f32 %v2502, %v2517
    %v2534 = vmul.f32 %v2504, %v2518
    %v2535 = vadd.f32 %v2531, %v2533
    %v2536 = vadd.f32 %v2532, %v2534
    %v2537 = vtanh.pop %v2535
    %v2538 = vtanh.pop %v2536
    %v2539 = vmul.f32 %v2528, %v2537
    %v2540 = vmul.f32 %v2530, %v2538
    %v2541 = vld [vmem:[#allocation2 + $0x20] sm:$0xff]
    %v2542 = vld [vmem:[#allocation2 + $0x28] sm:$0xff]
    %v2543 = vld [vmem:[#allocation2 + $0x30] sm:$0xff]
    %v2544 = vld [vmem:[#allocation2 + $0x38] sm:$0xff]
    %v2545 = vld [vmem:[#allocation2 + $0x60] sm:$0xff]
    %v2546 = vld [vmem:[#allocation2 + $0x68] sm:$0xff]
    %v2547 = vld [vmem:[#allocation2 + $0x70] sm:$0xff]
    %v2548 = vld [vmem:[#allocation2 + $0x78] sm:$0xff]
    %v2549 = vadd.f32 %v2541, %v2390
    %v2550 = vadd.f32 %v2542, %v2392
    %v2551 = vadd.f32 %v2543, %v2467
    %v2552 = vadd.f32 %v2544, %v2469
    %v2553 = vadd.f32 %v2545, %v2396
    %v2554 = vadd.f32 %v2546, %v2398
    %v2555 = vadd.f32 %v2547, %v2473
    %v2556 = vadd.f32 %v2548, %v2475
    %v2557 = vxor.u32 %v2549, 2147483648
    %v2558 = vxor.u32 %v2553, 2147483648
    %v2559 = vmul.f32 %v2557, 1.442695
    %v2560 = vpow.pop %v2559
    %v2561 = vmul.f32 %v2558, 1.442695
    %v2562 = vpow.pop %v2561
    %v2563 = vadd.f32 %v2560, 1.0
    %v2564 = vadd.f32 %v2562, 1.0
    %v2565 = vrcp.pop %v2563
    %v2566 = vmul.f32 1.0, %v2565
    %v2567 = vrcp.pop %v2564
    %v2568 = vmul.f32 1.0, %v2567
    %v2569 = vxor.u32 %v2550, 2147483648
    %v2570 = vxor.u32 %v2554, 2147483648
    %v2571 = vmul.f32 %v2569, 1.442695
    %v2572 = vpow.pop %v2571
    %v2573 = vmul.f32 %v2570, 1.442695
    %v2574 = vpow.pop %v2573
    %v2575 = vadd.f32 %v2572, 1.0
    %v2576 = vadd.f32 %v2574, 1.0
    %v2577 = vrcp.pop %v2575
    %v2578 = vmul.f32 1.0, %v2577
    %v2579 = vrcp.pop %v2576
    %v2580 = vmul.f32 1.0, %v2579
    %v2581 = vtanh.pop %v2551
    %v2582 = vtanh.pop %v2555
    %v2583 = vxor.u32 %v2552, 2147483648
    %v2584 = vxor.u32 %v2556, 2147483648
    %v2585 = vmul.f32 %v2583, 1.442695
    %v2586 = vpow.pop %v2585
    %v2587 = vmul.f32 %v2584, 1.442695
    %v2588 = vpow.pop %v2587
    %v2589 = vadd.f32 %v2586, 1.0
    %v2590 = vadd.f32 %v2588, 1.0
    %v2591 = vrcp.pop %v2589
    %v2592 = vmul.f32 1.0, %v2591
    %v2593 = vrcp.pop %v2590
    %v2594 = vmul.f32 1.0, %v2593
    %v2595 = vmul.f32 %v2578, %v2159
    %v2596 = vmul.f32 %v2580, %v2160
    %v2597 = vmul.f32 %v2566, %v2581
    %v2598 = vmul.f32 %v2568, %v2582
    %v2599 = vadd.f32 %v2595, %v2597
    %v2600 = vadd.f32 %v2596, %v2598
    %v2601 = vtanh.pop %v2599
    %v2602 = vtanh.pop %v2600
    %v2603 = vmul.f32 %v2592, %v2601
    %v2604 = vmul.f32 %v2594, %v2602
    %2605 = vst [vmem:[%s1282] sm:$0xff] %v2539
    %2606 = vst [vmem:[%s1282 + $0x10] sm:$0xff] %v2540
    %2607 = vst [vmem:[#allocation3 + $0x8] sm:$0xff] %v2603
    %2608 = vst [vmem:[#allocation3 + $0x18] sm:$0xff] %v2604
    %v2609 = vld [vmem:[#allocation3] sm:$0xff]
    %v2610 = vld [vmem:[#allocation3 + $0x8] sm:$0xff]
    %v2611 = vld [vmem:[#allocation3 + $0x10] sm:$0xff]
    %v2612 = vld [vmem:[#allocation3 + $0x18] sm:$0xff]
    %v2613 = vld [vmem:[#allocation3 + $0x20] sm:$0xff]
    %v2614 = vld [vmem:[#allocation3 + $0x28] sm:$0xff]
    %v2615 = vld [vmem:[#allocation3 + $0x30] sm:$0xff]
    %v2616 = vld [vmem:[#allocation3 + $0x38] sm:$0xff]
    %v2617 = vld [vmem:[#allocation3 + $0x40] sm:$0xff]
    %v2618 = vld [vmem:[#allocation3 + $0x48] sm:$0xff]
    %v2619 = vld [vmem:[#allocation3 + $0x50] sm:$0xff]
    %v2620 = vld [vmem:[#allocation3 + $0x58] sm:$0xff]
    %v2621 = vld [vmem:[#allocation3 + $0x60] sm:$0xff]
    %v2622 = vld [vmem:[#allocation3 + $0x68] sm:$0xff]
    %v2623 = vld [vmem:[#allocation3 + $0x70] sm:$0xff]
    %v2624 = vld [vmem:[#allocation3 + $0x78] sm:$0xff]
    %v2625 = vld [vmem:[%s4] sm:$0x3]
    %v2627 = vlaneseq
    %v2628 = vshrl.u32 %v2627, 7
    %v2629 = vsub.s32 0, %v2628
    %v2630 = vrot.slane %v2625, %v2629
    %v2631 = vlaneseq
    %v2632 = vshrl.u32 %v2631, 7
    %v2633 = vsub.s32 1, %v2632
    %v2634 = vrot.slane %v2625, %v2633
    %v2637 = vmul.f32 %v2609, %v2630
    %v2638 = vmul.f32 %v2610, %v2634
    %v2639 = vmul.f32 %v2611, %v2630
    %v2640 = vmul.f32 %v2612, %v2634
    %v2641 = vmul.f32 %v2613, %v2630
    %v2642 = vmul.f32 %v2614, %v2634
    %v2643 = vmul.f32 %v2615, %v2630
    %v2644 = vmul.f32 %v2616, %v2634
    %v2645 = vmul.f32 %v2617, %v2630
    %v2646 = vmul.f32 %v2618, %v2634
    %v2647 = vmul.f32 %v2619, %v2630
    %v2648 = vmul.f32 %v2620, %v2634
    %v2649 = vmul.f32 %v2621, %v2630
    %v2650 = vmul.f32 %v2622, %v2634
    %v2651 = vmul.f32 %v2623, %v2630
    %v2652 = vmul.f32 %v2624, %v2634
    %v2653 = vadd.f32 %v2637, %v2638
    %2654 = vadd.xlane.f32.xlu0 %v2653
    %v2655 = vpop.xlane.xlu0 %2654
    %v2656 = vadd.f32 %v2639, %v2640
    %2657 = vadd.xlane.f32.xlu0 %v2656
    %v2658 = vpop.xlane.xlu0 %2657
    %v2659 = vadd.f32 %v2641, %v2642
    %2660 = vadd.xlane.f32.xlu0 %v2659
    %v2661 = vpop.xlane.xlu0 %2660
    %v2662 = vadd.f32 %v2643, %v2644
    %2663 = vadd.xlane.f32.xlu0 %v2662
    %v2664 = vpop.xlane.xlu0 %2663
    %v2665 = vadd.f32 %v2645, %v2646
    %2666 = vadd.xlane.f32.xlu0 %v2665
    %v2667 = vpop.xlane.xlu0 %2666
    %v2668 = vadd.f32 %v2647, %v2648
    %2669 = vadd.xlane.f32.xlu0 %v2668
    %v2670 = vpop.xlane.xlu0 %2669
    %v2671 = vadd.f32 %v2649, %v2650
    %2672 = vadd.xlane.f32.xlu0 %v2671
    %v2673 = vpop.xlane.xlu0 %2672
    %v2674 = vadd.f32 %v2651, %v2652
    %2675 = vadd.xlane.f32.xlu0 %v2674
    %v2676 = vpop.xlane.xlu0 %2675
    %v2677 = vmax.f32 %v2655, %v2667
    %v2678 = vmax.f32 %v2661, %v2673
    %v2679 = vmax.f32 %v2677, %v2678
    %v2680 = vmax.f32 %v2658, %v2670
    %v2681 = vmax.f32 %v2664, %v2676
    %v2682 = vmax.f32 %v2680, %v2681
    %v2683 = vsub.f32 %v2655, %v2679
    %v2684 = vsub.f32 %v2658, %v2682
    %v2685 = vsub.f32 %v2661, %v2679
    %v2686 = vsub.f32 %v2664, %v2682
    %v2687 = vsub.f32 %v2667, %v2679
    %v2688 = vsub.f32 %v2670, %v2682
    %v2689 = vsub.f32 %v2673, %v2679
    %v2690 = vsub.f32 %v2676, %v2682
    %v2691 = vmul.f32 %v2683, 1.442695
    %v2692 = vpow.pop %v2691
    %v2693 = vmul.f32 %v2684, 1.442695
    %v2694 = vpow.pop %v2693
    %v2695 = vmul.f32 %v2685, 1.442695
    %v2696 = vpow.pop %v2695
    %v2697 = vmul.f32 %v2686, 1.442695
    %v2698 = vpow.pop %v2697
    %v2699 = vmul.f32 %v2687, 1.442695
    %v2700 = vpow.pop %v2699
    %v2701 = vmul.f32 %v2688, 1.442695
    %v2702 = vpow.pop %v2701
    %v2703 = vmul.f32 %v2689, 1.442695
    %v2704 = vpow.pop %v2703
    %v2705 = vmul.f32 %v2690, 1.442695
    %v2706 = vpow.pop %v2705
    %v2707 = vadd.f32 %v2692, %v2696
    %v2708 = vadd.f32 %v2707, %v2700
    %v2709 = vadd.f32 %v2708, %v2704
    %v2710 = vadd.f32 %v2694, %v2698
    %v2711 = vadd.f32 %v2710, %v2702
    %v2712 = vadd.f32 %v2711, %v2706
    %v2713 = vrcp.pop %v2709
    %v2714 = vmul.f32 %v2692, %v2713
    %v2715 = vrcp.pop %v2712
    %v2716 = vmul.f32 %v2694, %v2715
    %v2717 = vmul.f32 %v2696, %v2713
    %v2718 = vmul.f32 %v2698, %v2715
    %v2719 = vmul.f32 %v2700, %v2713
    %v2720 = vmul.f32 %v2702, %v2715
    %v2721 = vmul.f32 %v2704, %v2713
    %v2722 = vmul.f32 %v2706, %v2715
    %v2723 = vmul.f32 %v2714, %v2609
    %v2724 = vmul.f32 %v2714, %v2610
    %v2725 = vmul.f32 %v2716, %v2611
    %v2726 = vmul.f32 %v2716, %v2612
    %v2727 = vmul.f32 %v2717, %v2613
    %v2728 = vmul.f32 %v2717, %v2614
    %v2729 = vmul.f32 %v2718, %v2615
    %v2730 = vmul.f32 %v2718, %v2616
    %v2731 = vmul.f32 %v2719, %v2617
    %v2732 = vmul.f32 %v2719, %v2618
    %v2733 = vmul.f32 %v2720, %v2619
    %v2734 = vmul.f32 %v2720, %v2620
    %v2735 = vmul.f32 %v2721, %v2621
    %v2736 = vmul.f32 %v2721, %v2622
    %v2737 = vmul.f32 %v2722, %v2623
    %v2738 = vmul.f32 %v2722, %v2624
    %v2739 = vadd.f32 %v2723, %v2727
    %v2740 = vadd.f32 %v2739, %v2731
    %v2741 = vadd.f32 %v2740, %v2735
    %v2742 = vadd.f32 %v2724, %v2728
    %v2743 = vadd.f32 %v2742, %v2732
    %v2744 = vadd.f32 %v2743, %v2736
    %v2745 = vadd.f32 %v2725, %v2729
    %v2746 = vadd.f32 %v2745, %v2733
    %v2747 = vadd.f32 %v2746, %v2737
    %v2748 = vadd.f32 %v2726, %v2730
    %v2749 = vadd.f32 %v2748, %v2734
    %v2750 = vadd.f32 %v2749, %v2738
    %v2751 = vld [vmem:[#allocation12] sm:$0xff]
    %v2752 = vld [vmem:[#allocation12 + $0x8] sm:$0xff]
    %v2753 = vld [vmem:[#allocation12 + $0x10] sm:$0xff]
    %v2754 = vld [vmem:[#allocation12 + $0x18] sm:$0xff]
    %v2755 = vld [vmem:[#allocation12 + $0x20] sm:$0xff]
    %v2756 = vld [vmem:[#allocation12 + $0x28] sm:$0xff]
    %v2757 = vld [vmem:[#allocation12 + $0x30] sm:$0xff]
    %v2758 = vld [vmem:[#allocation12 + $0x38] sm:$0xff]
    %v2759 = vld [vmem:[#allocation12 + $0x40] sm:$0xff]
    %v2760 = vld [vmem:[#allocation12 + $0x48] sm:$0xff]
    %v2761 = vld [vmem:[#allocation12 + $0x50] sm:$0xff]
    %v2762 = vld [vmem:[#allocation12 + $0x58] sm:$0xff]
    %v2763 = vld [vmem:[#allocation12 + $0x60] sm:$0xff]
    %v2764 = vld [vmem:[#allocation12 + $0x68] sm:$0xff]
    %v2765 = vld [vmem:[#allocation12 + $0x70] sm:$0xff]
    %v2766 = vld [vmem:[#allocation12 + $0x78] sm:$0xff]
    %v2767 = vld [vmem:[#allocation12 + $0x80] sm:$0xff]
    %v2768 = vld [vmem:[#allocation12 + $0x88] sm:$0xff]
    %v2769 = vld [vmem:[#allocation12 + $0x90] sm:$0xff]
    %v2770 = vld [vmem:[#allocation12 + $0x98] sm:$0xff]
    %v2771 = vld [vmem:[#allocation12 + $0xa0] sm:$0xff]
    %v2772 = vld [vmem:[#allocation12 + $0xa8] sm:$0xff]
    %v2773 = vld [vmem:[#allocation12 + $0xb0] sm:$0xff]
    %v2774 = vld [vmem:[#allocation12 + $0xb8] sm:$0xff]
    %v2775 = vld [vmem:[#allocation12 + $0xc0] sm:$0xff]
    %v2776 = vld [vmem:[#allocation12 + $0xc8] sm:$0xff]
    %v2777 = vld [vmem:[#allocation12 + $0xd0] sm:$0xff]
    %v2778 = vld [vmem:[#allocation12 + $0xd8] sm:$0xff]
    %v2779 = vld [vmem:[#allocation12 + $0xe0] sm:$0xff]
    %v2780 = vld [vmem:[#allocation12 + $0xe8] sm:$0xff]
    %v2781 = vld [vmem:[#allocation12 + $0xf0] sm:$0xff]
    %v2782 = vld [vmem:[#allocation12 + $0xf8] sm:$0xff]
    %v2783 = vld [vmem:[#allocation12 + $0x100] sm:$0xff]
    %v2784 = vld [vmem:[#allocation12 + $0x108] sm:$0xff]
    %v2785 = vld [vmem:[#allocation12 + $0x110] sm:$0xff]
    %v2786 = vld [vmem:[#allocation12 + $0x118] sm:$0xff]
    %v2787 = vld [vmem:[#allocation12 + $0x120] sm:$0xff]
    %v2788 = vld [vmem:[#allocation12 + $0x128] sm:$0xff]
    %v2789 = vld [vmem:[#allocation12 + $0x130] sm:$0xff]
    %v2790 = vld [vmem:[#allocation12 + $0x138] sm:$0xff]
    %v2791 = vld [vmem:[#allocation12 + $0x140] sm:$0xff]
    %v2792 = vld [vmem:[#allocation12 + $0x148] sm:$0xff]
    %v2793 = vld [vmem:[#allocation12 + $0x150] sm:$0xff]
    %v2794 = vld [vmem:[#allocation12 + $0x158] sm:$0xff]
    %v2795 = vld [vmem:[#allocation12 + $0x160] sm:$0xff]
    %v2796 = vld [vmem:[#allocation12 + $0x168] sm:$0xff]
    %v2797 = vld [vmem:[#allocation12 + $0x170] sm:$0xff]
    %v2798 = vld [vmem:[#allocation12 + $0x178] sm:$0xff]
    %v2799 = vld [vmem:[#allocation12 + $0x180] sm:$0xff]
    %v2800 = vld [vmem:[#allocation12 + $0x188] sm:$0xff]
    %v2801 = vld [vmem:[#allocation12 + $0x190] sm:$0xff]
    %v2802 = vld [vmem:[#allocation12 + $0x198] sm:$0xff]
    %v2803 = vld [vmem:[#allocation12 + $0x1a0] sm:$0xff]
    %v2804 = vld [vmem:[#allocation12 + $0x1a8] sm:$0xff]
    %v2805 = vld [vmem:[#allocation12 + $0x1b0] sm:$0xff]
    %v2806 = vld [vmem:[#allocation12 + $0x1b8] sm:$0xff]
    %v2807 = vld [vmem:[#allocation12 + $0x1c0] sm:$0xff]
    %v2808 = vld [vmem:[#allocation12 + $0x1c8] sm:$0xff]
    %v2809 = vld [vmem:[#allocation12 + $0x1d0] sm:$0xff]
    %v2810 = vld [vmem:[#allocation12 + $0x1d8] sm:$0xff]
    %v2811 = vld [vmem:[#allocation12 + $0x1e0] sm:$0xff]
    %v2812 = vld [vmem:[#allocation12 + $0x1e8] sm:$0xff]
    %v2813 = vld [vmem:[#allocation12 + $0x1f0] sm:$0xff]
    %v2814 = vld [vmem:[#allocation12 + $0x1f8] sm:$0xff]
    %v2815 = vld [vmem:[#allocation12 + $0x200] sm:$0xff]
    %v2816 = vld [vmem:[#allocation12 + $0x208] sm:$0xff]
    %v2817 = vld [vmem:[#allocation12 + $0x210] sm:$0xff]
    %v2818 = vld [vmem:[#allocation12 + $0x218] sm:$0xff]
    %v2819 = vld [vmem:[#allocation12 + $0x220] sm:$0xff]
    %v2820 = vld [vmem:[#allocation12 + $0x228] sm:$0xff]
    %v2821 = vld [vmem:[#allocation12 + $0x230] sm:$0xff]
    %v2822 = vld [vmem:[#allocation12 + $0x238] sm:$0xff]
    %v2823 = vld [vmem:[#allocation12 + $0x240] sm:$0xff]
    %v2824 = vld [vmem:[#allocation12 + $0x248] sm:$0xff]
    %v2825 = vld [vmem:[#allocation12 + $0x250] sm:$0xff]
    %v2826 = vld [vmem:[#allocation12 + $0x258] sm:$0xff]
    %v2827 = vld [vmem:[#allocation12 + $0x260] sm:$0xff]
    %v2828 = vld [vmem:[#allocation12 + $0x268] sm:$0xff]
    %v2829 = vld [vmem:[#allocation12 + $0x270] sm:$0xff]
    %v2830 = vld [vmem:[#allocation12 + $0x278] sm:$0xff]
    %v2831 = vld [vmem:[#allocation12 + $0x280] sm:$0xff]
    %v2832 = vld [vmem:[#allocation12 + $0x288] sm:$0xff]
    %v2833 = vld [vmem:[#allocation12 + $0x290] sm:$0xff]
    %v2834 = vld [vmem:[#allocation12 + $0x298] sm:$0xff]
    %v2835 = vld [vmem:[#allocation12 + $0x2a0] sm:$0xff]
    %v2836 = vld [vmem:[#allocation12 + $0x2a8] sm:$0xff]
    %v2837 = vld [vmem:[#allocation12 + $0x2b0] sm:$0xff]
    %v2838 = vld [vmem:[#allocation12 + $0x2b8] sm:$0xff]
    %v2839 = vld [vmem:[#allocation12 + $0x2c0] sm:$0xff]
    %v2840 = vld [vmem:[#allocation12 + $0x2c8] sm:$0xff]
    %v2841 = vld [vmem:[#allocation12 + $0x2d0] sm:$0xff]
    %v2842 = vld [vmem:[#allocation12 + $0x2d8] sm:$0xff]
    %v2843 = vld [vmem:[#allocation12 + $0x2e0] sm:$0xff]
    %v2844 = vld [vmem:[#allocation12 + $0x2e8] sm:$0xff]
    %v2845 = vld [vmem:[#allocation12 + $0x2f0] sm:$0xff]
    %v2846 = vld [vmem:[#allocation12 + $0x2f8] sm:$0xff]
    %v2847 = vld [vmem:[#allocation12 + $0x300] sm:$0xff]
    %v2848 = vld [vmem:[#allocation12 + $0x308] sm:$0xff]
    %v2849 = vld [vmem:[#allocation12 + $0x310] sm:$0xff]
    %v2850 = vld [vmem:[#allocation12 + $0x318] sm:$0xff]
    %v2851 = vld [vmem:[#allocation12 + $0x320] sm:$0xff]
    %v2852 = vld [vmem:[#allocation12 + $0x328] sm:$0xff]
    %v2853 = vld [vmem:[#allocation12 + $0x330] sm:$0xff]
    %v2854 = vld [vmem:[#allocation12 + $0x338] sm:$0xff]
    %v2855 = vld [vmem:[#allocation12 + $0x340] sm:$0xff]
    %v2856 = vld [vmem:[#allocation12 + $0x348] sm:$0xff]
    %v2857 = vld [vmem:[#allocation12 + $0x350] sm:$0xff]
    %v2858 = vld [vmem:[#allocation12 + $0x358] sm:$0xff]
    %v2859 = vld [vmem:[#allocation12 + $0x360] sm:$0xff]
    %v2860 = vld [vmem:[#allocation12 + $0x368] sm:$0xff]
    %v2861 = vld [vmem:[#allocation12 + $0x370] sm:$0xff]
    %v2862 = vld [vmem:[#allocation12 + $0x378] sm:$0xff]
    %v2863 = vld [vmem:[#allocation12 + $0x380] sm:$0xff]
    %v2864 = vld [vmem:[#allocation12 + $0x388] sm:$0xff]
    %v2865 = vld [vmem:[#allocation12 + $0x390] sm:$0xff]
    %v2866 = vld [vmem:[#allocation12 + $0x398] sm:$0xff]
    %v2867 = vld [vmem:[#allocation12 + $0x3a0] sm:$0xff]
    %v2868 = vld [vmem:[#allocation12 + $0x3a8] sm:$0xff]
    %v2869 = vld [vmem:[#allocation12 + $0x3b0] sm:$0xff]
    %v2870 = vld [vmem:[#allocation12 + $0x3b8] sm:$0xff]
    %v2871 = vld [vmem:[#allocation12 + $0x3c0] sm:$0xff]
    %v2872 = vld [vmem:[#allocation12 + $0x3c8] sm:$0xff]
    %v2873 = vld [vmem:[#allocation12 + $0x3d0] sm:$0xff]
    %v2874 = vld [vmem:[#allocation12 + $0x3d8] sm:$0xff]
    %v2875 = vld [vmem:[#allocation12 + $0x3e0] sm:$0xff]
    %v2876 = vld [vmem:[#allocation12 + $0x3e8] sm:$0xff]
    %v2877 = vld [vmem:[#allocation12 + $0x3f0] sm:$0xff]
    %v2878 = vld [vmem:[#allocation12 + $0x3f8] sm:$0xff]
    %v2879 = vld [vmem:[#allocation12 + $0x400] sm:$0xff]
    %v2880 = vld [vmem:[#allocation12 + $0x408] sm:$0xff]
    %v2881 = vld [vmem:[#allocation12 + $0x410] sm:$0xff]
    %v2882 = vld [vmem:[#allocation12 + $0x418] sm:$0xff]
    %v2883 = vld [vmem:[#allocation12 + $0x420] sm:$0xff]
    %v2884 = vld [vmem:[#allocation12 + $0x428] sm:$0xff]
    %v2885 = vld [vmem:[#allocation12 + $0x430] sm:$0xff]
    %v2886 = vld [vmem:[#allocation12 + $0x438] sm:$0xff]
    %v2887 = vld [vmem:[#allocation12 + $0x440] sm:$0xff]
    %v2888 = vld [vmem:[#allocation12 + $0x448] sm:$0xff]
    %v2889 = vld [vmem:[#allocation12 + $0x450] sm:$0xff]
    %v2890 = vld [vmem:[#allocation12 + $0x458] sm:$0xff]
    %v2891 = vld [vmem:[#allocation12 + $0x460] sm:$0xff]
    %v2892 = vld [vmem:[#allocation12 + $0x468] sm:$0xff]
    %v2893 = vld [vmem:[#allocation12 + $0x470] sm:$0xff]
    %v2894 = vld [vmem:[#allocation12 + $0x478] sm:$0xff]
    %v2895 = vld [vmem:[#allocation12 + $0x480] sm:$0xff]
    %v2896 = vld [vmem:[#allocation12 + $0x488] sm:$0xff]
    %v2897 = vld [vmem:[#allocation12 + $0x490] sm:$0xff]
    %v2898 = vld [vmem:[#allocation12 + $0x498] sm:$0xff]
    %v2899 = vld [vmem:[#allocation12 + $0x4a0] sm:$0xff]
    %v2900 = vld [vmem:[#allocation12 + $0x4a8] sm:$0xff]
    %v2901 = vld [vmem:[#allocation12 + $0x4b0] sm:$0xff]
    %v2902 = vld [vmem:[#allocation12 + $0x4b8] sm:$0xff]
    %v2903 = vld [vmem:[#allocation12 + $0x4c0] sm:$0xff]
    %v2904 = vld [vmem:[#allocation12 + $0x4c8] sm:$0xff]
    %v2905 = vld [vmem:[#allocation12 + $0x4d0] sm:$0xff]
    %v2906 = vld [vmem:[#allocation12 + $0x4d8] sm:$0xff]
    %v2907 = vld [vmem:[#allocation12 + $0x4e0] sm:$0xff]
    %v2908 = vld [vmem:[#allocation12 + $0x4e8] sm:$0xff]
    %v2909 = vld [vmem:[#allocation12 + $0x4f0] sm:$0xff]
    %v2910 = vld [vmem:[#allocation12 + $0x4f8] sm:$0xff]
    %v2911 = vld [vmem:[#allocation12 + $0x500] sm:$0xff]
    %v2912 = vld [vmem:[#allocation12 + $0x508] sm:$0xff]
    %v2913 = vld [vmem:[#allocation12 + $0x510] sm:$0xff]
    %v2914 = vld [vmem:[#allocation12 + $0x518] sm:$0xff]
    %v2915 = vld [vmem:[#allocation12 + $0x520] sm:$0xff]
    %v2916 = vld [vmem:[#allocation12 + $0x528] sm:$0xff]
    %v2917 = vld [vmem:[#allocation12 + $0x530] sm:$0xff]
    %v2918 = vld [vmem:[#allocation12 + $0x538] sm:$0xff]
    %v2919 = vld [vmem:[#allocation12 + $0x540] sm:$0xff]
    %v2920 = vld [vmem:[#allocation12 + $0x548] sm:$0xff]
    %v2921 = vld [vmem:[#allocation12 + $0x550] sm:$0xff]
    %v2922 = vld [vmem:[#allocation12 + $0x558] sm:$0xff]
    %v2923 = vld [vmem:[#allocation12 + $0x560] sm:$0xff]
    %v2924 = vld [vmem:[#allocation12 + $0x568] sm:$0xff]
    %v2925 = vld [vmem:[#allocation12 + $0x570] sm:$0xff]
    %v2926 = vld [vmem:[#allocation12 + $0x578] sm:$0xff]
    %v2927 = vld [vmem:[#allocation12 + $0x580] sm:$0xff]
    %v2928 = vld [vmem:[#allocation12 + $0x588] sm:$0xff]
    %v2929 = vld [vmem:[#allocation12 + $0x590] sm:$0xff]
    %v2930 = vld [vmem:[#allocation12 + $0x598] sm:$0xff]
    %v2931 = vld [vmem:[#allocation12 + $0x5a0] sm:$0xff]
    %v2932 = vld [vmem:[#allocation12 + $0x5a8] sm:$0xff]
    %v2933 = vld [vmem:[#allocation12 + $0x5b0] sm:$0xff]
    %v2934 = vld [vmem:[#allocation12 + $0x5b8] sm:$0xff]
    %v2935 = vld [vmem:[#allocation12 + $0x5c0] sm:$0xff]
    %v2936 = vld [vmem:[#allocation12 + $0x5c8] sm:$0xff]
    %v2937 = vld [vmem:[#allocation12 + $0x5d0] sm:$0xff]
    %v2938 = vld [vmem:[#allocation12 + $0x5d8] sm:$0xff]
    %v2939 = vld [vmem:[#allocation12 + $0x5e0] sm:$0xff]
    %v2940 = vld [vmem:[#allocation12 + $0x5e8] sm:$0xff]
    %v2941 = vld [vmem:[#allocation12 + $0x5f0] sm:$0xff]
    %v2942 = vld [vmem:[#allocation12 + $0x5f8] sm:$0xff]
    %v2943 = vld [vmem:[#allocation12 + $0x600] sm:$0xff]
    %v2944 = vld [vmem:[#allocation12 + $0x608] sm:$0xff]
    %v2945 = vld [vmem:[#allocation12 + $0x610] sm:$0xff]
    %v2946 = vld [vmem:[#allocation12 + $0x618] sm:$0xff]
    %v2947 = vld [vmem:[#allocation12 + $0x620] sm:$0xff]
    %v2948 = vld [vmem:[#allocation12 + $0x628] sm:$0xff]
    %v2949 = vld [vmem:[#allocation12 + $0x630] sm:$0xff]
    %v2950 = vld [vmem:[#allocation12 + $0x638] sm:$0xff]
    %v2951 = vld [vmem:[#allocation12 + $0x640] sm:$0xff]
    %v2952 = vld [vmem:[#allocation12 + $0x648] sm:$0xff]
    %v2953 = vld [vmem:[#allocation12 + $0x650] sm:$0xff]
    %v2954 = vld [vmem:[#allocation12 + $0x658] sm:$0xff]
    %v2955 = vld [vmem:[#allocation12 + $0x660] sm:$0xff]
    %v2956 = vld [vmem:[#allocation12 + $0x668] sm:$0xff]
    %v2957 = vld [vmem:[#allocation12 + $0x670] sm:$0xff]
    %v2958 = vld [vmem:[#allocation12 + $0x678] sm:$0xff]
    %v2959 = vld [vmem:[#allocation12 + $0x680] sm:$0xff]
    %v2960 = vld [vmem:[#allocation12 + $0x688] sm:$0xff]
    %v2961 = vld [vmem:[#allocation12 + $0x690] sm:$0xff]
    %v2962 = vld [vmem:[#allocation12 + $0x698] sm:$0xff]
    %v2963 = vld [vmem:[#allocation12 + $0x6a0] sm:$0xff]
    %v2964 = vld [vmem:[#allocation12 + $0x6a8] sm:$0xff]
    %v2965 = vld [vmem:[#allocation12 + $0x6b0] sm:$0xff]
    %v2966 = vld [vmem:[#allocation12 + $0x6b8] sm:$0xff]
    %v2967 = vld [vmem:[#allocation12 + $0x6c0] sm:$0xff]
    %v2968 = vld [vmem:[#allocation12 + $0x6c8] sm:$0xff]
    %v2969 = vld [vmem:[#allocation12 + $0x6d0] sm:$0xff]
    %v2970 = vld [vmem:[#allocation12 + $0x6d8] sm:$0xff]
    %v2971 = vld [vmem:[#allocation12 + $0x6e0] sm:$0xff]
    %v2972 = vld [vmem:[#allocation12 + $0x6e8] sm:$0xff]
    %v2973 = vld [vmem:[#allocation12 + $0x6f0] sm:$0xff]
    %v2974 = vld [vmem:[#allocation12 + $0x6f8] sm:$0xff]
    %v2975 = vld [vmem:[#allocation12 + $0x700] sm:$0xff]
    %v2976 = vld [vmem:[#allocation12 + $0x708] sm:$0xff]
    %v2977 = vld [vmem:[#allocation12 + $0x710] sm:$0xff]
    %v2978 = vld [vmem:[#allocation12 + $0x718] sm:$0xff]
    %v2979 = vld [vmem:[#allocation12 + $0x720] sm:$0xff]
    %v2980 = vld [vmem:[#allocation12 + $0x728] sm:$0xff]
    %v2981 = vld [vmem:[#allocation12 + $0x730] sm:$0xff]
    %v2982 = vld [vmem:[#allocation12 + $0x738] sm:$0xff]
    %v2983 = vld [vmem:[#allocation12 + $0x740] sm:$0xff]
    %v2984 = vld [vmem:[#allocation12 + $0x748] sm:$0xff]
    %v2985 = vld [vmem:[#allocation12 + $0x750] sm:$0xff]
    %v2986 = vld [vmem:[#allocation12 + $0x758] sm:$0xff]
    %v2987 = vld [vmem:[#allocation12 + $0x760] sm:$0xff]
    %v2988 = vld [vmem:[#allocation12 + $0x768] sm:$0xff]
    %v2989 = vld [vmem:[#allocation12 + $0x770] sm:$0xff]
    %v2990 = vld [vmem:[#allocation12 + $0x778] sm:$0xff]
    %v2991 = vld [vmem:[#allocation12 + $0x780] sm:$0xff]
    %v2992 = vld [vmem:[#allocation12 + $0x788] sm:$0xff]
    %v2993 = vld [vmem:[#allocation12 + $0x790] sm:$0xff]
    %v2994 = vld [vmem:[#allocation12 + $0x798] sm:$0xff]
    %v2995 = vld [vmem:[#allocation12 + $0x7a0] sm:$0xff]
    %v2996 = vld [vmem:[#allocation12 + $0x7a8] sm:$0xff]
    %v2997 = vld [vmem:[#allocation12 + $0x7b0] sm:$0xff]
    %v2998 = vld [vmem:[#allocation12 + $0x7b8] sm:$0xff]
    %v2999 = vld [vmem:[#allocation12 + $0x7c0] sm:$0xff]
    %v3000 = vld [vmem:[#allocation12 + $0x7c8] sm:$0xff]
    %v3001 = vld [vmem:[#allocation12 + $0x7d0] sm:$0xff]
    %v3002 = vld [vmem:[#allocation12 + $0x7d8] sm:$0xff]
    %v3003 = vld [vmem:[#allocation12 + $0x7e0] sm:$0xff]
    %v3004 = vld [vmem:[#allocation12 + $0x7e8] sm:$0xff]
    %v3005 = vld [vmem:[#allocation12 + $0x7f0] sm:$0xff]
    %v3006 = vld [vmem:[#allocation12 + $0x7f8] sm:$0xff]
    %v3007 = vld [vmem:[%s7] sm:$0xff]
    %v3009 = vlaneseq
    %v3010 = vshrl.u32 %v3009, 7
    %v3011 = vsub.s32 0, %v3010
    %v3012 = vrot.slane %v3007, %v3011
    %v3013 = vlaneseq
    %v3014 = vshrl.u32 %v3013, 7
    %v3015 = vsub.s32 1, %v3014
    %v3016 = vrot.slane %v3007, %v3015
    %v3017 = vlaneseq
    %v3018 = vshrl.u32 %v3017, 7
    %v3019 = vsub.s32 2, %v3018
    %v3020 = vrot.slane %v3007, %v3019
    %v3021 = vlaneseq
    %v3022 = vshrl.u32 %v3021, 7
    %v3023 = vsub.s32 3, %v3022
    %v3024 = vrot.slane %v3007, %v3023
    %v3025 = vlaneseq
    %v3026 = vshrl.u32 %v3025, 7
    %v3027 = vsub.s32 4, %v3026
    %v3028 = vrot.slane %v3007, %v3027
    %v3029 = vlaneseq
    %v3030 = vshrl.u32 %v3029, 7
    %v3031 = vsub.s32 5, %v3030
    %v3032 = vrot.slane %v3007, %v3031
    %v3033 = vlaneseq
    %v3034 = vshrl.u32 %v3033, 7
    %v3035 = vsub.s32 6, %v3034
    %v3036 = vrot.slane %v3007, %v3035
    %v3037 = vlaneseq
    %v3038 = vshrl.u32 %v3037, 7
    %v3039 = vsub.s32 7, %v3038
    %v3040 = vrot.slane %v3007, %v3039
    %3049 = vmatprep.subr.mxu0 %v2752
    %3050 = vmatpush1.msra.mxu0 %v2751
    %3051 = vmatprep.subr.mxu0 %v2760
    %3052 = vmatpush1.msra.mxu0 %v2759
    %3053 = vmatprep.subr.mxu0 %v2768
    %3054 = vmatpush1.msra.mxu0 %v2767
    %3055 = vmatprep.subr.mxu0 %v2776
    %3056 = vmatpush1.msra.mxu0 %v2775
    %3057 = vmatprep.subr.mxu0 %v2784
    %3058 = vmatpush1.msra.mxu0 %v2783
    %3059 = vmatprep.subr.mxu0 %v2792
    %3060 = vmatpush1.msra.mxu0 %v2791
    %3061 = vmatprep.subr.mxu0 %v2800
    %3062 = vmatpush1.msra.mxu0 %v2799
    %3063 = vmatprep.subr.mxu0 %v2808
    %3064 = vmatpush1.msra.mxu0 %v2807
    %3065 = vmatprep.subr.mxu0 %v2816
    %3066 = vmatpush1.msra.mxu0 %v2815
    %3067 = vmatprep.subr.mxu0 %v2824
    %3068 = vmatpush1.msra.mxu0 %v2823
    %3069 = vmatprep.subr.mxu0 %v2832
    %3070 = vmatpush1.msra.mxu0 %v2831
    %3071 = vmatprep.subr.mxu0 %v2840
    %3072 = vmatpush1.msra.mxu0 %v2839
    %3073 = vmatprep.subr.mxu0 %v2848
    %3074 = vmatpush1.msra.mxu0 %v2847
    %3075 = vmatprep.subr.mxu0 %v2856
    %3076 = vmatpush1.msra.mxu0 %v2855
    %3077 = vmatprep.subr.mxu0 %v2864
    %3078 = vmatpush1.msra.mxu0 %v2863
    %3079 = vmatprep.subr.mxu0 %v2872
    %3080 = vmatpush1.msra.mxu0 %v2871
    %3081 = vmatprep.subr.mxu0 %v2880
    %3082 = vmatpush1.msra.mxu0 %v2879
    %3083 = vmatprep.subr.mxu0 %v2888
    %3084 = vmatpush1.msra.mxu0 %v2887
    %3085 = vmatprep.subr.mxu0 %v2896
    %3086 = vmatpush1.msra.mxu0 %v2895
    %3087 = vmatprep.subr.mxu0 %v2904
    %3088 = vmatpush1.msra.mxu0 %v2903
    %3089 = vmatprep.subr.mxu0 %v2912
    %3090 = vmatpush1.msra.mxu0 %v2911
    %3091 = vmatprep.subr.mxu0 %v2920
    %3092 = vmatpush1.msra.mxu0 %v2919
    %3093 = vmatprep.subr.mxu0 %v2928
    %3094 = vmatpush1.msra.mxu0 %v2927
    %3095 = vmatprep.subr.mxu0 %v2936
    %3096 = vmatpush1.msra.mxu0 %v2935
    %3097 = vmatprep.subr.mxu0 %v2944
    %3098 = vmatpush1.msra.mxu0 %v2943
    %3099 = vmatprep.subr.mxu0 %v2952
    %3100 = vmatpush1.msra.mxu0 %v2951
    %3101 = vmatprep.subr.mxu0 %v2960
    %3102 = vmatpush1.msra.mxu0 %v2959
    %3103 = vmatprep.subr.mxu0 %v2968
    %3104 = vmatpush1.msra.mxu0 %v2967
    %3105 = vmatprep.subr.mxu0 %v2976
    %3106 = vmatpush1.msra.mxu0 %v2975
    %3107 = vmatprep.subr.mxu0 %v2984
    %3108 = vmatpush1.msra.mxu0 %v2983
    %3109 = vmatprep.subr.mxu0 %v2992
    %3110 = vmatpush1.msra.mxu0 %v2991
    %3111 = vmatprep.subr.mxu0 %v3000
    %3112 = vmatpush1.msra.mxu0 %v2999
    %3113 = vmatprep.mubr.f32.mxu0 %v2744
    %3114 = vmatmul.mubr.f32.gmra.mrb[0].mxu0 %v2741
    %v3115 = vpop.f32.mrb[0].mxu0
    %v3116 = vadd.f32 %v3012, %v3115
    %v3117 = vpop.f32.mrb[0].mxu0
    %v3118 = vadd.f32 %v3016, %v3117
    %3119 = vmatprep.mubr.f32.mxu0 %v2750
    %3120 = vmatmul.mubr.f32.gmra.mrb[0].mxu0 %v2747
    %v3121 = vpop.f32.mrb[0].mxu0
    %v3122 = vadd.f32 %v3012, %v3121
    %v3123 = vpop.f32.mrb[0].mxu0
    %v3124 = vadd.f32 %v3016, %v3123
    %3125 = vdwg.mxu0
    %3126 = vmatprep.subr.mxu0 %v2754
    %3127 = vmatpush1.msra.mxu0 %v2753
    %3128 = vmatprep.subr.mxu0 %v2762
    %3129 = vmatpush1.msra.mxu0 %v2761
    %3130 = vmatprep.subr.mxu0 %v2770
    %3131 = vmatpush1.msra.mxu0 %v2769
    %3132 = vmatprep.subr.mxu0 %v2778
    %3133 = vmatpush1.msra.mxu0 %v2777
    %3134 = vmatprep.subr.mxu0 %v2786
    %3135 = vmatpush1.msra.mxu0 %v2785
    %3136 = vmatprep.subr.mxu0 %v2794
    %3137 = vmatpush1.msra.mxu0 %v2793
    %3138 = vmatprep.subr.mxu0 %v2802
    %3139 = vmatpush1.msra.mxu0 %v2801
    %3140 = vmatprep.subr.mxu0 %v2810
    %3141 = vmatpush1.msra.mxu0 %v2809
    %3142 = vmatprep.subr.mxu0 %v2818
    %3143 = vmatpush1.msra.mxu0 %v2817
    %3144 = vmatprep.subr.mxu0 %v2826
    %3145 = vmatpush1.msra.mxu0 %v2825
    %3146 = vmatprep.subr.mxu0 %v2834
    %3147 = vmatpush1.msra.mxu0 %v2833
    %3148 = vmatprep.subr.mxu0 %v2842
    %3149 = vmatpush1.msra.mxu0 %v2841
    %3150 = vmatprep.subr.mxu0 %v2850
    %3151 = vmatpush1.msra.mxu0 %v2849
    %3152 = vmatprep.subr.mxu0 %v2858
    %3153 = vmatpush1.msra.mxu0 %v2857
    %3154 = vmatprep.subr.mxu0 %v2866
    %3155 = vmatpush1.msra.mxu0 %v2865
    %3156 = vmatprep.subr.mxu0 %v2874
    %3157 = vmatpush1.msra.mxu0 %v2873
    %3158 = vmatprep.subr.mxu0 %v2882
    %3159 = vmatpush1.msra.mxu0 %v2881
    %3160 = vmatprep.subr.mxu0 %v2890
    %3161 = vmatpush1.msra.mxu0 %v2889
    %3162 = vmatprep.subr.mxu0 %v2898
    %3163 = vmatpush1.msra.mxu0 %v2897
    %3164 = vmatprep.subr.mxu0 %v2906
    %3165 = vmatpush1.msra.mxu0 %v2905
    %3166 = vmatprep.subr.mxu0 %v2914
    %3167 = vmatpush1.msra.mxu0 %v2913
    %3168 = vmatprep.subr.mxu0 %v2922
    %3169 = vmatpush1.msra.mxu0 %v2921
    %3170 = vmatprep.subr.mxu0 %v2930
    %3171 = vmatpush1.msra.mxu0 %v2929
    %3172 = vmatprep.subr.mxu0 %v2938
    %3173 = vmatpush1.msra.mxu0 %v2937
    %3174 = vmatprep.subr.mxu0 %v2946
    %3175 = vmatpush1.msra.mxu0 %v2945
    %3176 = vmatprep.subr.mxu0 %v2954
    %3177 = vmatpush1.msra.mxu0 %v2953
    %3178 = vmatprep.subr.mxu0 %v2962
    %3179 = vmatpush1.msra.mxu0 %v2961
    %3180 = vmatprep.subr.mxu0 %v2970
    %3181 = vmatpush1.msra.mxu0 %v2969
    %3182 = vmatprep.subr.mxu0 %v2978
    %3183 = vmatpush1.msra.mxu0 %v2977
    %3184 = vmatprep.subr.mxu0 %v2986
    %3185 = vmatpush1.msra.mxu0 %v2985
    %3186 = vmatprep.subr.mxu0 %v2994
    %3187 = vmatpush1.msra.mxu0 %v2993
    %3188 = vmatprep.subr.mxu0 %v3002
    %3189 = vmatpush1.msra.mxu0 %v3001
    %3190 = vmatprep.mubr.f32.mxu0 %v2744
    %3191 = vmatmul.mubr.f32.gmra.mrb[0].mxu0 %v2741
    %v3192 = vpop.f32.mrb[0].mxu0
    %v3193 = vadd.f32 %v3020, %v3192
    %v3194 = vpop.f32.mrb[0].mxu0
    %v3195 = vadd.f32 %v3024, %v3194
    %3196 = vmatprep.mubr.f32.mxu0 %v2750
    %3197 = vmatmul.mubr.f32.gmra.mrb[0].mxu0 %v2747
    %v3198 = vpop.f32.mrb[0].mxu0
    %v3199 = vadd.f32 %v3020, %v3198
    %v3200 = vpop.f32.mrb[0].mxu0
    %v3201 = vadd.f32 %v3024, %v3200
    %3202 = vdwg.mxu0
    %3203 = vmatprep.subr.mxu0 %v2756
    %3204 = vmatpush1.msra.mxu0 %v2755
    %3205 = vmatprep.subr.mxu0 %v2764
    %3206 = vmatpush1.msra.mxu0 %v2763
    %3207 = vmatprep.subr.mxu0 %v2772
    %3208 = vmatpush1.msra.mxu0 %v2771
    %3209 = vmatprep.subr.mxu0 %v2780
    %3210 = vmatpush1.msra.mxu0 %v2779
    %3211 = vmatprep.subr.mxu0 %v2788
    %3212 = vmatpush1.msra.mxu0 %v2787
    %3213 = vmatprep.subr.mxu0 %v2796
    %3214 = vmatpush1.msra.mxu0 %v2795
    %3215 = vmatprep.subr.mxu0 %v2804
    %3216 = vmatpush1.msra.mxu0 %v2803
    %3217 = vmatprep.subr.mxu0 %v2812
    %3218 = vmatpush1.msra.mxu0 %v2811
    %3219 = vmatprep.subr.mxu0 %v2820
    %3220 = vmatpush1.msra.mxu0 %v2819
    %3221 = vmatprep.subr.mxu0 %v2828
    %3222 = vmatpush1.msra.mxu0 %v2827
    %3223 = vmatprep.subr.mxu0 %v2836
    %3224 = vmatpush1.msra.mxu0 %v2835
    %3225 = vmatprep.subr.mxu0 %v2844
    %3226 = vmatpush1.msra.mxu0 %v2843
    %3227 = vmatprep.subr.mxu0 %v2852
    %3228 = vmatpush1.msra.mxu0 %v2851
    %3229 = vmatprep.subr.mxu0 %v2860
    %3230 = vmatpush1.msra.mxu0 %v2859
    %3231 = vmatprep.subr.mxu0 %v2868
    %3232 = vmatpush1.msra.mxu0 %v2867
    %3233 = vmatprep.subr.mxu0 %v2876
    %3234 = vmatpush1.msra.mxu0 %v2875
    %3235 = vmatprep.subr.mxu0 %v2884
    %3236 = vmatpush1.msra.mxu0 %v2883
    %3237 = vmatprep.subr.mxu0 %v2892
    %3238 = vmatpush1.msra.mxu0 %v2891
    %3239 = vmatprep.subr.mxu0 %v2900
    %3240 = vmatpush1.msra.mxu0 %v2899
    %3241 = vmatprep.subr.mxu0 %v2908
    %3242 = vmatpush1.msra.mxu0 %v2907
    %3243 = vmatprep.subr.mxu0 %v2916
    %3244 = vmatpush1.msra.mxu0 %v2915
    %3245 = vmatprep.subr.mxu0 %v2924
    %3246 = vmatpush1.msra.mxu0 %v2923
    %3247 = vmatprep.subr.mxu0 %v2932
    %3248 = vmatpush1.msra.mxu0 %v2931
    %3249 = vmatprep.subr.mxu0 %v2940
    %3250 = vmatpush1.msra.mxu0 %v2939
    %3251 = vmatprep.subr.mxu0 %v2948
    %3252 = vmatpush1.msra.mxu0 %v2947
    %3253 = vmatprep.subr.mxu0 %v2956
    %3254 = vmatpush1.msra.mxu0 %v2955
    %3255 = vmatprep.subr.mxu0 %v2964
    %3256 = vmatpush1.msra.mxu0 %v2963
    %3257 = vmatprep.subr.mxu0 %v2972
    %3258 = vmatpush1.msra.mxu0 %v2971
    %3259 = vmatprep.subr.mxu0 %v2980
    %3260 = vmatpush1.msra.mxu0 %v2979
    %3261 = vmatprep.subr.mxu0 %v2988
    %3262 = vmatpush1.msra.mxu0 %v2987
    %3263 = vmatprep.subr.mxu0 %v2996
    %3264 = vmatpush1.msra.mxu0 %v2995
    %3265 = vmatprep.subr.mxu0 %v3004
    %3266 = vmatpush1.msra.mxu0 %v3003
    %3267 = vmatprep.mubr.f32.mxu0 %v2744
    %3268 = vmatmul.mubr.f32.gmra.mrb[0].mxu0 %v2741
    %v3269 = vpop.f32.mrb[0].mxu0
    %v3270 = vadd.f32 %v3028, %v3269
    %v3271 = vpop.f32.mrb[0].mxu0
    %v3272 = vadd.f32 %v3032, %v3271
    %3273 = vmatprep.mubr.f32.mxu0 %v2750
    %3274 = vmatmul.mubr.f32.gmra.mrb[0].mxu0 %v2747
    %v3275 = vpop.f32.mrb[0].mxu0
    %v3276 = vadd.f32 %v3028, %v3275
    %v3277 = vpop.f32.mrb[0].mxu0
    %v3278 = vadd.f32 %v3032, %v3277
    %3279 = vdwg.mxu0
    %3280 = vmatprep.subr.mxu0 %v2758
    %3281 = vmatpush1.msra.mxu0 %v2757
    %3282 = vmatprep.subr.mxu0 %v2766
    %3283 = vmatpush1.msra.mxu0 %v2765
    %3284 = vmatprep.subr.mxu0 %v2774
    %3285 = vmatpush1.msra.mxu0 %v2773
    %3286 = vmatprep.subr.mxu0 %v2782
    %3287 = vmatpush1.msra.mxu0 %v2781
    %3288 = vmatprep.subr.mxu0 %v2790
    %3289 = vmatpush1.msra.mxu0 %v2789
    %3290 = vmatprep.subr.mxu0 %v2798
    %3291 = vmatpush1.msra.mxu0 %v2797
    %3292 = vmatprep.subr.mxu0 %v2806
    %3293 = vmatpush1.msra.mxu0 %v2805
    %3294 = vmatprep.subr.mxu0 %v2814
    %3295 = vmatpush1.msra.mxu0 %v2813
    %3296 = vmatprep.subr.mxu0 %v2822
    %3297 = vmatpush1.msra.mxu0 %v2821
    %3298 = vmatprep.subr.mxu0 %v2830
    %3299 = vmatpush1.msra.mxu0 %v2829
    %3300 = vmatprep.subr.mxu0 %v2838
    %3301 = vmatpush1.msra.mxu0 %v2837
    %3302 = vmatprep.subr.mxu0 %v2846
    %3303 = vmatpush1.msra.mxu0 %v2845
    %3304 = vmatprep.subr.mxu0 %v2854
    %3305 = vmatpush1.msra.mxu0 %v2853
    %3306 = vmatprep.subr.mxu0 %v2862
    %3307 = vmatpush1.msra.mxu0 %v2861
    %3308 = vmatprep.subr.mxu0 %v2870
    %3309 = vmatpush1.msra.mxu0 %v2869
    %3310 = vmatprep.subr.mxu0 %v2878
    %3311 = vmatpush1.msra.mxu0 %v2877
    %3312 = vmatprep.subr.mxu0 %v2886
    %3313 = vmatpush1.msra.mxu0 %v2885
    %3314 = vmatprep.subr.mxu0 %v2894
    %3315 = vmatpush1.msra.mxu0 %v2893
    %3316 = vmatprep.subr.mxu0 %v2902
    %3317 = vmatpush1.msra.mxu0 %v2901
    %3318 = vmatprep.subr.mxu0 %v2910
    %3319 = vmatpush1.msra.mxu0 %v2909
    %3320 = vmatprep.subr.mxu0 %v2918
    %3321 = vmatpush1.msra.mxu0 %v2917
    %3322 = vmatprep.subr.mxu0 %v2926
    %3323 = vmatpush1.msra.mxu0 %v2925
    %3324 = vmatprep.subr.mxu0 %v2934
    %3325 = vmatpush1.msra.mxu0 %v2933
    %3326 = vmatprep.subr.mxu0 %v2942
    %3327 = vmatpush1.msra.mxu0 %v2941
    %3328 = vmatprep.subr.mxu0 %v2950
    %3329 = vmatpush1.msra.mxu0 %v2949
    %3330 = vmatprep.subr.mxu0 %v2958
    %3331 = vmatpush1.msra.mxu0 %v2957
    %3332 = vmatprep.subr.mxu0 %v2966
    %3333 = vmatpush1.msra.mxu0 %v2965
    %3334 = vmatprep.subr.mxu0 %v2974
    %3335 = vmatpush1.msra.mxu0 %v2973
    %3336 = vmatprep.subr.mxu0 %v2982
    %3337 = vmatpush1.msra.mxu0 %v2981
    %3338 = vmatprep.subr.mxu0 %v2990
    %3339 = vmatpush1.msra.mxu0 %v2989
    %3340 = vmatprep.subr.mxu0 %v2998
    %3341 = vmatpush1.msra.mxu0 %v2997
    %3342 = vmatprep.subr.mxu0 %v3006
    %3343 = vmatpush1.msra.mxu0 %v3005
    %3344 = vmatprep.mubr.f32.mxu0 %v2744
    %3345 = vmatmul.mubr.f32.gmra.mrb[0].mxu0 %v2741
    %v3346 = vpop.f32.mrb[0].mxu0
    %v3347 = vadd.f32 %v3036, %v3346
    %v3348 = vpop.f32.mrb[0].mxu0
    %v3349 = vadd.f32 %v3040, %v3348
    %3350 = vmatprep.mubr.f32.mxu0 %v2750
    %3351 = vmatmul.mubr.f32.gmra.mrb[0].mxu0 %v2747
    %v3352 = vpop.f32.mrb[0].mxu0
    %v3353 = vadd.f32 %v3036, %v3352
    %v3354 = vpop.f32.mrb[0].mxu0
    %v3355 = vadd.f32 %v3040, %v3354
    %3356 = vdwg.mxu0
    %3357 = vst [vmem:[#allocation4] sm:$0xff] %v3116
    %3358 = vst [vmem:[#allocation4 + $0x8] sm:$0xff] %v3118
    %3359 = vst [vmem:[#allocation4 + $0x10] sm:$0xff] %v3193
    %3360 = vst [vmem:[#allocation4 + $0x18] sm:$0xff] %v3195
    %3361 = vst [vmem:[#allocation4 + $0x20] sm:$0xff] %v3270
    %3362 = vst [vmem:[#allocation4 + $0x28] sm:$0xff] %v3272
    %3363 = vst [vmem:[#allocation4 + $0x30] sm:$0xff] %v3347
    %3364 = vst [vmem:[#allocation4 + $0x38] sm:$0xff] %v3349
    %3365 = vst [vmem:[#allocation4 + $0x40] sm:$0xff] %v3122
    %3366 = vst [vmem:[#allocation4 + $0x48] sm:$0xff] %v3124
    %3367 = vst [vmem:[#allocation4 + $0x50] sm:$0xff] %v3199
    %3368 = vst [vmem:[#allocation4 + $0x58] sm:$0xff] %v3201
    %3369 = vst [vmem:[#allocation4 + $0x60] sm:$0xff] %v3276
    %3370 = vst [vmem:[#allocation4 + $0x68] sm:$0xff] %v3278
    %3371 = vst [vmem:[#allocation4 + $0x70] sm:$0xff] %v3353
    %3372 = vst [vmem:[#allocation4 + $0x78] sm:$0xff] %v3355
    %v3373 = vld [vmem:[#allocation14] sm:$0xff]
    %v3374 = vld [vmem:[#allocation14 + $0x8] sm:$0xff]
    %v3375 = vld [vmem:[#allocation14 + $0x10] sm:$0xff]
    %v3376 = vld [vmem:[#allocation14 + $0x18] sm:$0xff]
    %v3377 = vld [vmem:[#allocation14 + $0x40] sm:$0xff]
    %v3378 = vld [vmem:[#allocation14 + $0x48] sm:$0xff]
    %v3379 = vld [vmem:[#allocation14 + $0x50] sm:$0xff]
    %v3380 = vld [vmem:[#allocation14 + $0x58] sm:$0xff]
    %v3381 = vld [vmem:[#allocation14 + $0x80] sm:$0xff]
    %v3382 = vld [vmem:[#allocation14 + $0x88] sm:$0xff]
    %v3383 = vld [vmem:[#allocation14 + $0x90] sm:$0xff]
    %v3384 = vld [vmem:[#allocation14 + $0x98] sm:$0xff]
    %v3385 = vld [vmem:[#allocation14 + $0xc0] sm:$0xff]
    %v3386 = vld [vmem:[#allocation14 + $0xc8] sm:$0xff]
    %v3387 = vld [vmem:[#allocation14 + $0xd0] sm:$0xff]
    %v3388 = vld [vmem:[#allocation14 + $0xd8] sm:$0xff]
    %v3389 = vld [vmem:[#allocation14 + $0x100] sm:$0xff]
    %v3390 = vld [vmem:[#allocation14 + $0x108] sm:$0xff]
    %v3391 = vld [vmem:[#allocation14 + $0x110] sm:$0xff]
    %v3392 = vld [vmem:[#allocation14 + $0x118] sm:$0xff]
    %v3393 = vld [vmem:[#allocation14 + $0x140] sm:$0xff]
    %v3394 = vld [vmem:[#allocation14 + $0x148] sm:$0xff]
    %v3395 = vld [vmem:[#allocation14 + $0x150] sm:$0xff]
    %v3396 = vld [vmem:[#allocation14 + $0x158] sm:$0xff]
    %v3397 = vld [vmem:[#allocation14 + $0x180] sm:$0xff]
    %v3398 = vld [vmem:[#allocation14 + $0x188] sm:$0xff]
    %v3399 = vld [vmem:[#allocation14 + $0x190] sm:$0xff]
    %v3400 = vld [vmem:[#allocation14 + $0x198] sm:$0xff]
    %v3401 = vld [vmem:[#allocation14 + $0x1c0] sm:$0xff]
    %v3402 = vld [vmem:[#allocation14 + $0x1c8] sm:$0xff]
    %v3403 = vld [vmem:[#allocation14 + $0x1d0] sm:$0xff]
    %v3404 = vld [vmem:[#allocation14 + $0x1d8] sm:$0xff]
    %v3405 = vld [vmem:[#allocation14 + $0x200] sm:$0xff]
    %v3406 = vld [vmem:[#allocation14 + $0x208] sm:$0xff]
    %v3407 = vld [vmem:[#allocation14 + $0x210] sm:$0xff]
    %v3408 = vld [vmem:[#allocation14 + $0x218] sm:$0xff]
    %v3409 = vld [vmem:[#allocation14 + $0x240] sm:$0xff]
    %v3410 = vld [vmem:[#allocation14 + $0x248] sm:$0xff]
    %v3411 = vld [vmem:[#allocation14 + $0x250] sm:$0xff]
    %v3412 = vld [vmem:[#allocation14 + $0x258] sm:$0xff]
    %v3413 = vld [vmem:[#allocation14 + $0x280] sm:$0xff]
    %v3414 = vld [vmem:[#allocation14 + $0x288] sm:$0xff]
    %v3415 = vld [vmem:[#allocation14 + $0x290] sm:$0xff]
    %v3416 = vld [vmem:[#allocation14 + $0x298] sm:$0xff]
    %v3417 = vld [vmem:[#allocation14 + $0x2c0] sm:$0xff]
    %v3418 = vld [vmem:[#allocation14 + $0x2c8] sm:$0xff]
    %v3419 = vld [vmem:[#allocation14 + $0x2d0] sm:$0xff]
    %v3420 = vld [vmem:[#allocation14 + $0x2d8] sm:$0xff]
    %v3421 = vld [vmem:[#allocation14 + $0x300] sm:$0xff]
    %v3422 = vld [vmem:[#allocation14 + $0x308] sm:$0xff]
    %v3423 = vld [vmem:[#allocation14 + $0x310] sm:$0xff]
    %v3424 = vld [vmem:[#allocation14 + $0x318] sm:$0xff]
    %v3425 = vld [vmem:[#allocation14 + $0x340] sm:$0xff]
    %v3426 = vld [vmem:[#allocation14 + $0x348] sm:$0xff]
    %v3427 = vld [vmem:[#allocation14 + $0x350] sm:$0xff]
    %v3428 = vld [vmem:[#allocation14 + $0x358] sm:$0xff]
    %v3429 = vld [vmem:[#allocation14 + $0x380] sm:$0xff]
    %v3430 = vld [vmem:[#allocation14 + $0x388] sm:$0xff]
    %v3431 = vld [vmem:[#allocation14 + $0x390] sm:$0xff]
    %v3432 = vld [vmem:[#allocation14 + $0x398] sm:$0xff]
    %v3433 = vld [vmem:[#allocation14 + $0x3c0] sm:$0xff]
    %v3434 = vld [vmem:[#allocation14 + $0x3c8] sm:$0xff]
    %v3435 = vld [vmem:[#allocation14 + $0x3d0] sm:$0xff]
    %v3436 = vld [vmem:[#allocation14 + $0x3d8] sm:$0xff]
    %v3437 = vld [vmem:[#allocation14 + $0x20] sm:$0xff]
    %v3438 = vld [vmem:[#allocation14 + $0x28] sm:$0xff]
    %v3439 = vld [vmem:[#allocation14 + $0x30] sm:$0xff]
    %v3440 = vld [vmem:[#allocation14 + $0x38] sm:$0xff]
    %v3441 = vld [vmem:[#allocation14 + $0x60] sm:$0xff]
    %v3442 = vld [vmem:[#allocation14 + $0x68] sm:$0xff]
    %v3443 = vld [vmem:[#allocation14 + $0x70] sm:$0xff]
    %v3444 = vld [vmem:[#allocation14 + $0x78] sm:$0xff]
    %v3445 = vld [vmem:[#allocation14 + $0xa0] sm:$0xff]
    %v3446 = vld [vmem:[#allocation14 + $0xa8] sm:$0xff]
    %v3447 = vld [vmem:[#allocation14 + $0xb0] sm:$0xff]
    %v3448 = vld [vmem:[#allocation14 + $0xb8] sm:$0xff]
    %v3449 = vld [vmem:[#allocation14 + $0xe0] sm:$0xff]
    %v3450 = vld [vmem:[#allocation14 + $0xe8] sm:$0xff]
    %v3451 = vld [vmem:[#allocation14 + $0xf0] sm:$0xff]
    %v3452 = vld [vmem:[#allocation14 + $0xf8] sm:$0xff]
    %v3453 = vld [vmem:[#allocation14 + $0x120] sm:$0xff]
    %v3454 = vld [vmem:[#allocation14 + $0x128] sm:$0xff]
    %v3455 = vld [vmem:[#allocation14 + $0x130] sm:$0xff]
    %v3456 = vld [vmem:[#allocation14 + $0x138] sm:$0xff]
    %v3457 = vld [vmem:[#allocation14 + $0x160] sm:$0xff]
    %v3458 = vld [vmem:[#allocation14 + $0x168] sm:$0xff]
    %v3459 = vld [vmem:[#allocation14 + $0x170] sm:$0xff]
    %v3460 = vld [vmem:[#allocation14 + $0x178] sm:$0xff]
    %v3461 = vld [vmem:[#allocation14 + $0x1a0] sm:$0xff]
    %v3462 = vld [vmem:[#allocation14 + $0x1a8] sm:$0xff]
    %v3463 = vld [vmem:[#allocation14 + $0x1b0] sm:$0xff]
    %v3464 = vld [vmem:[#allocation14 + $0x1b8] sm:$0xff]
    %v3465 = vld [vmem:[#allocation14 + $0x1e0] sm:$0xff]
    %v3466 = vld [vmem:[#allocation14 + $0x1e8] sm:$0xff]
    %v3467 = vld [vmem:[#allocation14 + $0x1f0] sm:$0xff]
    %v3468 = vld [vmem:[#allocation14 + $0x1f8] sm:$0xff]
    %v3469 = vld [vmem:[#allocation14 + $0x220] sm:$0xff]
    %v3470 = vld [vmem:[#allocation14 + $0x228] sm:$0xff]
    %v3471 = vld [vmem:[#allocation14 + $0x230] sm:$0xff]
    %v3472 = vld [vmem:[#allocation14 + $0x238] sm:$0xff]
    %v3473 = vld [vmem:[#allocation14 + $0x260] sm:$0xff]
    %v3474 = vld [vmem:[#allocation14 + $0x268] sm:$0xff]
    %v3475 = vld [vmem:[#allocation14 + $0x270] sm:$0xff]
    %v3476 = vld [vmem:[#allocation14 + $0x278] sm:$0xff]
    %v3477 = vld [vmem:[#allocation14 + $0x2a0] sm:$0xff]
    %v3478 = vld [vmem:[#allocation14 + $0x2a8] sm:$0xff]
    %v3479 = vld [vmem:[#allocation14 + $0x2b0] sm:$0xff]
    %v3480 = vld [vmem:[#allocation14 + $0x2b8] sm:$0xff]
    %v3481 = vld [vmem:[#allocation14 + $0x2e0] sm:$0xff]
    %v3482 = vld [vmem:[#allocation14 + $0x2e8] sm:$0xff]
    %v3483 = vld [vmem:[#allocation14 + $0x2f0] sm:$0xff]
    %v3484 = vld [vmem:[#allocation14 + $0x2f8] sm:$0xff]
    %v3485 = vld [vmem:[#allocation14 + $0x320] sm:$0xff]
    %v3486 = vld [vmem:[#allocation14 + $0x328] sm:$0xff]
    %v3487 = vld [vmem:[#allocation14 + $0x330] sm:$0xff]
    %v3488 = vld [vmem:[#allocation14 + $0x338] sm:$0xff]
    %v3489 = vld [vmem:[#allocation14 + $0x360] sm:$0xff]
    %v3490 = vld [vmem:[#allocation14 + $0x368] sm:$0xff]
    %v3491 = vld [vmem:[#allocation14 + $0x370] sm:$0xff]
    %v3492 = vld [vmem:[#allocation14 + $0x378] sm:$0xff]
    %v3493 = vld [vmem:[#allocation14 + $0x3a0] sm:$0xff]
    %v3494 = vld [vmem:[#allocation14 + $0x3a8] sm:$0xff]
    %v3495 = vld [vmem:[#allocation14 + $0x3b0] sm:$0xff]
    %v3496 = vld [vmem:[#allocation14 + $0x3b8] sm:$0xff]
    %v3497 = vld [vmem:[#allocation14 + $0x3e0] sm:$0xff]
    %v3498 = vld [vmem:[#allocation14 + $0x3e8] sm:$0xff]
    %v3499 = vld [vmem:[#allocation14 + $0x3f0] sm:$0xff]
    %v3500 = vld [vmem:[#allocation14 + $0x3f8] sm:$0xff]
    %3501 = vmatprep.subr.mxu0 %v3374
    %3502 = vmatpush1.msra.mxu0 %v3373
    %3503 = vmatprep.subr.mxu0 %v3378
    %3504 = vmatpush1.msra.mxu0 %v3377
    %3505 = vmatprep.subr.mxu0 %v3382
    %3506 = vmatpush1.msra.mxu0 %v3381
    %3507 = vmatprep.subr.mxu0 %v3386
    %3508 = vmatpush1.msra.mxu0 %v3385
    %3509 = vmatprep.subr.mxu0 %v3390
    %3510 = vmatpush1.msra.mxu0 %v3389
    %3511 = vmatprep.subr.mxu0 %v3394
    %3512 = vmatpush1.msra.mxu0 %v3393
    %3513 = vmatprep.subr.mxu0 %v3398
    %3514 = vmatpush1.msra.mxu0 %v3397
    %3515 = vmatprep.subr.mxu0 %v3402
    %3516 = vmatpush1.msra.mxu0 %v3401
    %3517 = vmatprep.subr.mxu0 %v3406
    %3518 = vmatpush1.msra.mxu0 %v3405
    %3519 = vmatprep.subr.mxu0 %v3410
    %3520 = vmatpush1.msra.mxu0 %v3409
    %3521 = vmatprep.subr.mxu0 %v3414
    %3522 = vmatpush1.msra.mxu0 %v3413
    %3523 = vmatprep.subr.mxu0 %v3418
    %3524 = vmatpush1.msra.mxu0 %v3417
    %3525 = vmatprep.subr.mxu0 %v3422
    %3526 = vmatpush1.msra.mxu0 %v3421
    %3527 = vmatprep.subr.mxu0 %v3426
    %3528 = vmatpush1.msra.mxu0 %v3425
    %3529 = vmatprep.subr.mxu0 %v3430
    %3530 = vmatpush1.msra.mxu0 %v3429
    %3531 = vmatprep.subr.mxu0 %v3434
    %3532 = vmatpush1.msra.mxu0 %v3433
    %3533 = vmatprep.subr.mxu0 0.0
    %3534 = vmatpush1.msra.mxu0 0.0
    %3535 = vmatprep.subr.mxu0 0.0
    %3536 = vmatpush1.msra.mxu0 0.0
    %3537 = vmatprep.subr.mxu0 0.0
    %3538 = vmatpush1.msra.mxu0 0.0
    %3539 = vmatprep.subr.mxu0 0.0
    %3540 = vmatpush1.msra.mxu0 0.0
    %3541 = vmatprep.subr.mxu0 0.0
    %3542 = vmatpush1.msra.mxu0 0.0
    %3543 = vmatprep.subr.mxu0 0.0
    %3544 = vmatpush1.msra.mxu0 0.0
    %3545 = vmatprep.subr.mxu0 0.0
    %3546 = vmatpush1.msra.mxu0 0.0
    %3547 = vmatprep.subr.mxu0 0.0
    %3548 = vmatpush1.msra.mxu0 0.0
    %3549 = vmatprep.subr.mxu0 0.0
    %3550 = vmatpush1.msra.mxu0 0.0
    %3551 = vmatprep.subr.mxu0 0.0
    %3552 = vmatpush1.msra.mxu0 0.0
    %3553 = vmatprep.subr.mxu0 0.0
    %3554 = vmatpush1.msra.mxu0 0.0
    %3555 = vmatprep.subr.mxu0 0.0
    %3556 = vmatpush1.msra.mxu0 0.0
    %3557 = vmatprep.subr.mxu0 0.0
    %3558 = vmatpush1.msra.mxu0 0.0
    %3559 = vmatprep.subr.mxu0 0.0
    %3560 = vmatpush1.msra.mxu0 0.0
    %3561 = vmatprep.subr.mxu0 0.0
    %3562 = vmatpush1.msra.mxu0 0.0
    %3563 = vmatprep.subr.mxu0 0.0
    %3564 = vmatpush1.msra.mxu0 0.0
    %3565 = vmatprep.mubr.f32.mxu0 0.0
    %3566 = vmatmul.mubr.f32.gmra.mrb[0].mxu0 0.0
    %v3567 = vpop.f32.mrb[0].mxu0
    %v3568 = vadd.f32 0.0, %v3567
    %v3569 = vpop.f32.mrb[0].mxu0
    %v3570 = vadd.f32 0.0, %v3569
    %3571 = vdwg.mxu0
    %3572 = vmatprep.subr.mxu0 %v3376
    %3573 = vmatpush1.msra.mxu0 %v3375
    %3574 = vmatprep.subr.mxu0 %v3380
    %3575 = vmatpush1.msra.mxu0 %v3379
    %3576 = vmatprep.subr.mxu0 %v3384
    %3577 = vmatpush1.msra.mxu0 %v3383
    %3578 = vmatprep.subr.mxu0 %v3388
    %3579 = vmatpush1.msra.mxu0 %v3387
    %3580 = vmatprep.subr.mxu0 %v3392
    %3581 = vmatpush1.msra.mxu0 %v3391
    %3582 = vmatprep.subr.mxu0 %v3396
    %3583 = vmatpush1.msra.mxu0 %v3395
    %3584 = vmatprep.subr.mxu0 %v3400
    %3585 = vmatpush1.msra.mxu0 %v3399
    %3586 = vmatprep.subr.mxu0 %v3404
    %3587 = vmatpush1.msra.mxu0 %v3403
    %3588 = vmatprep.subr.mxu0 %v3408
    %3589 = vmatpush1.msra.mxu0 %v3407
    %3590 = vmatprep.subr.mxu0 %v3412
    %3591 = vmatpush1.msra.mxu0 %v3411
    %3592 = vmatprep.subr.mxu0 %v3416
    %3593 = vmatpush1.msra.mxu0 %v3415
    %3594 = vmatprep.subr.mxu0 %v3420
    %3595 = vmatpush1.msra.mxu0 %v3419
    %3596 = vmatprep.subr.mxu0 %v3424
    %3597 = vmatpush1.msra.mxu0 %v3423
    %3598 = vmatprep.subr.mxu0 %v3428
    %3599 = vmatpush1.msra.mxu0 %v3427
    %3600 = vmatprep.subr.mxu0 %v3432
    %3601 = vmatpush1.msra.mxu0 %v3431
    %3602 = vmatprep.subr.mxu0 %v3436
    %3603 = vmatpush1.msra.mxu0 %v3435
    %3604 = vmatprep.subr.mxu0 0.0
    %3605 = vmatpush1.msra.mxu0 0.0
    %3606 = vmatprep.subr.mxu0 0.0
    %3607 = vmatpush1.msra.mxu0 0.0
    %3608 = vmatprep.subr.mxu0 0.0
    %3609 = vmatpush1.msra.mxu0 0.0
    %3610 = vmatprep.subr.mxu0 0.0
    %3611 = vmatpush1.msra.mxu0 0.0
    %3612 = vmatprep.subr.mxu0 0.0
    %3613 = vmatpush1.msra.mxu0 0.0
    %3614 = vmatprep.subr.mxu0 0.0
    %3615 = vmatpush1.msra.mxu0 0.0
    %3616 = vmatprep.subr.mxu0 0.0
    %3617 = vmatpush1.msra.mxu0 0.0
    %3618 = vmatprep.subr.mxu0 0.0
    %3619 = vmatpush1.msra.mxu0 0.0
    %3620 = vmatprep.subr.mxu0 0.0
    %3621 = vmatpush1.msra.mxu0 0.0
    %3622 = vmatprep.subr.mxu0 0.0
    %3623 = vmatpush1.msra.mxu0 0.0
    %3624 = vmatprep.subr.mxu0 0.0
    %3625 = vmatpush1.msra.mxu0 0.0
    %3626 = vmatprep.subr.mxu0 0.0
    %3627 = vmatpush1.msra.mxu0 0.0
    %3628 = vmatprep.subr.mxu0 0.0
    %3629 = vmatpush1.msra.mxu0 0.0
    %3630 = vmatprep.subr.mxu0 0.0
    %3631 = vmatpush1.msra.mxu0 0.0
    %3632 = vmatprep.subr.mxu0 0.0
    %3633 = vmatpush1.msra.mxu0 0.0
    %3634 = vmatprep.subr.mxu0 0.0
    %3635 = vmatpush1.msra.mxu0 0.0
    %3636 = vmatprep.mubr.f32.mxu0 0.0
    %3637 = vmatmul.mubr.f32.gmra.mrb[0].mxu0 0.0
    %v3638 = vpop.f32.mrb[0].mxu0
    %v3639 = vadd.f32 0.0, %v3638
    %v3640 = vpop.f32.mrb[0].mxu0
    %v3641 = vadd.f32 0.0, %v3640
    %3642 = vdwg.mxu0
    %3643 = vmatprep.subr.mxu0 %v3438
    %3644 = vmatpush1.msra.mxu0 %v3437
    %3645 = vmatprep.subr.mxu0 %v3442
    %3646 = vmatpush1.msra.mxu0 %v3441
    %3647 = vmatprep.subr.mxu0 %v3446
    %3648 = vmatpush1.msra.mxu0 %v3445
    %3649 = vmatprep.subr.mxu0 %v3450
    %3650 = vmatpush1.msra.mxu0 %v3449
    %3651 = vmatprep.subr.mxu0 %v3454
    %3652 = vmatpush1.msra.mxu0 %v3453
    %3653 = vmatprep.subr.mxu0 %v3458
    %3654 = vmatpush1.msra.mxu0 %v3457
    %3655 = vmatprep.subr.mxu0 %v3462
    %3656 = vmatpush1.msra.mxu0 %v3461
    %3657 = vmatprep.subr.mxu0 %v3466
    %3658 = vmatpush1.msra.mxu0 %v3465
    %3659 = vmatprep.subr.mxu0 %v3470
    %3660 = vmatpush1.msra.mxu0 %v3469
    %3661 = vmatprep.subr.mxu0 %v3474
    %3662 = vmatpush1.msra.mxu0 %v3473
    %3663 = vmatprep.subr.mxu0 %v3478
    %3664 = vmatpush1.msra.mxu0 %v3477
    %3665 = vmatprep.subr.mxu0 %v3482
    %3666 = vmatpush1.msra.mxu0 %v3481
    %3667 = vmatprep.subr.mxu0 %v3486
    %3668 = vmatpush1.msra.mxu0 %v3485
    %3669 = vmatprep.subr.mxu0 %v3490
    %3670 = vmatpush1.msra.mxu0 %v3489
    %3671 = vmatprep.subr.mxu0 %v3494
    %3672 = vmatpush1.msra.mxu0 %v3493
    %3673 = vmatprep.subr.mxu0 %v3498
    %3674 = vmatpush1.msra.mxu0 %v3497
    %3675 = vmatprep.subr.mxu0 0.0
    %3676 = vmatpush1.msra.mxu0 0.0
    %3677 = vmatprep.subr.mxu0 0.0
    %3678 = vmatpush1.msra.mxu0 0.0
    %3679 = vmatprep.subr.mxu0 0.0
    %3680 = vmatpush1.msra.mxu0 0.0
    %3681 = vmatprep.subr.mxu0 0.0
    %3682 = vmatpush1.msra.mxu0 0.0
    %3683 = vmatprep.subr.mxu0 0.0
    %3684 = vmatpush1.msra.mxu0 0.0
    %3685 = vmatprep.subr.mxu0 0.0
    %3686 = vmatpush1.msra.mxu0 0.0
    %3687 = vmatprep.subr.mxu0 0.0
    %3688 = vmatpush1.msra.mxu0 0.0
    %3689 = vmatprep.subr.mxu0 0.0
    %3690 = vmatpush1.msra.mxu0 0.0
    %3691 = vmatprep.subr.mxu0 0.0
    %3692 = vmatpush1.msra.mxu0 0.0
    %3693 = vmatprep.subr.mxu0 0.0
    %3694 = vmatpush1.msra.mxu0 0.0
    %3695 = vmatprep.subr.mxu0 0.0
    %3696 = vmatpush1.msra.mxu0 0.0
    %3697 = vmatprep.subr.mxu0 0.0
    %3698 = vmatpush1.msra.mxu0 0.0
    %3699 = vmatprep.subr.mxu0 0.0
    %3700 = vmatpush1.msra.mxu0 0.0
    %3701 = vmatprep.subr.mxu0 0.0
    %3702 = vmatpush1.msra.mxu0 0.0
    %3703 = vmatprep.subr.mxu0 0.0
    %3704 = vmatpush1.msra.mxu0 0.0
    %3705 = vmatprep.subr.mxu0 0.0
    %3706 = vmatpush1.msra.mxu0 0.0
    %3707 = vmatprep.mubr.f32.mxu0 0.0
    %3708 = vmatmul.mubr.f32.gmra.mrb[0].mxu0 0.0
    %v3709 = vpop.f32.mrb[0].mxu0
    %v3710 = vadd.f32 0.0, %v3709
    %v3711 = vpop.f32.mrb[0].mxu0
    %v3712 = vadd.f32 0.0, %v3711
    %3713 = vdwg.mxu0
    %3714 = vmatprep.subr.mxu0 %v3440
    %3715 = vmatpush1.msra.mxu0 %v3439
    %3716 = vmatprep.subr.mxu0 %v3444
    %3717 = vmatpush1.msra.mxu0 %v3443
    %3718 = vmatprep.subr.mxu0 %v3448
    %3719 = vmatpush1.msra.mxu0 %v3447
    %3720 = vmatprep.subr.mxu0 %v3452
    %3721 = vmatpush1.msra.mxu0 %v3451
    %3722 = vmatprep.subr.mxu0 %v3456
    %3723 = vmatpush1.msra.mxu0 %v3455
    %3724 = vmatprep.subr.mxu0 %v3460
    %3725 = vmatpush1.msra.mxu0 %v3459
    %3726 = vmatprep.subr.mxu0 %v3464
    %3727 = vmatpush1.msra.mxu0 %v3463
    %3728 = vmatprep.subr.mxu0 %v3468
    %3729 = vmatpush1.msra.mxu0 %v3467
    %3730 = vmatprep.subr.mxu0 %v3472
    %3731 = vmatpush1.msra.mxu0 %v3471
    %3732 = vmatprep.subr.mxu0 %v3476
    %3733 = vmatpush1.msra.mxu0 %v3475
    %3734 = vmatprep.subr.mxu0 %v3480
    %3735 = vmatpush1.msra.mxu0 %v3479
    %3736 = vmatprep.subr.mxu0 %v3484
    %3737 = vmatpush1.msra.mxu0 %v3483
    %3738 = vmatprep.subr.mxu0 %v3488
    %3739 = vmatpush1.msra.mxu0 %v3487
    %3740 = vmatprep.subr.mxu0 %v3492
    %3741 = vmatpush1.msra.mxu0 %v3491
    %3742 = vmatprep.subr.mxu0 %v3496
    %3743 = vmatpush1.msra.mxu0 %v3495
    %3744 = vmatprep.subr.mxu0 %v3500
    %3745 = vmatpush1.msra.mxu0 %v3499
    %3746 = vmatprep.subr.mxu0 0.0
    %3747 = vmatpush1.msra.mxu0 0.0
    %3748 = vmatprep.subr.mxu0 0.0
    %3749 = vmatpush1.msra.mxu0 0.0
    %3750 = vmatprep.subr.mxu0 0.0
    %3751 = vmatpush1.msra.mxu0 0.0
    %3752 = vmatprep.subr.mxu0 0.0
    %3753 = vmatpush1.msra.mxu0 0.0
    %3754 = vmatprep.subr.mxu0 0.0
    %3755 = vmatpush1.msra.mxu0 0.0
    %3756 = vmatprep.subr.mxu0 0.0
    %3757 = vmatpush1.msra.mxu0 0.0
    %3758 = vmatprep.subr.mxu0 0.0
    %3759 = vmatpush1.msra.mxu0 0.0
    %3760 = vmatprep.subr.mxu0 0.0
    %3761 = vmatpush1.msra.mxu0 0.0
    %3762 = vmatprep.subr.mxu0 0.0
    %3763 = vmatpush1.msra.mxu0 0.0
    %3764 = vmatprep.subr.mxu0 0.0
    %3765 = vmatpush1.msra.mxu0 0.0
    %3766 = vmatprep.subr.mxu0 0.0
    %3767 = vmatpush1.msra.mxu0 0.0
    %3768 = vmatprep.subr.mxu0 0.0
    %3769 = vmatpush1.msra.mxu0 0.0
    %3770 = vmatprep.subr.mxu0 0.0
    %3771 = vmatpush1.msra.mxu0 0.0
    %3772 = vmatprep.subr.mxu0 0.0
    %3773 = vmatpush1.msra.mxu0 0.0
    %3774 = vmatprep.subr.mxu0 0.0
    %3775 = vmatpush1.msra.mxu0 0.0
    %3776 = vmatprep.subr.mxu0 0.0
    %3777 = vmatpush1.msra.mxu0 0.0
    %3778 = vmatprep.mubr.f32.mxu0 0.0
    %3779 = vmatmul.mubr.f32.gmra.mrb[0].mxu0 0.0
    %v3780 = vpop.f32.mrb[0].mxu0
    %v3781 = vadd.f32 0.0, %v3780
    %v3782 = vpop.f32.mrb[0].mxu0
    %v3783 = vadd.f32 0.0, %v3782
    %3784 = vdwg.mxu0
    %v3785 = vld [vmem:[#allocation4] sm:$0xff]
    %v3786 = vld [vmem:[#allocation4 + $0x8] sm:$0xff]
    %v3787 = vld [vmem:[#allocation4 + $0x10] sm:$0xff]
    %v3788 = vld [vmem:[#allocation4 + $0x18] sm:$0xff]
    %v3789 = vadd.f32 %v3785, %v3568
    %v3790 = vadd.f32 %v3786, %v3570
    %v3791 = vadd.f32 %v3787, %v3639
    %v3792 = vadd.f32 %v3788, %v3641
    %v3793 = vxor.u32 %v3789, 2147483648
    %v3794 = vmul.f32 %v3793, 1.442695
    %v3795 = vpow.pop %v3794
    %v3796 = vadd.f32 %v3795, 1.0
    %v3797 = vrcp.pop %v3796
    %v3798 = vmul.f32 1.0, %v3797
    %v3799 = vxor.u32 %v3790, 2147483648
    %v3800 = vmul.f32 %v3799, 1.442695
    %v3801 = vpow.pop %v3800
    %v3802 = vadd.f32 %v3801, 1.0
    %v3803 = vrcp.pop %v3802
    %v3804 = vmul.f32 1.0, %v3803
    %v3805 = vtanh.pop %v3791
    %v3806 = vxor.u32 %v3792, 2147483648
    %v3807 = vmul.f32 %v3806, 1.442695
    %v3808 = vpow.pop %v3807
    %v3809 = vadd.f32 %v3808, 1.0
    %v3810 = vrcp.pop %v3809
    %v3811 = vmul.f32 1.0, %v3810
    %v3812 = vmul.f32 %v3804, 0.0
    %v3813 = vmul.f32 %v3798, %v3805
    %v3814 = vadd.f32 %v3812, %v3813
    %v3815 = vtanh.pop %v3814
    %v3816 = vmul.f32 %v3811, %v3815
    %s3817 = scalar_lea.vmem [#allocation4], 64
    %v3818 = vld [vmem:[%s3817 + $0x20] sm:$0xff]
    %v3819 = vld [vmem:[%s3817 + $0x28] sm:$0xff]
    %v3820 = vld [vmem:[%s3817 + $0x30] sm:$0xff]
    %v3821 = vld [vmem:[%s3817 + $0x38] sm:$0xff]
    %v3822 = vadd.f32 %v3818, %v3710
    %v3823 = vadd.f32 %v3819, %v3712
    %v3824 = vadd.f32 %v3820, %v3781
    %v3825 = vadd.f32 %v3821, %v3783
    %v3826 = vxor.u32 %v3822, 2147483648
    %v3827 = vmul.f32 %v3826, 1.442695
    %v3828 = vpow.pop %v3827
    %v3829 = vadd.f32 %v3828, 1.0
    %v3830 = vrcp.pop %v3829
    %v3831 = vmul.f32 1.0, %v3830
    %v3832 = vxor.u32 %v3823, 2147483648
    %v3833 = vmul.f32 %v3832, 1.442695
    %v3834 = vpow.pop %v3833
    %v3835 = vadd.f32 %v3834, 1.0
    %v3836 = vrcp.pop %v3835
    %v3837 = vmul.f32 1.0, %v3836
    %v3838 = vtanh.pop %v3824
    %v3839 = vxor.u32 %v3825, 2147483648
    %v3840 = vmul.f32 %v3839, 1.442695
    %v3841 = vpow.pop %v3840
    %v3842 = vadd.f32 %v3841, 1.0
    %v3843 = vrcp.pop %v3842
    %v3844 = vmul.f32 1.0, %v3843
    %v3845 = vmul.f32 %v3837, 0.0
    %v3846 = vmul.f32 %v3831, %v3838
    %v3847 = vadd.f32 %v3845, %v3846
    %v3848 = vtanh.pop %v3847
    %v3849 = vmul.f32 %v3844, %v3848
    %3850 = vst [vmem:[#allocation5] sm:$0xff] %v3816
    %s3851 = scalar_lea.vmem [#allocation5], 16
    %3852 = vst [vmem:[%s3851 + $0x8] sm:$0xff] %v3849
    %3853 = vmatprep.subr.mxu0 %v3374
    %3854 = vmatpush1.msra.mxu0 %v3373
    %3855 = vmatprep.subr.mxu0 %v3378
    %3856 = vmatpush1.msra.mxu0 %v3377
    %3857 = vmatprep.subr.mxu0 %v3382
    %3858 = vmatpush1.msra.mxu0 %v3381
    %3859 = vmatprep.subr.mxu0 %v3386
    %3860 = vmatpush1.msra.mxu0 %v3385
    %3861 = vmatprep.subr.mxu0 %v3390
    %3862 = vmatpush1.msra.mxu0 %v3389
    %3863 = vmatprep.subr.mxu0 %v3394
    %3864 = vmatpush1.msra.mxu0 %v3393
    %3865 = vmatprep.subr.mxu0 %v3398
    %3866 = vmatpush1.msra.mxu0 %v3397
    %3867 = vmatprep.subr.mxu0 %v3402
    %3868 = vmatpush1.msra.mxu0 %v3401
    %3869 = vmatprep.subr.mxu0 %v3406
    %3870 = vmatpush1.msra.mxu0 %v3405
    %3871 = vmatprep.subr.mxu0 %v3410
    %3872 = vmatpush1.msra.mxu0 %v3409
    %3873 = vmatprep.subr.mxu0 %v3414
    %3874 = vmatpush1.msra.mxu0 %v3413
    %3875 = vmatprep.subr.mxu0 %v3418
    %3876 = vmatpush1.msra.mxu0 %v3417
    %3877 = vmatprep.subr.mxu0 %v3422
    %3878 = vmatpush1.msra.mxu0 %v3421
    %3879 = vmatprep.subr.mxu0 %v3426
    %3880 = vmatpush1.msra.mxu0 %v3425
    %3881 = vmatprep.subr.mxu0 %v3430
    %3882 = vmatpush1.msra.mxu0 %v3429
    %3883 = vmatprep.subr.mxu0 %v3434
    %3884 = vmatpush1.msra.mxu0 %v3433
    %3885 = vmatprep.subr.mxu0 0.0
    %3886 = vmatpush1.msra.mxu0 0.0
    %3887 = vmatprep.subr.mxu0 0.0
    %3888 = vmatpush1.msra.mxu0 0.0
    %3889 = vmatprep.subr.mxu0 0.0
    %3890 = vmatpush1.msra.mxu0 0.0
    %3891 = vmatprep.subr.mxu0 0.0
    %3892 = vmatpush1.msra.mxu0 0.0
    %3893 = vmatprep.subr.mxu0 0.0
    %3894 = vmatpush1.msra.mxu0 0.0
    %3895 = vmatprep.subr.mxu0 0.0
    %3896 = vmatpush1.msra.mxu0 0.0
    %3897 = vmatprep.subr.mxu0 0.0
    %3898 = vmatpush1.msra.mxu0 0.0
    %3899 = vmatprep.subr.mxu0 0.0
    %3900 = vmatpush1.msra.mxu0 0.0
    %3901 = vmatprep.subr.mxu0 0.0
    %3902 = vmatpush1.msra.mxu0 0.0
    %3903 = vmatprep.subr.mxu0 0.0
    %3904 = vmatpush1.msra.mxu0 0.0
    %3905 = vmatprep.subr.mxu0 0.0
    %3906 = vmatpush1.msra.mxu0 0.0
    %3907 = vmatprep.subr.mxu0 0.0
    %3908 = vmatpush1.msra.mxu0 0.0
    %3909 = vmatprep.subr.mxu0 0.0
    %3910 = vmatpush1.msra.mxu0 0.0
    %3911 = vmatprep.subr.mxu0 0.0
    %3912 = vmatpush1.msra.mxu0 0.0
    %3913 = vmatprep.subr.mxu0 0.0
    %3914 = vmatpush1.msra.mxu0 0.0
    %3915 = vmatprep.subr.mxu0 0.0
    %3916 = vmatpush1.msra.mxu0 0.0
    %3917 = vmatprep.mubr.f32.mxu0 0.0
    %3918 = vmatmul.mubr.f32.gmra.mrb[0].mxu0 %v3816
    %v3919 = vpop.f32.mrb[0].mxu0
    %v3920 = vadd.f32 0.0, %v3919
    %v3921 = vpop.f32.mrb[0].mxu0
    %v3922 = vadd.f32 0.0, %v3921
    %3923 = vdwg.mxu0
    %3924 = vmatprep.subr.mxu0 %v3376
    %3925 = vmatpush1.msra.mxu0 %v3375
    %3926 = vmatprep.subr.mxu0 %v3380
    %3927 = vmatpush1.msra.mxu0 %v3379
    %3928 = vmatprep.subr.mxu0 %v3384
    %3929 = vmatpush1.msra.mxu0 %v3383
    %3930 = vmatprep.subr.mxu0 %v3388
    %3931 = vmatpush1.msra.mxu0 %v3387
    %3932 = vmatprep.subr.mxu0 %v3392
    %3933 = vmatpush1.msra.mxu0 %v3391
    %3934 = vmatprep.subr.mxu0 %v3396
    %3935 = vmatpush1.msra.mxu0 %v3395
    %3936 = vmatprep.subr.mxu0 %v3400
    %3937 = vmatpush1.msra.mxu0 %v3399
    %3938 = vmatprep.subr.mxu0 %v3404
    %3939 = vmatpush1.msra.mxu0 %v3403
    %3940 = vmatprep.subr.mxu0 %v3408
    %3941 = vmatpush1.msra.mxu0 %v3407
    %3942 = vmatprep.subr.mxu0 %v3412
    %3943 = vmatpush1.msra.mxu0 %v3411
    %3944 = vmatprep.subr.mxu0 %v3416
    %3945 = vmatpush1.msra.mxu0 %v3415
    %3946 = vmatprep.subr.mxu0 %v3420
    %3947 = vmatpush1.msra.mxu0 %v3419
    %3948 = vmatprep.subr.mxu0 %v3424
    %3949 = vmatpush1.msra.mxu0 %v3423
    %3950 = vmatprep.subr.mxu0 %v3428
    %3951 = vmatpush1.msra.mxu0 %v3427
    %3952 = vmatprep.subr.mxu0 %v3432
    %3953 = vmatpush1.msra.mxu0 %v3431
    %3954 = vmatprep.subr.mxu0 %v3436
    %3955 = vmatpush1.msra.mxu0 %v3435
    %3956 = vmatprep.subr.mxu0 0.0
    %3957 = vmatpush1.msra.mxu0 0.0
    %3958 = vmatprep.subr.mxu0 0.0
    %3959 = vmatpush1.msra.mxu0 0.0
    %3960 = vmatprep.subr.mxu0 0.0
    %3961 = vmatpush1.msra.mxu0 0.0
    %3962 = vmatprep.subr.mxu0 0.0
    %3963 = vmatpush1.msra.mxu0 0.0
    %3964 = vmatprep.subr.mxu0 0.0
    %3965 = vmatpush1.msra.mxu0 0.0
    %3966 = vmatprep.subr.mxu0 0.0
    %3967 = vmatpush1.msra.mxu0 0.0
    %3968 = vmatprep.subr.mxu0 0.0
    %3969 = vmatpush1.msra.mxu0 0.0
    %3970 = vmatprep.subr.mxu0 0.0
    %3971 = vmatpush1.msra.mxu0 0.0
    %3972 = vmatprep.subr.mxu0 0.0
    %3973 = vmatpush1.msra.mxu0 0.0
    %3974 = vmatprep.subr.mxu0 0.0
    %3975 = vmatpush1.msra.mxu0 0.0
    %3976 = vmatprep.subr.mxu0 0.0
    %3977 = vmatpush1.msra.mxu0 0.0
    %3978 = vmatprep.subr.mxu0 0.0
    %3979 = vmatpush1.msra.mxu0 0.0
    %3980 = vmatprep.subr.mxu0 0.0
    %3981 = vmatpush1.msra.mxu0 0.0
    %3982 = vmatprep.subr.mxu0 0.0
    %3983 = vmatpush1.msra.mxu0 0.0
    %3984 = vmatprep.subr.mxu0 0.0
    %3985 = vmatpush1.msra.mxu0 0.0
    %3986 = vmatprep.subr.mxu0 0.0
    %3987 = vmatpush1.msra.mxu0 0.0
    %3988 = vmatprep.mubr.f32.mxu0 0.0
    %3989 = vmatmul.mubr.f32.gmra.mrb[0].mxu0 %v3816
    %v3990 = vpop.f32.mrb[0].mxu0
    %v3991 = vadd.f32 0.0, %v3990
    %v3992 = vpop.f32.mrb[0].mxu0
    %v3993 = vadd.f32 0.0, %v3992
    %3994 = vdwg.mxu0
    %3995 = vmatprep.subr.mxu0 %v3438
    %3996 = vmatpush1.msra.mxu0 %v3437
    %3997 = vmatprep.subr.mxu0 %v3442
    %3998 = vmatpush1.msra.mxu0 %v3441
    %3999 = vmatprep.subr.mxu0 %v3446
    %4000 = vmatpush1.msra.mxu0 %v3445
    %4001 = vmatprep.subr.mxu0 %v3450
    %4002 = vmatpush1.msra.mxu0 %v3449
    %4003 = vmatprep.subr.mxu0 %v3454
    %4004 = vmatpush1.msra.mxu0 %v3453
    %4005 = vmatprep.subr.mxu0 %v3458
    %4006 = vmatpush1.msra.mxu0 %v3457
    %4007 = vmatprep.subr.mxu0 %v3462
    %4008 = vmatpush1.msra.mxu0 %v3461
    %4009 = vmatprep.subr.mxu0 %v3466
    %4010 = vmatpush1.msra.mxu0 %v3465
    %4011 = vmatprep.subr.mxu0 %v3470
    %4012 = vmatpush1.msra.mxu0 %v3469
    %4013 = vmatprep.subr.mxu0 %v3474
    %4014 = vmatpush1.msra.mxu0 %v3473
    %4015 = vmatprep.subr.mxu0 %v3478
    %4016 = vmatpush1.msra.mxu0 %v3477
    %4017 = vmatprep.subr.mxu0 %v3482
    %4018 = vmatpush1.msra.mxu0 %v3481
    %4019 = vmatprep.subr.mxu0 %v3486
    %4020 = vmatpush1.msra.mxu0 %v3485
    %4021 = vmatprep.subr.mxu0 %v3490
    %4022 = vmatpush1.msra.mxu0 %v3489
    %4023 = vmatprep.subr.mxu0 %v3494
    %4024 = vmatpush1.msra.mxu0 %v3493
    %4025 = vmatprep.subr.mxu0 %v3498
    %4026 = vmatpush1.msra.mxu0 %v3497
    %4027 = vmatprep.subr.mxu0 0.0
    %4028 = vmatpush1.msra.mxu0 0.0
    %4029 = vmatprep.subr.mxu0 0.0
    %4030 = vmatpush1.msra.mxu0 0.0
    %4031 = vmatprep.subr.mxu0 0.0
    %4032 = vmatpush1.msra.mxu0 0.0
    %4033 = vmatprep.subr.mxu0 0.0
    %4034 = vmatpush1.msra.mxu0 0.0
    %4035 = vmatprep.subr.mxu0 0.0
    %4036 = vmatpush1.msra.mxu0 0.0
    %4037 = vmatprep.subr.mxu0 0.0
    %4038 = vmatpush1.msra.mxu0 0.0
    %4039 = vmatprep.subr.mxu0 0.0
    %4040 = vmatpush1.msra.mxu0 0.0
    %4041 = vmatprep.subr.mxu0 0.0
    %4042 = vmatpush1.msra.mxu0 0.0
    %4043 = vmatprep.subr.mxu0 0.0
    %4044 = vmatpush1.msra.mxu0 0.0
    %4045 = vmatprep.subr.mxu0 0.0
    %4046 = vmatpush1.msra.mxu0 0.0
    %4047 = vmatprep.subr.mxu0 0.0
    %4048 = vmatpush1.msra.mxu0 0.0
    %4049 = vmatprep.subr.mxu0 0.0
    %4050 = vmatpush1.msra.mxu0 0.0
    %4051 = vmatprep.subr.mxu0 0.0
    %4052 = vmatpush1.msra.mxu0 0.0
    %4053 = vmatprep.subr.mxu0 0.0
    %4054 = vmatpush1.msra.mxu0 0.0
    %4055 = vmatprep.subr.mxu0 0.0
    %4056 = vmatpush1.msra.mxu0 0.0
    %4057 = vmatprep.subr.mxu0 0.0
    %4058 = vmatpush1.msra.mxu0 0.0
    %4059 = vmatprep.mubr.f32.mxu0 0.0
    %4060 = vmatmul.mubr.f32.gmra.mrb[0].mxu0 %v3849
    %v4061 = vpop.f32.mrb[0].mxu0
    %v4062 = vadd.f32 0.0, %v4061
    %v4063 = vpop.f32.mrb[0].mxu0
    %v4064 = vadd.f32 0.0, %v4063
    %4065 = vdwg.mxu0
    %4066 = vmatprep.subr.mxu0 %v3440
    %4067 = vmatpush1.msra.mxu0 %v3439
    %4068 = vmatprep.subr.mxu0 %v3444
    %4069 = vmatpush1.msra.mxu0 %v3443
    %4070 = vmatprep.subr.mxu0 %v3448
    %4071 = vmatpush1.msra.mxu0 %v3447
    %4072 = vmatprep.subr.mxu0 %v3452
    %4073 = vmatpush1.msra.mxu0 %v3451
    %4074 = vmatprep.subr.mxu0 %v3456
    %4075 = vmatpush1.msra.mxu0 %v3455
    %4076 = vmatprep.subr.mxu0 %v3460
    %4077 = vmatpush1.msra.mxu0 %v3459
    %4078 = vmatprep.subr.mxu0 %v3464
    %4079 = vmatpush1.msra.mxu0 %v3463
    %4080 = vmatprep.subr.mxu0 %v3468
    %4081 = vmatpush1.msra.mxu0 %v3467
    %4082 = vmatprep.subr.mxu0 %v3472
    %4083 = vmatpush1.msra.mxu0 %v3471
    %4084 = vmatprep.subr.mxu0 %v3476
    %4085 = vmatpush1.msra.mxu0 %v3475
    %4086 = vmatprep.subr.mxu0 %v3480
    %4087 = vmatpush1.msra.mxu0 %v3479
    %4088 = vmatprep.subr.mxu0 %v3484
    %4089 = vmatpush1.msra.mxu0 %v3483
    %4090 = vmatprep.subr.mxu0 %v3488
    %4091 = vmatpush1.msra.mxu0 %v3487
    %4092 = vmatprep.subr.mxu0 %v3492
    %4093 = vmatpush1.msra.mxu0 %v3491
    %4094 = vmatprep.subr.mxu0 %v3496
    %4095 = vmatpush1.msra.mxu0 %v3495
    %4096 = vmatprep.subr.mxu0 %v3500
    %4097 = vmatpush1.msra.mxu0 %v3499
    %4098 = vmatprep.subr.mxu0 0.0
    %4099 = vmatpush1.msra.mxu0 0.0
    %4100 = vmatprep.subr.mxu0 0.0
    %4101 = vmatpush1.msra.mxu0 0.0
    %4102 = vmatprep.subr.mxu0 0.0
    %4103 = vmatpush1.msra.mxu0 0.0
    %4104 = vmatprep.subr.mxu0 0.0
    %4105 = vmatpush1.msra.mxu0 0.0
    %4106 = vmatprep.subr.mxu0 0.0
    %4107 = vmatpush1.msra.mxu0 0.0
    %4108 = vmatprep.subr.mxu0 0.0
    %4109 = vmatpush1.msra.mxu0 0.0
    %4110 = vmatprep.subr.mxu0 0.0
    %4111 = vmatpush1.msra.mxu0 0.0
    %4112 = vmatprep.subr.mxu0 0.0
    %4113 = vmatpush1.msra.mxu0 0.0
    %4114 = vmatprep.subr.mxu0 0.0
    %4115 = vmatpush1.msra.mxu0 0.0
    %4116 = vmatprep.subr.mxu0 0.0
    %4117 = vmatpush1.msra.mxu0 0.0
    %4118 = vmatprep.subr.mxu0 0.0
    %4119 = vmatpush1.msra.mxu0 0.0
    %4120 = vmatprep.subr.mxu0 0.0
    %4121 = vmatpush1.msra.mxu0 0.0
    %4122 = vmatprep.subr.mxu0 0.0
    %4123 = vmatpush1.msra.mxu0 0.0
    %4124 = vmatprep.subr.mxu0 0.0
    %4125 = vmatpush1.msra.mxu0 0.0
    %4126 = vmatprep.subr.mxu0 0.0
    %4127 = vmatpush1.msra.mxu0 0.0
    %4128 = vmatprep.subr.mxu0 0.0
    %4129 = vmatpush1.msra.mxu0 0.0
    %4130 = vmatprep.mubr.f32.mxu0 0.0
    %4131 = vmatmul.mubr.f32.gmra.mrb[0].mxu0 %v3849
    %v4132 = vpop.f32.mrb[0].mxu0
    %v4133 = vadd.f32 0.0, %v4132
    %v4134 = vpop.f32.mrb[0].mxu0
    %v4135 = vadd.f32 0.0, %v4134
    %4136 = vdwg.mxu0
    %v4137 = vld [vmem:[%s3817] sm:$0xff]
    %v4138 = vld [vmem:[%s3817 + $0x8] sm:$0xff]
    %v4139 = vld [vmem:[%s3817 + $0x10] sm:$0xff]
    %v4140 = vld [vmem:[%s3817 + $0x18] sm:$0xff]
    %v4141 = vadd.f32 %v4137, %v3920
    %v4142 = vadd.f32 %v4138, %v3922
    %v4143 = vadd.f32 %v4139, %v3991
    %v4144 = vadd.f32 %v4140, %v3993
    %v4145 = vxor.u32 %v4141, 2147483648
    %v4146 = vmul.f32 %v4145, 1.442695
    %v4147 = vpow.pop %v4146
    %v4148 = vadd.f32 %v4147, 1.0
    %v4149 = vrcp.pop %v4148
    %v4150 = vmul.f32 1.0, %v4149
    %v4151 = vxor.u32 %v4142, 2147483648
    %v4152 = vmul.f32 %v4151, 1.442695
    %v4153 = vpow.pop %v4152
    %v4154 = vadd.f32 %v4153, 1.0
    %v4155 = vrcp.pop %v4154
    %v4156 = vmul.f32 1.0, %v4155
    %v4157 = vtanh.pop %v4143
    %v4158 = vxor.u32 %v4144, 2147483648
    %v4159 = vmul.f32 %v4158, 1.442695
    %v4160 = vpow.pop %v4159
    %v4161 = vadd.f32 %v4160, 1.0
    %v4162 = vrcp.pop %v4161
    %v4163 = vmul.f32 1.0, %v4162
    %v4164 = vmul.f32 %v4156, %v3814
    %v4165 = vmul.f32 %v4150, %v4157
    %v4166 = vadd.f32 %v4164, %v4165
    %v4167 = vtanh.pop %v4166
    %v4168 = vmul.f32 %v4163, %v4167
    %v4169 = vld [vmem:[#allocation4 + $0x20] sm:$0xff]
    %v4170 = vld [vmem:[#allocation4 + $0x28] sm:$0xff]
    %v4171 = vld [vmem:[#allocation4 + $0x30] sm:$0xff]
    %v4172 = vld [vmem:[#allocation4 + $0x38] sm:$0xff]
    %v4173 = vadd.f32 %v4169, %v4062
    %v4174 = vadd.f32 %v4170, %v4064
    %v4175 = vadd.f32 %v4171, %v4133
    %v4176 = vadd.f32 %v4172, %v4135
    %v4177 = vxor.u32 %v4173, 2147483648
    %v4178 = vmul.f32 %v4177, 1.442695
    %v4179 = vpow.pop %v4178
    %v4180 = vadd.f32 %v4179, 1.0
    %v4181 = vrcp.pop %v4180
    %v4182 = vmul.f32 1.0, %v4181
    %v4183 = vxor.u32 %v4174, 2147483648
    %v4184 = vmul.f32 %v4183, 1.442695
    %v4185 = vpow.pop %v4184
    %v4186 = vadd.f32 %v4185, 1.0
    %v4187 = vrcp.pop %v4186
    %v4188 = vmul.f32 1.0, %v4187
    %v4189 = vtanh.pop %v4175
    %v4190 = vxor.u32 %v4176, 2147483648
    %v4191 = vmul.f32 %v4190, 1.442695
    %v4192 = vpow.pop %v4191
    %v4193 = vadd.f32 %v4192, 1.0
    %v4194 = vrcp.pop %v4193
    %v4195 = vmul.f32 1.0, %v4194
    %v4196 = vmul.f32 %v4188, %v3847
    %v4197 = vmul.f32 %v4182, %v4189
    %v4198 = vadd.f32 %v4196, %v4197
    %v4199 = vtanh.pop %v4198
    %v4200 = vmul.f32 %v4195, %v4199
    %4201 = vst [vmem:[%s3851] sm:$0xff] %v4168
    %4202 = vst [vmem:[#allocation5 + $0x8] sm:$0xff] %v4200
    %v4203 = vld [vmem:[#allocation5] sm:$0xff]
    %v4204 = vld [vmem:[#allocation5 + $0x8] sm:$0xff]
    %v4205 = vld [vmem:[#allocation5 + $0x10] sm:$0xff]
    %v4206 = vld [vmem:[#allocation5 + $0x18] sm:$0xff]
    %v4207 = vld [vmem:[%s8] sm:$0x3]
    %v4209 = vlaneseq
    %v4210 = vshrl.u32 %v4209, 7
    %v4211 = vsub.s32 0, %v4210
    %v4212 = vrot.slane %v4207, %v4211
    %v4213 = vlaneseq
    %v4214 = vshrl.u32 %v4213, 7
    %v4215 = vsub.s32 1, %v4214
    %v4216 = vrot.slane %v4207, %v4215
    %v4219 = vmul.f32 %v4203, %v4212
    %v4220 = vmul.f32 %v4204, %v4216
    %v4221 = vmul.f32 %v4205, %v4212
    %v4222 = vmul.f32 %v4206, %v4216
    %v4223 = vadd.f32 %v4219, %v4220
    %4224 = vadd.xlane.f32.xlu0 %v4223
    %v4225 = vpop.xlane.xlu0 %4224
    %v4226 = vadd.f32 %v4221, %v4222
    %4227 = vadd.xlane.f32.xlu0 %v4226
    %v4228 = vpop.xlane.xlu0 %4227
    %v4229 = vmax.f32 %v4225, %v4228
    %v4230 = vsub.f32 %v4225, %v4229
    %v4231 = vsub.f32 %v4228, %v4229
    %v4232 = vmul.f32 %v4230, 1.442695
    %v4233 = vpow.pop %v4232
    %v4234 = vmul.f32 %v4231, 1.442695
    %v4235 = vpow.pop %v4234
    %v4236 = vadd.f32 %v4233, %v4235
    %v4237 = vrcp.pop %v4236
    %v4238 = vmul.f32 %v4233, %v4237
    %v4239 = vmul.f32 %v4235, %v4237
    %v4240 = vmul.f32 %v4238, %v4203
    %v4241 = vmul.f32 %v4238, %v4204
    %v4242 = vmul.f32 %v4239, %v4205
    %v4243 = vmul.f32 %v4239, %v4206
    %v4244 = vadd.f32 %v4240, %v4242
    %v4245 = vadd.f32 %v4241, %v4243
    %v4246 = vld [vmem:[%s9] sm:$0x3]
    %v4248 = vlaneseq
    %v4249 = vshrl.u32 %v4248, 7
    %v4250 = vsub.s32 0, %v4249
    %v4251 = vrot.slane %v4246, %v4250
    %v4252 = vlaneseq
    %v4253 = vshrl.u32 %v4252, 7
    %v4254 = vsub.s32 1, %v4253
    %v4255 = vrot.slane %v4246, %v4254
    %v4258 = vmul.f32 %v4244, %v4251
    %v4259 = vmul.f32 %v4245, %v4255
    %v4260 = vadd.f32 %v4258, %v4259
    %4261 = vadd.xlane.f32.xlu0 %v4260
    %v4262 = vpop.xlane.xlu0 %4261
    %v4263 = vld [vmem:[#allocation6] sm:$0x1]
    %v4265 = vlaneseq
    %v4266 = vshrl.u32 %v4265, 7
    %v4267 = vsub.s32 0, %v4266
    %v4268 = vrot.slane %v4263, %v4267
    %v4270 = vadd.f32 %v4262, %v4268
    %vm4271 = vcmask 7168
    %4272 = vst.msk [vmem:[%s11] sm:$0xff] %vm4271, %v4270
    // Predicated region
    $region66: #{tpu_custom_call.1} parent=1 // pred_check
      _
    $region67: #{tpu_custom_call.1} parent=1 // pred_check_branch
      %4274 = sbr.rel (0) target = $region69
    $region68: #{tpu_custom_call.1} parent=1 // pred_region
      _
    $region69: #{tpu_custom_call.1} parent=1 // pred_fallthru
      _
    // Predicated region
    $region70: #{tpu_custom_call.1} parent=1 // pred_check
      _
    $region71: #{tpu_custom_call.1} parent=1 // pred_check_branch
      %4276 = sbr.rel (0) target = $region73
    $region72: #{tpu_custom_call.1} parent=1 // pred_region
      _
    $region73: #{tpu_custom_call.1} parent=1 // pred_fallthru
      _
    %4277 = vsyncpa [#allocation8], 1
    %4278 = vsyncpa [#allocation10], 1
    %4279 = vsyncpa [#allocation13], 1

</llo_original>
